<compile_context>
chip_gen: v7x
topology: tpu7x:2x2x1
jax: 0.10.0
libtpu: 0.0.40
codegen_flags: <defaults>
</compile_context>

<pallas_src>
import jax
import jax.numpy as jnp
import numpy as np
from jax.experimental import pallas as pl
from jax.experimental.pallas import tpu as pltpu

EPS = 1e-5  # nn.InstanceNorm2d default eps (affine=False, biased variance)


# ---------------- in-kernel helpers (traced inside the Pallas kernel) --------

def _conv3x3(x, w_ref):
    """x: (H, W, C) float, w_ref: ref of (3, 3, C, C) bf16 -> (H*W, C) f32.

    Reflection-pad(1) + 3x3 conv as 9 MXU matmuls with contraction K = C.
    The three dx taps (w-1, w, w+1, with W-border reflection) are small bf16
    copies; dy taps are cheap leading-dim slices of the H-reflection-padded
    tensor.  No bias: it is mathematically cancelled by the following
    (non-affine) InstanceNorm.  Assumes H >= 2 and W >= 2.
    """
    H, W, C = x.shape
    xb = x.astype(jnp.bfloat16)                       # bf16-early (review item)
    # Reflection pad along H first, on the C-wide tensor (cheapest copy).
    xp = jnp.concatenate([xb[1:2], xb, xb[H - 2:H - 1]], axis=0)      # (H+2, W, C)
    # dx taps with the W reflection folded into the concat itself.
    left = jnp.concatenate([xp[:, 1:2], xp[:, :W - 1]], axis=1)       # value at w-1
    right = jnp.concatenate([xp[:, 1:], xp[:, W - 2:W - 1]], axis=1)  # value at w+1
    taps = (left, xp, right)                                          # kx = 0, 1, 2

    acc = None
    for dy in range(3):            # static unroll: 9 MXU matmuls, f32 accumulation
        for dx in range(3):
            t = taps[dx][dy:dy + H].reshape(H * W, C)
            p = jnp.dot(t, w_ref[dy, dx], preferred_element_type=jnp.float32)
            acc = p if acc is None else acc + p
    return acc


def _instance_norm(y):
    """y: (H*W, C) f32 -> per-channel normalization over the spatial axis.

    Single sweep for the statistics (sum + sum of squares), biased variance,
    no affine; rsqrt goes to the EUP slot.  NOTE: E[x^2]-E[x]^2 in f32 is less
    robust than two-pass when |mean| >> std; clamp keeps it NaN-free.
    """
    inv_hw = 1.0 / y.shape[0]
    s = jnp.sum(y, axis=0, keepdims=True)
    ss = jnp.sum(y * y, axis=0, keepdims=True)
    m = s * inv_hw
    v = jnp.maximum(ss * inv_hw - m * m, 0.0)
    return (y - m) * jax.lax.rsqrt(v + EPS)


# ---------------- the Pallas kernel ------------------------------------------

def resblock_kernel(x_ref, w1_ref, w2_ref, o_ref):
    _, H, W, C = x_ref.shape

    y = _conv3x3(x_ref[0], w1_ref)                  # (H*W, C) f32
    y = jnp.maximum(_instance_norm(y), 0.0)         # ReLU
    # TODO(synk): nn.Dropout(0.5) training-mode path omitted (identity at eval).
    y = _conv3x3(y.reshape(H, W, C), w2_ref)
    y = _instance_norm(y)

    # Residual add re-reads x_ref (already resident in VMEM) instead of a value
    # kept live across both convs.  NOTE: with C < 128 the store is lane-sparse;
    # for production C the wrapper pads C to a multiple of 128 (lane-dense vst).
    o_ref[0] = (y.reshape(H, W, C) + x_ref[0]).astype(o_ref.dtype)


# ---------------- wrappers ----------------------------------------------------

def _prep_weight(w_oihw):
    """OIHW (Cout, Cin, 3, 3) -> (ky, kx, Cin, Cout) bf16."""
    return jnp.transpose(w_oihw, (2, 3, 1, 0)).astype(jnp.bfloat16)


def _vmem_limit_bytes(H, W, C):
    img_f32 = H * W * C * 4
    w_bytes = 2 * (9 * C * C * 2)                   # two bf16 weight tensors
    want = 16 * img_f32 + 4 * w_bytes + (2 << 20)
    try:
        cap = int(0.85 * pltpu.get_tpu_info().vmem_capacity_bytes)
    except Exception:                               # non-TPU backend / interpret
        cap = int(0.85 * (64 << 20))                # conservative (v7x per-TC)
    return min(cap, max(32 << 20, want))


def _res_block_call(x_nhwc, w1_kkio, w2_kkio):
    N, H, W, C = x_nhwc.shape
    return pl.pallas_call(
        resblock_kernel,
        out_shape=jax.ShapeDtypeStruct((N, H, W, C), jnp.float32),
        grid_spec=pltpu.PrefetchScalarGridSpec(
            num_scalar_prefetch=0,
            grid=(N,),
            in_specs=[
                pl.BlockSpec((1, H, W, C), lambda n: (n, 0, 0, 0)),
                pl.BlockSpec((3, 3, C, C), lambda n: (0, 0, 0, 0)),
                pl.BlockSpec((3, 3, C, C), lambda n: (0, 0, 0, 0)),
            ],
            out_specs=pl.BlockSpec((1, H, W, C), lambda n: (n, 0, 0, 0)),
        ),
        compiler_params=pltpu.CompilerParams(
            dimension_semantics=("parallel",),
            vmem_limit_bytes=_vmem_limit_bytes(H, W, C)),
    )(x_nhwc.astype(jnp.float32), w1_kkio, w2_kkio)


def res_block_nhwc(x_nhwc, w1_kkio, w2_kkio):
    """Preferred entry point: NHWC in / NHWC out, weights (3, 3, Cin, Cout) bf16."""
    N, H, W, C = x_nhwc.shape
    assert H >= 2 and W >= 2, "reflection pad of 1 requires H >= 2 and W >= 2"

    # Lane-density padding for production channel counts: zero-pad C to the next
    # multiple of 128.  Padded channels stay exactly zero through conv (zero
    # weights), non-affine InstanceNorm (0 * rsqrt(eps) = 0), ReLU and residual,
    # so slicing them off afterwards is exact.  C < 128 is left as-is.
    if C >= 128 and C % 128 != 0:
        c_pad = (-C) % 128
        xp = jnp.pad(x_nhwc, ((0, 0), (0, 0), (0, 0), (0, c_pad)))
        w1p = jnp.pad(w1_kkio, ((0, 0), (0, 0), (0, c_pad), (0, c_pad)))
        w2p = jnp.pad(w2_kkio, ((0, 0), (0, 0), (0, c_pad), (0, c_pad)))
        return _res_block_call(xp, w1p, w2p)[..., :C]
    return _res_block_call(x_nhwc, w1_kkio, w2_kkio)


def res_block(x_nchw, w1_oihw, b1, w2_oihw, b2):
    """PyTorch-parity wrapper (NCHW in / NCHW out, OIHW weights, biases accepted).

    The conv biases are accepted for API parity but unused: a per-channel
    constant added before a non-affine InstanceNorm is exactly cancelled by the
    mean subtraction.  Boundary transposes are plain XLA ops; callers holding
    NHWC data should use `res_block_nhwc` directly.
    """
    del b1, b2
    x = jnp.transpose(x_nchw, (0, 2, 3, 1))         # NHWC
    out = res_block_nhwc(x, _prep_weight(w1_oihw), _prep_weight(w2_oihw))
    return jnp.transpose(out, (0, 3, 1, 2))         # NCHW


# ---------------- pure-JAX reference (PyTorch semantics, f32, with bias) -----

def res_block_ref(x, w1, b1, w2, b2):
    def pad(z):
        return jnp.pad(z, ((0, 0), (0, 0), (1, 1), (1, 1)), mode='reflect')

    def conv(z, w, b):
        y = jax.lax.conv_general_dilated(
            z, w, window_strides=(1, 1), padding='VALID',
            dimension_numbers=('NCHW', 'OIHW', 'NCHW'))
        return y + b[None, :, None, None]

    def inorm(z):
        m = jnp.mean(z, axis=(2, 3), keepdims=True)
        v = jnp.mean((z - m) ** 2, axis=(2, 3), keepdims=True)
        return (z - m) * jax.lax.rsqrt(v + EPS)

    y = jnp.maximum(inorm(conv(pad(x), w1, b1)), 0.0)
    y = inorm(conv(pad(y), w2, b2))
    return y + x


if __name__ == "__main__":
    key = jax.random.PRNGKey(0)
    kx, k1, kb1, k2, kb2 = jax.random.split(key, 5)

    N, C, H, W = 2, 4, 16, 16                       # small NCHW test shape
    x = jax.random.normal(kx, (N, C, H, W), jnp.float32)
    # Conv2d(C, C, 3) parameters (OIHW + bias).
    w1 = jax.random.normal(k1, (C, C, 3, 3), jnp.float32) * 0.1
    b1 = jax.random.normal(kb1, (C,), jnp.float32) * 0.1
    w2 = jax.random.normal(k2, (C, C, 3, 3), jnp.float32) * 0.1
    b2 = jax.random.normal(kb2, (C,), jnp.float32) * 0.1

    out = jax.block_until_ready(res_block(x, w1, b1, w2, b2))
    ref = jax.block_until_ready(res_block_ref(x, w1, b1, w2, b2))

    assert out.shape == (N, C, H, W)
    # bf16 MXU operands (f32 accumulation / statistics) -> tolerance looser than a
    # pure-f32 version; the reference keeps the biases, confirming the exact
    # bias-cancellation by the non-affine InstanceNorm.
    np.testing.assert_allclose(np.asarray(out), np.asarray(ref),
                               rtol=2e-2, atol=5e-2)
    print("KERNEL_OK")
</pallas_src>

<mosaic_0001>
module attributes {stable_mosaic.version = 11 : i64} {
  func.func @resblock_kernel(%arg0: i32, %arg1: memref<1x16x16x4xf32, #tpu.memory_space<vmem>>, %arg2: memref<3x3x4x4xbf16, #tpu.memory_space<vmem>>, %arg3: memref<3x3x4x4xbf16, #tpu.memory_space<vmem>>, %arg4: memref<1x16x16x4xf32, #tpu.memory_space<vmem>>) attributes {dimension_semantics = [#tpu.dimension_semantics<parallel>], iteration_bounds = array<i64: 2>, scalar_prefetch = 0 : i64, scratch_operands = 0 : i64, tpu.core_type = #tpu.core_type<tc>, window_params = [{transform_indices = @transform_0, window_bounds = array<i64: 1, 16, 16, 4>}, {pipeline_mode = #tpu.pipeline_mode<synchronous>, transform_indices = @transform_1, window_bounds = array<i64: 3, 3, 4, 4>}, {pipeline_mode = #tpu.pipeline_mode<synchronous>, transform_indices = @transform_2, window_bounds = array<i64: 3, 3, 4, 4>}, {transform_indices = @transform_3, window_bounds = array<i64: 1, 16, 16, 4>}]} {
    %c0 = arith.constant 0 : index
    %c0_0 = arith.constant 0 : index
    %c0_1 = arith.constant 0 : index
    %c0_2 = arith.constant 0 : index
    %0 = vector.load %arg1[%c0, %c0_0, %c0_1, %c0_2] : memref<1x16x16x4xf32, #tpu.memory_space<vmem>>, vector<1x16x16x4xf32>
    %1 = vector.shape_cast %0 : vector<1x16x16x4xf32> to vector<16x16x4xf32>
    %2 = arith.truncf %1 : vector<16x16x4xf32> to vector<16x16x4xbf16>
    %3 = vector.extract_strided_slice %2 {offsets = [1, 0, 0], sizes = [1, 16, 4], strides = [1, 1, 1]} : vector<16x16x4xbf16> to vector<1x16x4xbf16>
    %4 = vector.extract_strided_slice %2 {offsets = [14, 0, 0], sizes = [1, 16, 4], strides = [1, 1, 1]} : vector<16x16x4xbf16> to vector<1x16x4xbf16>
    %5 = tpu.concatenate %3, %2, %4 in 0 : vector<1x16x4xbf16>, vector<16x16x4xbf16>, vector<1x16x4xbf16> -> vector<18x16x4xbf16>
    %6 = vector.extract_strided_slice %5 {offsets = [0, 1, 0], sizes = [18, 1, 4], strides = [1, 1, 1]} : vector<18x16x4xbf16> to vector<18x1x4xbf16>
    %7 = vector.extract_strided_slice %5 {offsets = [0, 0, 0], sizes = [18, 15, 4], strides = [1, 1, 1]} : vector<18x16x4xbf16> to vector<18x15x4xbf16>
    %8 = tpu.concatenate %6, %7 in 1 : vector<18x1x4xbf16>, vector<18x15x4xbf16> -> vector<18x16x4xbf16>
    %9 = vector.extract_strided_slice %5 {offsets = [0, 1, 0], sizes = [18, 15, 4], strides = [1, 1, 1]} : vector<18x16x4xbf16> to vector<18x15x4xbf16>
    %10 = vector.extract_strided_slice %5 {offsets = [0, 14, 0], sizes = [18, 1, 4], strides = [1, 1, 1]} : vector<18x16x4xbf16> to vector<18x1x4xbf16>
    %11 = tpu.concatenate %9, %10 in 1 : vector<18x15x4xbf16>, vector<18x1x4xbf16> -> vector<18x16x4xbf16>
    %12 = vector.extract_strided_slice %8 {offsets = [0, 0, 0], sizes = [16, 16, 4], strides = [1, 1, 1]} : vector<18x16x4xbf16> to vector<16x16x4xbf16>
    %13 = vector.shape_cast %12 : vector<16x16x4xbf16> to vector<256x4xbf16>
    %c0_3 = arith.constant 0 : index
    %c0_4 = arith.constant 0 : index
    %c0_5 = arith.constant 0 : index
    %c0_6 = arith.constant 0 : index
    %14 = vector.load %arg2[%c0_3, %c0_4, %c0_5, %c0_6] : memref<3x3x4x4xbf16, #tpu.memory_space<vmem>>, vector<1x1x4x4xbf16>
    %15 = vector.shape_cast %14 : vector<1x1x4x4xbf16> to vector<4x4xbf16>
    %cst = arith.constant dense<0.000000e+00> : vector<256x4xf32>
    %16 = tpu.matmul %13, %15, %cst {dimension_numbers = #tpu.dot_dimension_numbers<[1], [0], [0], [1], [0, 0, 1, 1], [], []>} : vector<256x4xbf16>, vector<4x4xbf16>, vector<256x4xf32> -> vector<256x4xf32>
    %17 = vector.extract_strided_slice %5 {offsets = [0, 0, 0], sizes = [16, 16, 4], strides = [1, 1, 1]} : vector<18x16x4xbf16> to vector<16x16x4xbf16>
    %18 = vector.shape_cast %17 : vector<16x16x4xbf16> to vector<256x4xbf16>
    %c0_7 = arith.constant 0 : index
    %c1 = arith.constant 1 : index
    %c0_8 = arith.constant 0 : index
    %c0_9 = arith.constant 0 : index
    %19 = vector.load %arg2[%c0_7, %c1, %c0_8, %c0_9] : memref<3x3x4x4xbf16, #tpu.memory_space<vmem>>, vector<1x1x4x4xbf16>
    %20 = vector.shape_cast %19 : vector<1x1x4x4xbf16> to vector<4x4xbf16>
    %cst_10 = arith.constant dense<0.000000e+00> : vector<256x4xf32>
    %21 = tpu.matmul %18, %20, %cst_10 {dimension_numbers = #tpu.dot_dimension_numbers<[1], [0], [0], [1], [0, 0, 1, 1], [], []>} : vector<256x4xbf16>, vector<4x4xbf16>, vector<256x4xf32> -> vector<256x4xf32>
    %22 = arith.addf %16, %21 : vector<256x4xf32>
    %23 = vector.extract_strided_slice %11 {offsets = [0, 0, 0], sizes = [16, 16, 4], strides = [1, 1, 1]} : vector<18x16x4xbf16> to vector<16x16x4xbf16>
    %24 = vector.shape_cast %23 : vector<16x16x4xbf16> to vector<256x4xbf16>
    %c0_11 = arith.constant 0 : index
    %c2 = arith.constant 2 : index
    %c0_12 = arith.constant 0 : index
    %c0_13 = arith.constant 0 : index
    %25 = vector.load %arg2[%c0_11, %c2, %c0_12, %c0_13] : memref<3x3x4x4xbf16, #tpu.memory_space<vmem>>, vector<1x1x4x4xbf16>
    %26 = vector.shape_cast %25 : vector<1x1x4x4xbf16> to vector<4x4xbf16>
    %cst_14 = arith.constant dense<0.000000e+00> : vector<256x4xf32>
    %27 = tpu.matmul %24, %26, %cst_14 {dimension_numbers = #tpu.dot_dimension_numbers<[1], [0], [0], [1], [0, 0, 1, 1], [], []>} : vector<256x4xbf16>, vector<4x4xbf16>, vector<256x4xf32> -> vector<256x4xf32>
    %28 = arith.addf %22, %27 : vector<256x4xf32>
    %29 = vector.extract_strided_slice %8 {offsets = [1, 0, 0], sizes = [16, 16, 4], strides = [1, 1, 1]} : vector<18x16x4xbf16> to vector<16x16x4xbf16>
    %30 = vector.shape_cast %29 : vector<16x16x4xbf16> to vector<256x4xbf16>
    %c1_15 = arith.constant 1 : index
    %c0_16 = arith.constant 0 : index
    %c0_17 = arith.constant 0 : index
    %c0_18 = arith.constant 0 : index
    %31 = vector.load %arg2[%c1_15, %c0_16, %c0_17, %c0_18] : memref<3x3x4x4xbf16, #tpu.memory_space<vmem>>, vector<1x1x4x4xbf16>
    %32 = vector.shape_cast %31 : vector<1x1x4x4xbf16> to vector<4x4xbf16>
    %cst_19 = arith.constant dense<0.000000e+00> : vector<256x4xf32>
    %33 = tpu.matmul %30, %32, %cst_19 {dimension_numbers = #tpu.dot_dimension_numbers<[1], [0], [0], [1], [0, 0, 1, 1], [], []>} : vector<256x4xbf16>, vector<4x4xbf16>, vector<256x4xf32> -> vector<256x4xf32>
    %34 = arith.addf %28, %33 : vector<256x4xf32>
    %35 = vector.extract_strided_slice %5 {offsets = [1, 0, 0], sizes = [16, 16, 4], strides = [1, 1, 1]} : vector<18x16x4xbf16> to vector<16x16x4xbf16>
    %36 = vector.shape_cast %35 : vector<16x16x4xbf16> to vector<256x4xbf16>
    %c1_20 = arith.constant 1 : index
    %c1_21 = arith.constant 1 : index
    %c0_22 = arith.constant 0 : index
    %c0_23 = arith.constant 0 : index
    %37 = vector.load %arg2[%c1_20, %c1_21, %c0_22, %c0_23] : memref<3x3x4x4xbf16, #tpu.memory_space<vmem>>, vector<1x1x4x4xbf16>
    %38 = vector.shape_cast %37 : vector<1x1x4x4xbf16> to vector<4x4xbf16>
    %cst_24 = arith.constant dense<0.000000e+00> : vector<256x4xf32>
    %39 = tpu.matmul %36, %38, %cst_24 {dimension_numbers = #tpu.dot_dimension_numbers<[1], [0], [0], [1], [0, 0, 1, 1], [], []>} : vector<256x4xbf16>, vector<4x4xbf16>, vector<256x4xf32> -> vector<256x4xf32>
    %40 = arith.addf %34, %39 : vector<256x4xf32>
    %41 = vector.extract_strided_slice %11 {offsets = [1, 0, 0], sizes = [16, 16, 4], strides = [1, 1, 1]} : vector<18x16x4xbf16> to vector<16x16x4xbf16>
    %42 = vector.shape_cast %41 : vector<16x16x4xbf16> to vector<256x4xbf16>
    %c1_25 = arith.constant 1 : index
    %c2_26 = arith.constant 2 : index
    %c0_27 = arith.constant 0 : index
    %c0_28 = arith.constant 0 : index
    %43 = vector.load %arg2[%c1_25, %c2_26, %c0_27, %c0_28] : memref<3x3x4x4xbf16, #tpu.memory_space<vmem>>, vector<1x1x4x4xbf16>
    %44 = vector.shape_cast %43 : vector<1x1x4x4xbf16> to vector<4x4xbf16>
    %cst_29 = arith.constant dense<0.000000e+00> : vector<256x4xf32>
    %45 = tpu.matmul %42, %44, %cst_29 {dimension_numbers = #tpu.dot_dimension_numbers<[1], [0], [0], [1], [0, 0, 1, 1], [], []>} : vector<256x4xbf16>, vector<4x4xbf16>, vector<256x4xf32> -> vector<256x4xf32>
    %46 = arith.addf %40, %45 : vector<256x4xf32>
    %47 = vector.extract_strided_slice %8 {offsets = [2, 0, 0], sizes = [16, 16, 4], strides = [1, 1, 1]} : vector<18x16x4xbf16> to vector<16x16x4xbf16>
    %48 = vector.shape_cast %47 : vector<16x16x4xbf16> to vector<256x4xbf16>
    %c2_30 = arith.constant 2 : index
    %c0_31 = arith.constant 0 : index
    %c0_32 = arith.constant 0 : index
    %c0_33 = arith.constant 0 : index
    %49 = vector.load %arg2[%c2_30, %c0_31, %c0_32, %c0_33] : memref<3x3x4x4xbf16, #tpu.memory_space<vmem>>, vector<1x1x4x4xbf16>
    %50 = vector.shape_cast %49 : vector<1x1x4x4xbf16> to vector<4x4xbf16>
    %cst_34 = arith.constant dense<0.000000e+00> : vector<256x4xf32>
    %51 = tpu.matmul %48, %50, %cst_34 {dimension_numbers = #tpu.dot_dimension_numbers<[1], [0], [0], [1], [0, 0, 1, 1], [], []>} : vector<256x4xbf16>, vector<4x4xbf16>, vector<256x4xf32> -> vector<256x4xf32>
    %52 = arith.addf %46, %51 : vector<256x4xf32>
    %53 = vector.extract_strided_slice %5 {offsets = [2, 0, 0], sizes = [16, 16, 4], strides = [1, 1, 1]} : vector<18x16x4xbf16> to vector<16x16x4xbf16>
    %54 = vector.shape_cast %53 : vector<16x16x4xbf16> to vector<256x4xbf16>
    %c2_35 = arith.constant 2 : index
    %c1_36 = arith.constant 1 : index
    %c0_37 = arith.constant 0 : index
    %c0_38 = arith.constant 0 : index
    %55 = vector.load %arg2[%c2_35, %c1_36, %c0_37, %c0_38] : memref<3x3x4x4xbf16, #tpu.memory_space<vmem>>, vector<1x1x4x4xbf16>
    %56 = vector.shape_cast %55 : vector<1x1x4x4xbf16> to vector<4x4xbf16>
    %cst_39 = arith.constant dense<0.000000e+00> : vector<256x4xf32>
    %57 = tpu.matmul %54, %56, %cst_39 {dimension_numbers = #tpu.dot_dimension_numbers<[1], [0], [0], [1], [0, 0, 1, 1], [], []>} : vector<256x4xbf16>, vector<4x4xbf16>, vector<256x4xf32> -> vector<256x4xf32>
    %58 = arith.addf %52, %57 : vector<256x4xf32>
    %59 = vector.extract_strided_slice %11 {offsets = [2, 0, 0], sizes = [16, 16, 4], strides = [1, 1, 1]} : vector<18x16x4xbf16> to vector<16x16x4xbf16>
    %60 = vector.shape_cast %59 : vector<16x16x4xbf16> to vector<256x4xbf16>
    %c2_40 = arith.constant 2 : index
    %c2_41 = arith.constant 2 : index
    %c0_42 = arith.constant 0 : index
    %c0_43 = arith.constant 0 : index
    %61 = vector.load %arg2[%c2_40, %c2_41, %c0_42, %c0_43] : memref<3x3x4x4xbf16, #tpu.memory_space<vmem>>, vector<1x1x4x4xbf16>
    %62 = vector.shape_cast %61 : vector<1x1x4x4xbf16> to vector<4x4xbf16>
    %cst_44 = arith.constant dense<0.000000e+00> : vector<256x4xf32>
    %63 = tpu.matmul %60, %62, %cst_44 {dimension_numbers = #tpu.dot_dimension_numbers<[1], [0], [0], [1], [0, 0, 1, 1], [], []>} : vector<256x4xbf16>, vector<4x4xbf16>, vector<256x4xf32> -> vector<256x4xf32>
    %64 = arith.addf %58, %63 : vector<256x4xf32>
    %cst_45 = arith.constant dense<0.000000e+00> : vector<4xf32>
    %65 = vector.multi_reduction <add>, %64, %cst_45 [0] : vector<256x4xf32> to vector<4xf32>
    %66 = vector.shape_cast %65 : vector<4xf32> to vector<1x4xf32>
    %67 = arith.mulf %64, %64 : vector<256x4xf32>
    %cst_46 = arith.constant dense<0.000000e+00> : vector<4xf32>
    %68 = vector.multi_reduction <add>, %67, %cst_46 [0] : vector<256x4xf32> to vector<4xf32>
    %69 = vector.shape_cast %68 : vector<4xf32> to vector<1x4xf32>
    %cst_47 = arith.constant 3.906250e-03 : f32
    %70 = vector.broadcast %cst_47 : f32 to vector<1x4xf32>
    %71 = arith.mulf %66, %70 : vector<1x4xf32>
    %cst_48 = arith.constant 3.906250e-03 : f32
    %72 = vector.broadcast %cst_48 : f32 to vector<1x4xf32>
    %73 = arith.mulf %69, %72 : vector<1x4xf32>
    %74 = arith.mulf %71, %71 : vector<1x4xf32>
    %75 = arith.subf %73, %74 : vector<1x4xf32>
    %cst_49 = arith.constant 0.000000e+00 : f32
    %76 = vector.broadcast %cst_49 : f32 to vector<1x4xf32>
    %77 = arith.maximumf %75, %76 : vector<1x4xf32>
    %78 = vector.broadcast %71 : vector<1x4xf32> to vector<256x4xf32>
    %79 = arith.subf %64, %78 : vector<256x4xf32>
    %cst_50 = arith.constant 9.99999974E-6 : f32
    %80 = vector.broadcast %cst_50 : f32 to vector<1x4xf32>
    %81 = arith.addf %77, %80 : vector<1x4xf32>
    %82 = math.rsqrt %81 : vector<1x4xf32>
    %83 = vector.broadcast %82 : vector<1x4xf32> to vector<256x4xf32>
    %84 = arith.mulf %79, %83 : vector<256x4xf32>
    %cst_51 = arith.constant 0.000000e+00 : f32
    %85 = vector.broadcast %cst_51 : f32 to vector<256x4xf32>
    %86 = arith.maximumf %84, %85 : vector<256x4xf32>
    %87 = vector.shape_cast %86 : vector<256x4xf32> to vector<16x16x4xf32>
    %88 = arith.truncf %87 : vector<16x16x4xf32> to vector<16x16x4xbf16>
    %89 = vector.extract_strided_slice %88 {offsets = [1, 0, 0], sizes = [1, 16, 4], strides = [1, 1, 1]} : vector<16x16x4xbf16> to vector<1x16x4xbf16>
    %90 = vector.extract_strided_slice %88 {offsets = [14, 0, 0], sizes = [1, 16, 4], strides = [1, 1, 1]} : vector<16x16x4xbf16> to vector<1x16x4xbf16>
    %91 = tpu.concatenate %89, %88, %90 in 0 : vector<1x16x4xbf16>, vector<16x16x4xbf16>, vector<1x16x4xbf16> -> vector<18x16x4xbf16>
    %92 = vector.extract_strided_slice %91 {offsets = [0, 1, 0], sizes = [18, 1, 4], strides = [1, 1, 1]} : vector<18x16x4xbf16> to vector<18x1x4xbf16>
    %93 = vector.extract_strided_slice %91 {offsets = [0, 0, 0], sizes = [18, 15, 4], strides = [1, 1, 1]} : vector<18x16x4xbf16> to vector<18x15x4xbf16>
    %94 = tpu.concatenate %92, %93 in 1 : vector<18x1x4xbf16>, vector<18x15x4xbf16> -> vector<18x16x4xbf16>
    %95 = vector.extract_strided_slice %91 {offsets = [0, 1, 0], sizes = [18, 15, 4], strides = [1, 1, 1]} : vector<18x16x4xbf16> to vector<18x15x4xbf16>
    %96 = vector.extract_strided_slice %91 {offsets = [0, 14, 0], sizes = [18, 1, 4], strides = [1, 1, 1]} : vector<18x16x4xbf16> to vector<18x1x4xbf16>
    %97 = tpu.concatenate %95, %96 in 1 : vector<18x15x4xbf16>, vector<18x1x4xbf16> -> vector<18x16x4xbf16>
    %98 = vector.extract_strided_slice %94 {offsets = [0, 0, 0], sizes = [16, 16, 4], strides = [1, 1, 1]} : vector<18x16x4xbf16> to vector<16x16x4xbf16>
    %99 = vector.shape_cast %98 : vector<16x16x4xbf16> to vector<256x4xbf16>
    %c0_52 = arith.constant 0 : index
    %c0_53 = arith.constant 0 : index
    %c0_54 = arith.constant 0 : index
    %c0_55 = arith.constant 0 : index
    %100 = vector.load %arg3[%c0_52, %c0_53, %c0_54, %c0_55] : memref<3x3x4x4xbf16, #tpu.memory_space<vmem>>, vector<1x1x4x4xbf16>
    %101 = vector.shape_cast %100 : vector<1x1x4x4xbf16> to vector<4x4xbf16>
    %cst_56 = arith.constant dense<0.000000e+00> : vector<256x4xf32>
    %102 = tpu.matmul %99, %101, %cst_56 {dimension_numbers = #tpu.dot_dimension_numbers<[1], [0], [0], [1], [0, 0, 1, 1], [], []>} : vector<256x4xbf16>, vector<4x4xbf16>, vector<256x4xf32> -> vector<256x4xf32>
    %103 = vector.extract_strided_slice %91 {offsets = [0, 0, 0], sizes = [16, 16, 4], strides = [1, 1, 1]} : vector<18x16x4xbf16> to vector<16x16x4xbf16>
    %104 = vector.shape_cast %103 : vector<16x16x4xbf16> to vector<256x4xbf16>
    %c0_57 = arith.constant 0 : index
    %c1_58 = arith.constant 1 : index
    %c0_59 = arith.constant 0 : index
    %c0_60 = arith.constant 0 : index
    %105 = vector.load %arg3[%c0_57, %c1_58, %c0_59, %c0_60] : memref<3x3x4x4xbf16, #tpu.memory_space<vmem>>, vector<1x1x4x4xbf16>
    %106 = vector.shape_cast %105 : vector<1x1x4x4xbf16> to vector<4x4xbf16>
    %cst_61 = arith.constant dense<0.000000e+00> : vector<256x4xf32>
    %107 = tpu.matmul %104, %106, %cst_61 {dimension_numbers = #tpu.dot_dimension_numbers<[1], [0], [0], [1], [0, 0, 1, 1], [], []>} : vector<256x4xbf16>, vector<4x4xbf16>, vector<256x4xf32> -> vector<256x4xf32>
    %108 = arith.addf %102, %107 : vector<256x4xf32>
    %109 = vector.extract_strided_slice %97 {offsets = [0, 0, 0], sizes = [16, 16, 4], strides = [1, 1, 1]} : vector<18x16x4xbf16> to vector<16x16x4xbf16>
    %110 = vector.shape_cast %109 : vector<16x16x4xbf16> to vector<256x4xbf16>
    %c0_62 = arith.constant 0 : index
    %c2_63 = arith.constant 2 : index
    %c0_64 = arith.constant 0 : index
    %c0_65 = arith.constant 0 : index
    %111 = vector.load %arg3[%c0_62, %c2_63, %c0_64, %c0_65] : memref<3x3x4x4xbf16, #tpu.memory_space<vmem>>, vector<1x1x4x4xbf16>
    %112 = vector.shape_cast %111 : vector<1x1x4x4xbf16> to vector<4x4xbf16>
    %cst_66 = arith.constant dense<0.000000e+00> : vector<256x4xf32>
    %113 = tpu.matmul %110, %112, %cst_66 {dimension_numbers = #tpu.dot_dimension_numbers<[1], [0], [0], [1], [0, 0, 1, 1], [], []>} : vector<256x4xbf16>, vector<4x4xbf16>, vector<256x4xf32> -> vector<256x4xf32>
    %114 = arith.addf %108, %113 : vector<256x4xf32>
    %115 = vector.extract_strided_slice %94 {offsets = [1, 0, 0], sizes = [16, 16, 4], strides = [1, 1, 1]} : vector<18x16x4xbf16> to vector<16x16x4xbf16>
    %116 = vector.shape_cast %115 : vector<16x16x4xbf16> to vector<256x4xbf16>
    %c1_67 = arith.constant 1 : index
    %c0_68 = arith.constant 0 : index
    %c0_69 = arith.constant 0 : index
    %c0_70 = arith.constant 0 : index
    %117 = vector.load %arg3[%c1_67, %c0_68, %c0_69, %c0_70] : memref<3x3x4x4xbf16, #tpu.memory_space<vmem>>, vector<1x1x4x4xbf16>
    %118 = vector.shape_cast %117 : vector<1x1x4x4xbf16> to vector<4x4xbf16>
    %cst_71 = arith.constant dense<0.000000e+00> : vector<256x4xf32>
    %119 = tpu.matmul %116, %118, %cst_71 {dimension_numbers = #tpu.dot_dimension_numbers<[1], [0], [0], [1], [0, 0, 1, 1], [], []>} : vector<256x4xbf16>, vector<4x4xbf16>, vector<256x4xf32> -> vector<256x4xf32>
    %120 = arith.addf %114, %119 : vector<256x4xf32>
    %121 = vector.extract_strided_slice %91 {offsets = [1, 0, 0], sizes = [16, 16, 4], strides = [1, 1, 1]} : vector<18x16x4xbf16> to vector<16x16x4xbf16>
    %122 = vector.shape_cast %121 : vector<16x16x4xbf16> to vector<256x4xbf16>
    %c1_72 = arith.constant 1 : index
    %c1_73 = arith.constant 1 : index
    %c0_74 = arith.constant 0 : index
    %c0_75 = arith.constant 0 : index
    %123 = vector.load %arg3[%c1_72, %c1_73, %c0_74, %c0_75] : memref<3x3x4x4xbf16, #tpu.memory_space<vmem>>, vector<1x1x4x4xbf16>
    %124 = vector.shape_cast %123 : vector<1x1x4x4xbf16> to vector<4x4xbf16>
    %cst_76 = arith.constant dense<0.000000e+00> : vector<256x4xf32>
    %125 = tpu.matmul %122, %124, %cst_76 {dimension_numbers = #tpu.dot_dimension_numbers<[1], [0], [0], [1], [0, 0, 1, 1], [], []>} : vector<256x4xbf16>, vector<4x4xbf16>, vector<256x4xf32> -> vector<256x4xf32>
    %126 = arith.addf %120, %125 : vector<256x4xf32>
    %127 = vector.extract_strided_slice %97 {offsets = [1, 0, 0], sizes = [16, 16, 4], strides = [1, 1, 1]} : vector<18x16x4xbf16> to vector<16x16x4xbf16>
    %128 = vector.shape_cast %127 : vector<16x16x4xbf16> to vector<256x4xbf16>
    %c1_77 = arith.constant 1 : index
    %c2_78 = arith.constant 2 : index
    %c0_79 = arith.constant 0 : index
    %c0_80 = arith.constant 0 : index
    %129 = vector.load %arg3[%c1_77, %c2_78, %c0_79, %c0_80] : memref<3x3x4x4xbf16, #tpu.memory_space<vmem>>, vector<1x1x4x4xbf16>
    %130 = vector.shape_cast %129 : vector<1x1x4x4xbf16> to vector<4x4xbf16>
    %cst_81 = arith.constant dense<0.000000e+00> : vector<256x4xf32>
    %131 = tpu.matmul %128, %130, %cst_81 {dimension_numbers = #tpu.dot_dimension_numbers<[1], [0], [0], [1], [0, 0, 1, 1], [], []>} : vector<256x4xbf16>, vector<4x4xbf16>, vector<256x4xf32> -> vector<256x4xf32>
    %132 = arith.addf %126, %131 : vector<256x4xf32>
    %133 = vector.extract_strided_slice %94 {offsets = [2, 0, 0], sizes = [16, 16, 4], strides = [1, 1, 1]} : vector<18x16x4xbf16> to vector<16x16x4xbf16>
    %134 = vector.shape_cast %133 : vector<16x16x4xbf16> to vector<256x4xbf16>
    %c2_82 = arith.constant 2 : index
    %c0_83 = arith.constant 0 : index
    %c0_84 = arith.constant 0 : index
    %c0_85 = arith.constant 0 : index
    %135 = vector.load %arg3[%c2_82, %c0_83, %c0_84, %c0_85] : memref<3x3x4x4xbf16, #tpu.memory_space<vmem>>, vector<1x1x4x4xbf16>
    %136 = vector.shape_cast %135 : vector<1x1x4x4xbf16> to vector<4x4xbf16>
    %cst_86 = arith.constant dense<0.000000e+00> : vector<256x4xf32>
    %137 = tpu.matmul %134, %136, %cst_86 {dimension_numbers = #tpu.dot_dimension_numbers<[1], [0], [0], [1], [0, 0, 1, 1], [], []>} : vector<256x4xbf16>, vector<4x4xbf16>, vector<256x4xf32> -> vector<256x4xf32>
    %138 = arith.addf %132, %137 : vector<256x4xf32>
    %139 = vector.extract_strided_slice %91 {offsets = [2, 0, 0], sizes = [16, 16, 4], strides = [1, 1, 1]} : vector<18x16x4xbf16> to vector<16x16x4xbf16>
    %140 = vector.shape_cast %139 : vector<16x16x4xbf16> to vector<256x4xbf16>
    %c2_87 = arith.constant 2 : index
    %c1_88 = arith.constant 1 : index
    %c0_89 = arith.constant 0 : index
    %c0_90 = arith.constant 0 : index
    %141 = vector.load %arg3[%c2_87, %c1_88, %c0_89, %c0_90] : memref<3x3x4x4xbf16, #tpu.memory_space<vmem>>, vector<1x1x4x4xbf16>
    %142 = vector.shape_cast %141 : vector<1x1x4x4xbf16> to vector<4x4xbf16>
    %cst_91 = arith.constant dense<0.000000e+00> : vector<256x4xf32>
    %143 = tpu.matmul %140, %142, %cst_91 {dimension_numbers = #tpu.dot_dimension_numbers<[1], [0], [0], [1], [0, 0, 1, 1], [], []>} : vector<256x4xbf16>, vector<4x4xbf16>, vector<256x4xf32> -> vector<256x4xf32>
    %144 = arith.addf %138, %143 : vector<256x4xf32>
    %145 = vector.extract_strided_slice %97 {offsets = [2, 0, 0], sizes = [16, 16, 4], strides = [1, 1, 1]} : vector<18x16x4xbf16> to vector<16x16x4xbf16>
    %146 = vector.shape_cast %145 : vector<16x16x4xbf16> to vector<256x4xbf16>
    %c2_92 = arith.constant 2 : index
    %c2_93 = arith.constant 2 : index
    %c0_94 = arith.constant 0 : index
    %c0_95 = arith.constant 0 : index
    %147 = vector.load %arg3[%c2_92, %c2_93, %c0_94, %c0_95] : memref<3x3x4x4xbf16, #tpu.memory_space<vmem>>, vector<1x1x4x4xbf16>
    %148 = vector.shape_cast %147 : vector<1x1x4x4xbf16> to vector<4x4xbf16>
    %cst_96 = arith.constant dense<0.000000e+00> : vector<256x4xf32>
    %149 = tpu.matmul %146, %148, %cst_96 {dimension_numbers = #tpu.dot_dimension_numbers<[1], [0], [0], [1], [0, 0, 1, 1], [], []>} : vector<256x4xbf16>, vector<4x4xbf16>, vector<256x4xf32> -> vector<256x4xf32>
    %150 = arith.addf %144, %149 : vector<256x4xf32>
    %cst_97 = arith.constant dense<0.000000e+00> : vector<4xf32>
    %151 = vector.multi_reduction <add>, %150, %cst_97 [0] : vector<256x4xf32> to vector<4xf32>
    %152 = vector.shape_cast %151 : vector<4xf32> to vector<1x4xf32>
    %153 = arith.mulf %150, %150 : vector<256x4xf32>
    %cst_98 = arith.constant dense<0.000000e+00> : vector<4xf32>
    %154 = vector.multi_reduction <add>, %153, %cst_98 [0] : vector<256x4xf32> to vector<4xf32>
    %155 = vector.shape_cast %154 : vector<4xf32> to vector<1x4xf32>
    %cst_99 = arith.constant 3.906250e-03 : f32
    %156 = vector.broadcast %cst_99 : f32 to vector<1x4xf32>
    %157 = arith.mulf %152, %156 : vector<1x4xf32>
    %cst_100 = arith.constant 3.906250e-03 : f32
    %158 = vector.broadcast %cst_100 : f32 to vector<1x4xf32>
    %159 = arith.mulf %155, %158 : vector<1x4xf32>
    %160 = arith.mulf %157, %157 : vector<1x4xf32>
    %161 = arith.subf %159, %160 : vector<1x4xf32>
    %cst_101 = arith.constant 0.000000e+00 : f32
    %162 = vector.broadcast %cst_101 : f32 to vector<1x4xf32>
    %163 = arith.maximumf %161, %162 : vector<1x4xf32>
    %164 = vector.broadcast %157 : vector<1x4xf32> to vector<256x4xf32>
    %165 = arith.subf %150, %164 : vector<256x4xf32>
    %cst_102 = arith.constant 9.99999974E-6 : f32
    %166 = vector.broadcast %cst_102 : f32 to vector<1x4xf32>
    %167 = arith.addf %163, %166 : vector<1x4xf32>
    %168 = math.rsqrt %167 : vector<1x4xf32>
    %169 = vector.broadcast %168 : vector<1x4xf32> to vector<256x4xf32>
    %170 = arith.mulf %165, %169 : vector<256x4xf32>
    %171 = vector.shape_cast %170 : vector<256x4xf32> to vector<16x16x4xf32>
    %c0_103 = arith.constant 0 : index
    %c0_104 = arith.constant 0 : index
    %c0_105 = arith.constant 0 : index
    %c0_106 = arith.constant 0 : index
    %172 = vector.load %arg1[%c0_103, %c0_104, %c0_105, %c0_106] : memref<1x16x16x4xf32, #tpu.memory_space<vmem>>, vector<1x16x16x4xf32>
    %173 = vector.shape_cast %172 : vector<1x16x16x4xf32> to vector<16x16x4xf32>
    %174 = arith.addf %171, %173 : vector<16x16x4xf32>
    %c0_107 = arith.constant 0 : index
    %c0_108 = arith.constant 0 : index
    %c0_109 = arith.constant 0 : index
    %c0_110 = arith.constant 0 : index
    %175 = vector.load %arg4[%c0_107, %c0_108, %c0_109, %c0_110] : memref<1x16x16x4xf32, #tpu.memory_space<vmem>>, vector<1x16x16x4xf32>
    %176 = vector.shape_cast %175 : vector<1x16x16x4xf32> to vector<16x16x4xf32>
    %177 = vector.shape_cast %174 : vector<16x16x4xf32> to vector<1x16x16x4xf32>
    tpu.vector_store %arg4[%c0_107, %c0_108, %c0_109, %c0_110], %177 {strides = array<i32>} : memref<1x16x16x4xf32, #tpu.memory_space<vmem>>, vector<1x16x16x4xf32>,
    return
  }
  func.func @transform_0(%arg0: i32) -> (i32, i32, i32, i32) {
    %c0_i32 = arith.constant 0 : i32
    %c0_i32_0 = arith.constant 0 : i32
    %c0_i32_1 = arith.constant 0 : i32
    %c0_i32_2 = arith.constant 0 : i32
    return %arg0, %c0_i32, %c0_i32_0, %c0_i32_1 : i32, i32, i32, i32
  }
  func.func @transform_1(%arg0: i32) -> (i32, i32, i32, i32) {
    %c0_i32 = arith.constant 0 : i32
    %c0_i32_0 = arith.constant 0 : i32
    %c0_i32_1 = arith.constant 0 : i32
    %c0_i32_2 = arith.constant 0 : i32
    %c0_i32_3 = arith.constant 0 : i32
    return %c0_i32, %c0_i32_0, %c0_i32_1, %c0_i32_2 : i32, i32, i32, i32
  }
  func.func @transform_2(%arg0: i32) -> (i32, i32, i32, i32) {
    %c0_i32 = arith.constant 0 : i32
    %c0_i32_0 = arith.constant 0 : i32
    %c0_i32_1 = arith.constant 0 : i32
    %c0_i32_2 = arith.constant 0 : i32
    %c0_i32_3 = arith.constant 0 : i32
    return %c0_i32, %c0_i32_0, %c0_i32_1, %c0_i32_2 : i32, i32, i32, i32
  }
  func.func @transform_3(%arg0: i32) -> (i32, i32, i32, i32) {
    %c0_i32 = arith.constant 0 : i32
    %c0_i32_0 = arith.constant 0 : i32
    %c0_i32_1 = arith.constant 0 : i32
    %c0_i32_2 = arith.constant 0 : i32
    return %arg0, %c0_i32, %c0_i32_0, %c0_i32_1 : i32, i32, i32, i32
  }
}

</mosaic_0001>

<llo_original>
// kernel: tpu_custom_call.1
$region0: #{tpu_custom_call.1}
  #allocation0 [shape = 'u32[]', space=smem, size = 0x4, offset = 0x4, fixed_abs, tag = 'smem constant byte address 0x4 - core index']
  #allocation1 [shape = 'u32[144,128]{1,0:T(1,128)}', space=vmem, size = 0x12000, scoped, tag = 'internal scratch']
  %s0 = inlined_call_operand.vmem [shape: f32[2,16,16,4], index: 0, kind: input, shape index: {}]
  %s1 = inlined_call_operand.vmem [shape: bf16[3,3,4,4], index: 1, kind: input, shape index: {}]
  %s2 = inlined_call_operand.vmem [shape: bf16[3,3,4,4], index: 2, kind: input, shape index: {}]
  %s3 = inlined_call_operand.vmem [shape: f32[2,16,16,4], index: 3, kind: output, shape index: {}]
  %s4 = sld [smem:[#allocation0]]
  $region45: #{tpu_custom_call.1} parent=0
    _
  %s6 = ssub.s32 1, %s4
  %s7 = scalar_select 0, %s6, %s4
  loop: start=0, step=1, limit=4
  $region2: #{tpu_custom_call.1} parent=0 // loop_pre_header
    _
  $region3: #{tpu_custom_call.1} parent=0 // loop_header
    %s9 = sphi 0, %s13
    %p10 = scmp.ge.s32.totalorder %s9, 4
    %s19 = sphi 0, %s21
    %s22 = sphi 0, %s19
    %s23 = sphi 0, %s22
    %s39 = sphi 0, %s23
    %s43 = sphi 0, %s43
    %s45 = sphi 0, %s43
    %s46 = sphi 0, %s45
    %s60 = sphi 0, %s46
    %s64 = sphi 0, %s64
    %s66 = sphi 0, %s64
    %s67 = sphi 0, %s66
    %s81 = sphi 0, %s67
    %s87 = sphi 0, %s89
    %s90 = sphi 0, %s87
    %s91 = sphi 0, %s90
    %s107 = sphi 0, %s91
  $region4: #{tpu_custom_call.1} parent=0 // loop_header_branch
    %12 = sbr.rel (%p10) target = $region8
  $region5: #{tpu_custom_call.1} parent=0 // loop_body
    %s14 = ssub.s32 %s9, 1
    %s15 = ssub.s32 %s9, 2
    %s16 = sadd.s32 %s9, 1
    %s17 = ssub.s32 %s9, %s16
    %p18 = scmp.eq.s32.totalorder %s17, 0
    %s20 = sadd.s32 %s19, 1
    %s21 = scalar_select %p18, %s19, %s20
    %p24 = pneg %p18
    %p25 = scmp.eq.s32.totalorder %s9, 1
    %p26 = por %p24, %p25
    %p27 = scmp.ne.s32.totalorder %s19, %s22
    %p28 = scmp.eq.s32.totalorder %s9, 0
    %p29 = por %p27, %p28
    %p30 = scmp.ne.s32.totalorder %s19, %s22
    %p31 = scmp.eq.s32.totalorder %s14, 1
    %p32 = por %p30, %p31
    %p33 = scmp.ne.s32.totalorder %s22, %s23
    %p34 = scmp.eq.s32.totalorder %s14, 0
    %p35 = por %p33, %p34
    %p36 = scmp.ne.s32.totalorder %s22, %s23
    %p37 = scmp.eq.s32.totalorder %s15, 1
    %p38 = por %p36, %p37
    %p40 = scmp.ne.s32.totalorder %s23, %s39
    %p41 = scmp.eq.s32.totalorder %s15, 0
    %p42 = por %p40, %p41
    %s44 = sadd.s32 %s43, 1
    %p47 = scmp.eq.s32.totalorder %s9, 1
    %p48 = scmp.ne.s32.totalorder %s43, %s45
    %p49 = scmp.eq.s32.totalorder %s9, 0
    %p50 = por %p48, %p49
    %p51 = scmp.ne.s32.totalorder %s43, %s45
    %p52 = scmp.eq.s32.totalorder %s14, 1
    %p53 = por %p51, %p52
    %p54 = scmp.ne.s32.totalorder %s45, %s46
    %p55 = scmp.eq.s32.totalorder %s14, 0
    %p56 = por %p54, %p55
    %p57 = scmp.ne.s32.totalorder %s45, %s46
    %p58 = scmp.eq.s32.totalorder %s15, 1
    %p59 = por %p57, %p58
    %p61 = scmp.ne.s32.totalorder %s46, %s60
    %p62 = scmp.eq.s32.totalorder %s15, 0
    %p63 = por %p61, %p62
    %s65 = sadd.s32 %s64, 1
    %p68 = scmp.eq.s32.totalorder %s9, 1
    %p69 = scmp.ne.s32.totalorder %s64, %s66
    %p70 = scmp.eq.s32.totalorder %s9, 0
    %p71 = por %p69, %p70
    %p72 = scmp.ne.s32.totalorder %s64, %s66
    %p73 = scmp.eq.s32.totalorder %s14, 1
    %p74 = por %p72, %p73
    %p75 = scmp.ne.s32.totalorder %s66, %s67
    %p76 = scmp.eq.s32.totalorder %s14, 0
    %p77 = por %p75, %p76
    %p78 = scmp.ne.s32.totalorder %s66, %s67
    %p79 = scmp.eq.s32.totalorder %s15, 1
    %p80 = por %p78, %p79
    %p82 = scmp.ne.s32.totalorder %s67, %s81
    %p83 = scmp.eq.s32.totalorder %s15, 0
    %p84 = por %p82, %p83
    %s85 = ssub.s32 %s9, %s16
    %p86 = scmp.eq.s32.totalorder %s85, 0
    %s88 = sadd.s32 %s87, 1
    %s89 = scalar_select %p86, %s87, %s88
    %p92 = pneg %p86
    %p93 = scmp.eq.s32.totalorder %s9, 1
    %p94 = por %p92, %p93
    %p95 = scmp.ne.s32.totalorder %s87, %s90
    %p96 = scmp.eq.s32.totalorder %s9, 0
    %p97 = por %p95, %p96
    %p98 = scmp.ne.s32.totalorder %s87, %s90
    %p99 = scmp.eq.s32.totalorder %s14, 1
    %p100 = por %p98, %p99
    %p101 = scmp.ne.s32.totalorder %s90, %s91
    %p102 = scmp.eq.s32.totalorder %s14, 0
    %p103 = por %p101, %p102
    %p104 = scmp.ne.s32.totalorder %s90, %s91
    %p105 = scmp.eq.s32.totalorder %s15, 1
    %p106 = por %p104, %p105
    %p108 = scmp.ne.s32.totalorder %s91, %s107
    %p109 = scmp.eq.s32.totalorder %s15, 0
    %p110 = por %p108, %p109
    %p111 = scmp.le.s32.totalorder 1, %s9
    %p112 = scmp.lt.s32.totalorder %s9, 3
    %p113 = pnand %p111, %p112
    %p114 = pneg %p113
    // Predicated region
    $region9: #{tpu_custom_call.1} parent=5 // pred_check
      _
    $region10: #{tpu_custom_call.1} parent=5 // pred_check_branch
      %116 = sbr.rel (%p113) target = $region12
    $region11: #{tpu_custom_call.1} parent=5 // pred_region
      %s117 = ssub.s32 %s9, 1
      // Predicated region
      $region13: #{tpu_custom_call.1} parent=11 // pred_check
        %p118 = pneg %p56
      $region14: #{tpu_custom_call.1} parent=11 // pred_check_branch
        %120 = sbr.rel (%p118) target = $region16
      $region15: #{tpu_custom_call.1} parent=11 // pred_region
        _
      $region16: #{tpu_custom_call.1} parent=11 // pred_fallthru
        _
      // Predicated region
      $region17: #{tpu_custom_call.1} parent=11 // pred_check
        %p121 = pneg %p77
      $region18: #{tpu_custom_call.1} parent=11 // pred_check_branch
        %123 = sbr.rel (%p121) target = $region20
      $region19: #{tpu_custom_call.1} parent=11 // pred_region
        _
      $region20: #{tpu_custom_call.1} parent=11 // pred_fallthru
        _
    $region12: #{tpu_custom_call.1} parent=5 // pred_fallthru
      _
    %p124 = scmp.lt.s32.totalorder %s9, 2
    // Predicated region
    $region21: #{tpu_custom_call.1} parent=5 // pred_check
      %p125 = pneg %p124
    $region22: #{tpu_custom_call.1} parent=5 // pred_check_branch
      %127 = sbr.rel (%p125) target = $region24
    $region23: #{tpu_custom_call.1} parent=5 // pred_region
      // Predicated region
      $region25: #{tpu_custom_call.1} parent=23 // pred_check
        %p128 = pneg %p29
      $region26: #{tpu_custom_call.1} parent=23 // pred_check_branch
        %130 = sbr.rel (%p128) target = $region28
      $region27: #{tpu_custom_call.1} parent=23 // pred_region
        %p131 = scmp.lt.s32.totalorder %s9, 1
        %s132 = scalar_select %p131, %s9, 1
        %s133 = smul.addr %s132, 32
        %s134 = smul.addr %s133, 8
        %s135 = scalar_lea.vmem %s0, %s134
      $region28: #{tpu_custom_call.1} parent=23 // pred_fallthru
        _
    $region24: #{tpu_custom_call.1} parent=5 // pred_fallthru
      _
    %p136 = scmp.le.s32.totalorder 1, %s9
    %p137 = scmp.lt.s32.totalorder %s9, 3
    %p138 = pnand %p136, %p137
    %p139 = pneg %p138
    // Predicated region
    $region29: #{tpu_custom_call.1} parent=5 // pred_check
      _
    $region30: #{tpu_custom_call.1} parent=5 // pred_check_branch
      %141 = sbr.rel (%p138) target = $region32
    $region31: #{tpu_custom_call.1} parent=5 // pred_region
      %s142 = ssub.s32 %s9, 1
      %p143 = scmp.lt.s32.totalorder %s14, 1
      %s144 = scalar_select %p143, %s14, 1
      %s145 = smul.addr %s144, 32
      %s146 = smul.addr %s145, 8
      %s147 = scalar_lea.vmem %s0, %s146
      %p148 = pneg %p35
      %p149 = pneg %p32
      %p150 = pneg %p56
      %p151 = pneg %p53
      %p152 = pneg %p77
      %p153 = pneg %p74
      %p154 = pneg %p103
      %p155 = pneg %p100
      %p156 = scmp.lt.s32.totalorder %s14, 1
      %s157 = scalar_select %p156, %s14, 1
      %s158 = smul.addr %s157, 32
      %s159 = smul.addr %s158, 8
      %s160 = scalar_lea.vmem %s3, %s159
      %p161 = scmp.lt.s32.totalorder %s14, 1
      %s162 = scalar_select %p161, %s14, 1
      %s163 = smul.addr %s162, 32
      %s164 = smul.addr %s163, 8
      %s165 = scalar_lea.vmem %s0, %s164
      %p166 = scmp.lt.s32.totalorder %s14, 1
      %s167 = scalar_select %p166, %s14, 1
      %s168 = smul.addr %s167, 32
      %s169 = smul.addr %s168, 8
      %s170 = scalar_lea.vmem %s3, %s169
      %v172 = vld [vmem:[%s165] sm:$0xff]
      %v173 = vld [vmem:[%s165 + $0x8] sm:$0xff]
      %v174 = vld [vmem:[%s165 + $0x10] sm:$0xff]
      %v175 = vld [vmem:[%s165 + $0x18] sm:$0xff]
      %v176 = vld [vmem:[%s165 + $0x20] sm:$0xff]
      %v177 = vld [vmem:[%s165 + $0x28] sm:$0xff]
      %v178 = vld [vmem:[%s165 + $0x30] sm:$0xff]
      %v179 = vld [vmem:[%s165 + $0x38] sm:$0xff]
      %v180 = vld [vmem:[%s165 + $0x40] sm:$0xff]
      %v181 = vld [vmem:[%s165 + $0x48] sm:$0xff]
      %v182 = vld [vmem:[%s165 + $0x50] sm:$0xff]
      %v183 = vld [vmem:[%s165 + $0x58] sm:$0xff]
      %v184 = vld [vmem:[%s165 + $0x60] sm:$0xff]
      %v185 = vld [vmem:[%s165 + $0x68] sm:$0xff]
      %v186 = vld [vmem:[%s165 + $0x70] sm:$0xff]
      %v187 = vld [vmem:[%s165 + $0x78] sm:$0xff]
      %v188 = vld [vmem:[%s165 + $0x80] sm:$0xff]
      %v189 = vld [vmem:[%s165 + $0x88] sm:$0xff]
      %v190 = vld [vmem:[%s165 + $0x90] sm:$0xff]
      %v191 = vld [vmem:[%s165 + $0x98] sm:$0xff]
      %v192 = vld [vmem:[%s165 + $0xa0] sm:$0xff]
      %v193 = vld [vmem:[%s165 + $0xa8] sm:$0xff]
      %v194 = vld [vmem:[%s165 + $0xb0] sm:$0xff]
      %v195 = vld [vmem:[%s165 + $0xb8] sm:$0xff]
      %v196 = vld [vmem:[%s165 + $0xc0] sm:$0xff]
      %v197 = vld [vmem:[%s165 + $0xc8] sm:$0xff]
      %v198 = vld [vmem:[%s165 + $0xd0] sm:$0xff]
      %v199 = vld [vmem:[%s165 + $0xd8] sm:$0xff]
      %v200 = vld [vmem:[%s165 + $0xe0] sm:$0xff]
      %v201 = vld [vmem:[%s165 + $0xe8] sm:$0xff]
      %v202 = vld [vmem:[%s165 + $0xf0] sm:$0xff]
      %v203 = vld [vmem:[%s165 + $0xf8] sm:$0xff]
      %v204 = vpack.c.bf16 %v173, %v172
      %v205 = vpack.c.bf16 %v175, %v174
      %v206 = vpack.c.bf16 %v177, %v176
      %v207 = vpack.c.bf16 %v179, %v178
      %v208 = vpack.c.bf16 %v181, %v180
      %v209 = vpack.c.bf16 %v183, %v182
      %v210 = vpack.c.bf16 %v185, %v184
      %v211 = vpack.c.bf16 %v187, %v186
      %v212 = vpack.c.bf16 %v189, %v188
      %v213 = vpack.c.bf16 %v191, %v190
      %v214 = vpack.c.bf16 %v193, %v192
      %v215 = vpack.c.bf16 %v195, %v194
      %v216 = vpack.c.bf16 %v197, %v196
      %v217 = vpack.c.bf16 %v199, %v198
      %v218 = vpack.c.bf16 %v201, %v200
      %v219 = vpack.c.bf16 %v203, %v202
      %v221 = vshrl.u32 %v205, 16
      %v224 = vshrl.u32 %v204, 16
      %v227 = vshrl.u32 %v206, 16
      %v230 = vshrl.u32 %v207, 16
      %v233 = vshrl.u32 %v208, 16
      %v236 = vshrl.u32 %v209, 16
      %v239 = vshrl.u32 %v210, 16
      %v242 = vshrl.u32 %v211, 16
      %v245 = vshrl.u32 %v212, 16
      %v248 = vshrl.u32 %v213, 16
      %v251 = vshrl.u32 %v214, 16
      %v254 = vshrl.u32 %v215, 16
      %v257 = vshrl.u32 %v216, 16
      %v260 = vshrl.u32 %v217, 16
      %v263 = vshrl.u32 %v218, 16
      %v266 = vshrl.u32 %v219, 16
      %v284 = vrot.slane %v221, 7
      %v285 = vshll.u32 %v205, 16
      %v287 = vor.u32 %v284, %v285
      %v288 = vrot.slane %v224, 7
      %v289 = vshll.u32 %v204, 16
      %v291 = vor.u32 %v288, %v289
      %v292 = vrot.slane %v227, 7
      %v293 = vshll.u32 %v206, 16
      %v295 = vor.u32 %v292, %v293
      %v296 = vrot.slane %v230, 7
      %v297 = vshll.u32 %v207, 16
      %v299 = vor.u32 %v296, %v297
      %v300 = vrot.slane %v233, 7
      %v301 = vshll.u32 %v208, 16
      %v303 = vor.u32 %v300, %v301
      %v304 = vrot.slane %v236, 7
      %v305 = vshll.u32 %v209, 16
      %v307 = vor.u32 %v304, %v305
      %v308 = vrot.slane %v239, 7
      %v309 = vshll.u32 %v210, 16
      %v311 = vor.u32 %v308, %v309
      %v312 = vrot.slane %v242, 7
      %v313 = vshll.u32 %v211, 16
      %v315 = vor.u32 %v312, %v313
      %v316 = vrot.slane %v245, 7
      %v317 = vshll.u32 %v212, 16
      %v319 = vor.u32 %v316, %v317
      %v320 = vrot.slane %v248, 7
      %v321 = vshll.u32 %v213, 16
      %v323 = vor.u32 %v320, %v321
      %v324 = vrot.slane %v251, 7
      %v325 = vshll.u32 %v214, 16
      %v327 = vor.u32 %v324, %v325
      %v328 = vrot.slane %v254, 7
      %v329 = vshll.u32 %v215, 16
      %v331 = vor.u32 %v328, %v329
      %v332 = vrot.slane %v257, 7
      %v333 = vshll.u32 %v216, 16
      %v335 = vor.u32 %v332, %v333
      %v336 = vrot.slane %v260, 7
      %v337 = vshll.u32 %v217, 16
      %v339 = vor.u32 %v336, %v337
      %v340 = vrot.slane %v263, 7
      %v341 = vshll.u32 %v218, 16
      %v343 = vor.u32 %v340, %v341
      %v344 = vrot.slane %v266, 7
      %v345 = vshll.u32 %v219, 16
      %v347 = vor.u32 %v344, %v345
      %vm364 = vcmask 1040384
      %vm365 = vsmask.f32 256
      %vm366 = vmand %vm364, %vm365
      %v367 = vsel %vm366, %v221, %v287
      %v368 = vsel %vm366, %v224, %v291
      %v369 = vsel %vm366, %v227, %v295
      %v370 = vsel %vm366, %v230, %v299
      %v371 = vsel %vm366, %v233, %v303
      %v372 = vsel %vm366, %v236, %v307
      %v373 = vsel %vm366, %v239, %v311
      %v374 = vsel %vm366, %v242, %v315
      %v375 = vsel %vm366, %v245, %v319
      %v376 = vsel %vm366, %v248, %v323
      %v377 = vsel %vm366, %v251, %v327
      %v378 = vsel %vm366, %v254, %v331
      %v379 = vsel %vm366, %v257, %v335
      %v380 = vsel %vm366, %v260, %v339
      %v381 = vsel %vm366, %v263, %v343
      %v382 = vsel %vm366, %v266, %v347
      %v383 = vrot.slane %v285, 1
      %v384 = vor.u32 %v221, %v383
      %v385 = vrot.slane %v289, 1
      %v386 = vor.u32 %v224, %v385
      %v387 = vrot.slane %v293, 1
      %v388 = vor.u32 %v227, %v387
      %v389 = vrot.slane %v297, 1
      %v390 = vor.u32 %v230, %v389
      %v391 = vrot.slane %v301, 1
      %v392 = vor.u32 %v233, %v391
      %v393 = vrot.slane %v305, 1
      %v394 = vor.u32 %v236, %v393
      %v395 = vrot.slane %v309, 1
      %v396 = vor.u32 %v239, %v395
      %v397 = vrot.slane %v313, 1
      %v398 = vor.u32 %v242, %v397
      %v399 = vrot.slane %v317, 1
      %v400 = vor.u32 %v245, %v399
      %v401 = vrot.slane %v321, 1
      %v402 = vor.u32 %v248, %v401
      %v403 = vrot.slane %v325, 1
      %v404 = vor.u32 %v251, %v403
      %v405 = vrot.slane %v329, 1
      %v406 = vor.u32 %v254, %v405
      %v407 = vrot.slane %v333, 1
      %v408 = vor.u32 %v257, %v407
      %v409 = vrot.slane %v337, 1
      %v410 = vor.u32 %v260, %v409
      %v411 = vrot.slane %v341, 1
      %v412 = vor.u32 %v263, %v411
      %v413 = vrot.slane %v345, 1
      %v414 = vor.u32 %v266, %v413
      %vm447 = vcmask 1047552
      %vm448 = vsmask.f32 7424
      %vm449 = vmand %vm447, %vm448
      %v450 = vsel %vm449, %v384, %v285
      %v451 = vsel %vm449, %v386, %v289
      %v452 = vsel %vm449, %v388, %v293
      %v453 = vsel %vm449, %v390, %v297
      %v454 = vsel %vm449, %v392, %v301
      %v455 = vsel %vm449, %v394, %v305
      %v456 = vsel %vm449, %v396, %v309
      %v457 = vsel %vm449, %v398, %v313
      %v458 = vsel %vm449, %v400, %v317
      %v459 = vsel %vm449, %v402, %v321
      %v460 = vsel %vm449, %v404, %v325
      %v461 = vsel %vm449, %v406, %v329
      %v462 = vsel %vm449, %v408, %v333
      %v463 = vsel %vm449, %v410, %v337
      %v464 = vsel %vm449, %v412, %v341
      %v465 = vsel %vm449, %v414, %v345
      %v466 = vld [vmem:[%s1] sm:$0x3]
      %s467 = scalar_lea.vmem %s1, 2
      %v468 = vld [vmem:[%s467] sm:$0x3]
      %vm469 = vcmask 31744
      %v470 = vsel %vm469, %v205, 0
      %v472 = vsel %vm469, %v204, 0
      %v474 = vsel %vm469, %v206, 0
      %v476 = vsel %vm469, %v207, 0
      %v478 = vsel %vm469, %v208, 0
      %v480 = vsel %vm469, %v209, 0
      %v482 = vsel %vm469, %v210, 0
      %v484 = vsel %vm469, %v211, 0
      %v486 = vsel %vm469, %v212, 0
      %v488 = vsel %vm469, %v213, 0
      %v490 = vsel %vm469, %v214, 0
      %v492 = vsel %vm469, %v215, 0
      %v494 = vsel %vm469, %v216, 0
      %v496 = vsel %vm469, %v217, 0
      %v498 = vsel %vm469, %v218, 0
      %vm500 = vcmask 1041408
      %v502 = vsel %vm500, %v468, 0
      %504 = vmatprep.subr.bf16.mxu0 0
      %505 = vmatpush1.bf16.msra.mxu0 %v502
      %506 = vmatprep.subr.bf16.mxu0 0
      %507 = vmatpush1.bf16.msra.mxu0 0
      %508 = vmatprep.subr.bf16.mxu0 0
      %509 = vmatpush1.bf16.msra.mxu0 0
      %510 = vmatprep.subr.bf16.mxu0 0
      %511 = vmatpush1.bf16.msra.mxu0 0
      %512 = vmatprep.subr.bf16.mxu0 0
      %513 = vmatpush1.bf16.msra.mxu0 0
      %514 = vmatprep.subr.bf16.mxu0 0
      %515 = vmatpush1.bf16.msra.mxu0 0
      %516 = vmatprep.subr.bf16.mxu0 0
      %517 = vmatpush1.bf16.msra.mxu0 0
      %518 = vmatprep.subr.bf16.mxu0 0
      %519 = vmatpush1.bf16.msra.mxu0 0
      %520 = vmatprep.subr.bf16.mxu0 0
      %521 = vmatpush1.bf16.msra.mxu0 0
      %522 = vmatprep.subr.bf16.mxu0 0
      %523 = vmatpush1.bf16.msra.mxu0 0
      %524 = vmatprep.subr.bf16.mxu0 0
      %525 = vmatpush1.bf16.msra.mxu0 0
      %526 = vmatprep.subr.bf16.mxu0 0
      %527 = vmatpush1.bf16.msra.mxu0 0
      %528 = vmatprep.subr.bf16.mxu0 0
      %529 = vmatpush1.bf16.msra.mxu0 0
      %530 = vmatprep.subr.bf16.mxu0 0
      %531 = vmatpush1.bf16.msra.mxu0 0
      %532 = vmatprep.subr.bf16.mxu0 0
      %533 = vmatpush1.bf16.msra.mxu0 0
      %534 = vmatprep.subr.bf16.mxu0 0
      %535 = vmatpush1.bf16.msra.mxu0 0
      %536 = vmatprep.mubr.bf16.mxu0 0
      %537 = vmatmul.mubr.bf16.gmra.mrb[0].mxu0 %v470
      %v538 = vpop.f32.mrb[0].mxu0
      %v539 = vadd.f32 0.0, %v538
      %v540 = vpop.f32.mrb[0].mxu0
      %v541 = vpop.f32.mrb[0].mxu0
      %v542 = vadd.f32 0.0, %v541
      %v543 = vpop.f32.mrb[0].mxu0
      %544 = vmatprep.mubr.bf16.mxu0 0
      %545 = vmatmul.mubr.bf16.gmra.mrb[0].mxu0 %v472
      %v546 = vpop.f32.mrb[0].mxu0
      %v547 = vadd.f32 0.0, %v546
      %v548 = vpop.f32.mrb[0].mxu0
      %v549 = vpop.f32.mrb[0].mxu0
      %v550 = vadd.f32 0.0, %v549
      %v551 = vpop.f32.mrb[0].mxu0
      %552 = vmatprep.mubr.bf16.mxu0 0
      %553 = vmatmul.mubr.bf16.gmra.mrb[0].mxu0 %v470
      %v554 = vpop.f32.mrb[0].mxu0
      %v555 = vadd.f32 0.0, %v554
      %v556 = vpop.f32.mrb[0].mxu0
      %v557 = vpop.f32.mrb[0].mxu0
      %v558 = vadd.f32 0.0, %v557
      %v559 = vpop.f32.mrb[0].mxu0
      %560 = vmatprep.mubr.bf16.mxu0 0
      %561 = vmatmul.mubr.bf16.gmra.mrb[0].mxu0 %v474
      %v562 = vpop.f32.mrb[0].mxu0
      %v563 = vadd.f32 0.0, %v562
      %v564 = vpop.f32.mrb[0].mxu0
      %v565 = vpop.f32.mrb[0].mxu0
      %v566 = vadd.f32 0.0, %v565
      %v567 = vpop.f32.mrb[0].mxu0
      %568 = vmatprep.mubr.bf16.mxu0 0
      %569 = vmatmul.mubr.bf16.gmra.mrb[0].mxu0 %v476
      %v570 = vpop.f32.mrb[0].mxu0
      %v571 = vadd.f32 0.0, %v570
      %v572 = vpop.f32.mrb[0].mxu0
      %v573 = vpop.f32.mrb[0].mxu0
      %v574 = vadd.f32 0.0, %v573
      %v575 = vpop.f32.mrb[0].mxu0
      %576 = vmatprep.mubr.bf16.mxu0 0
      %577 = vmatmul.mubr.bf16.gmra.mrb[0].mxu0 %v478
      %v578 = vpop.f32.mrb[0].mxu0
      %v579 = vadd.f32 0.0, %v578
      %v580 = vpop.f32.mrb[0].mxu0
      %v581 = vpop.f32.mrb[0].mxu0
      %v582 = vadd.f32 0.0, %v581
      %v583 = vpop.f32.mrb[0].mxu0
      %584 = vmatprep.mubr.bf16.mxu0 0
      %585 = vmatmul.mubr.bf16.gmra.mrb[0].mxu0 %v480
      %v586 = vpop.f32.mrb[0].mxu0
      %v587 = vadd.f32 0.0, %v586
      %v588 = vpop.f32.mrb[0].mxu0
      %v589 = vpop.f32.mrb[0].mxu0
      %v590 = vadd.f32 0.0, %v589
      %v591 = vpop.f32.mrb[0].mxu0
      %592 = vmatprep.mubr.bf16.mxu0 0
      %593 = vmatmul.mubr.bf16.gmra.mrb[0].mxu0 %v482
      %v594 = vpop.f32.mrb[0].mxu0
      %v595 = vadd.f32 0.0, %v594
      %v596 = vpop.f32.mrb[0].mxu0
      %v597 = vpop.f32.mrb[0].mxu0
      %v598 = vadd.f32 0.0, %v597
      %v599 = vpop.f32.mrb[0].mxu0
      %600 = vmatprep.mubr.bf16.mxu0 0
      %601 = vmatmul.mubr.bf16.gmra.mrb[0].mxu0 %v484
      %v602 = vpop.f32.mrb[0].mxu0
      %v603 = vadd.f32 0.0, %v602
      %v604 = vpop.f32.mrb[0].mxu0
      %v605 = vpop.f32.mrb[0].mxu0
      %v606 = vadd.f32 0.0, %v605
      %v607 = vpop.f32.mrb[0].mxu0
      %608 = vmatprep.mubr.bf16.mxu0 0
      %609 = vmatmul.mubr.bf16.gmra.mrb[0].mxu0 %v486
      %v610 = vpop.f32.mrb[0].mxu0
      %v611 = vadd.f32 0.0, %v610
      %v612 = vpop.f32.mrb[0].mxu0
      %v613 = vpop.f32.mrb[0].mxu0
      %v614 = vadd.f32 0.0, %v613
      %v615 = vpop.f32.mrb[0].mxu0
      %616 = vmatprep.mubr.bf16.mxu0 0
      %617 = vmatmul.mubr.bf16.gmra.mrb[0].mxu0 %v488
      %v618 = vpop.f32.mrb[0].mxu0
      %v619 = vadd.f32 0.0, %v618
      %v620 = vpop.f32.mrb[0].mxu0
      %v621 = vpop.f32.mrb[0].mxu0
      %v622 = vadd.f32 0.0, %v621
      %v623 = vpop.f32.mrb[0].mxu0
      %624 = vmatprep.mubr.bf16.mxu0 0
      %625 = vmatmul.mubr.bf16.gmra.mrb[0].mxu0 %v490
      %v626 = vpop.f32.mrb[0].mxu0
      %v627 = vadd.f32 0.0, %v626
      %v628 = vpop.f32.mrb[0].mxu0
      %v629 = vpop.f32.mrb[0].mxu0
      %v630 = vadd.f32 0.0, %v629
      %v631 = vpop.f32.mrb[0].mxu0
      %632 = vmatprep.mubr.bf16.mxu0 0
      %633 = vmatmul.mubr.bf16.gmra.mrb[0].mxu0 %v492
      %v634 = vpop.f32.mrb[0].mxu0
      %v635 = vadd.f32 0.0, %v634
      %v636 = vpop.f32.mrb[0].mxu0
      %v637 = vpop.f32.mrb[0].mxu0
      %v638 = vadd.f32 0.0, %v637
      %v639 = vpop.f32.mrb[0].mxu0
      %640 = vmatprep.mubr.bf16.mxu0 0
      %641 = vmatmul.mubr.bf16.gmra.mrb[0].mxu0 %v494
      %v642 = vpop.f32.mrb[0].mxu0
      %v643 = vadd.f32 0.0, %v642
      %v644 = vpop.f32.mrb[0].mxu0
      %v645 = vpop.f32.mrb[0].mxu0
      %v646 = vadd.f32 0.0, %v645
      %v647 = vpop.f32.mrb[0].mxu0
      %648 = vmatprep.mubr.bf16.mxu0 0
      %649 = vmatmul.mubr.bf16.gmra.mrb[0].mxu0 %v496
      %v650 = vpop.f32.mrb[0].mxu0
      %v651 = vadd.f32 0.0, %v650
      %v652 = vpop.f32.mrb[0].mxu0
      %v653 = vpop.f32.mrb[0].mxu0
      %v654 = vadd.f32 0.0, %v653
      %v655 = vpop.f32.mrb[0].mxu0
      %656 = vmatprep.mubr.bf16.mxu0 0
      %657 = vmatmul.mubr.bf16.gmra.mrb[0].mxu0 %v498
      %v658 = vpop.f32.mrb[0].mxu0
      %v659 = vadd.f32 0.0, %v658
      %v660 = vpop.f32.mrb[0].mxu0
      %v661 = vpop.f32.mrb[0].mxu0
      %v662 = vadd.f32 0.0, %v661
      %v663 = vpop.f32.mrb[0].mxu0
      %664 = vdwg.mxu0
      %v666 = vsel %vm469, %v367, 0
      %v669 = vsel %vm469, %v368, 0
      %v672 = vsel %vm469, %v369, 0
      %v675 = vsel %vm469, %v370, 0
      %v678 = vsel %vm469, %v371, 0
      %v681 = vsel %vm469, %v372, 0
      %v684 = vsel %vm469, %v373, 0
      %v687 = vsel %vm469, %v374, 0
      %v690 = vsel %vm469, %v375, 0
      %v693 = vsel %vm469, %v376, 0
      %v696 = vsel %vm469, %v377, 0
      %v699 = vsel %vm469, %v378, 0
      %v702 = vsel %vm469, %v379, 0
      %v705 = vsel %vm469, %v380, 0
      %v708 = vsel %vm469, %v381, 0
      %v711 = vsel %vm500, %v466, 0
      %713 = vmatprep.subr.bf16.mxu0 0
      %714 = vmatpush1.bf16.msra.mxu0 %v711
      %715 = vmatprep.subr.bf16.mxu0 0
      %716 = vmatpush1.bf16.msra.mxu0 0
      %717 = vmatprep.subr.bf16.mxu0 0
      %718 = vmatpush1.bf16.msra.mxu0 0
      %719 = vmatprep.subr.bf16.mxu0 0
      %720 = vmatpush1.bf16.msra.mxu0 0
      %721 = vmatprep.subr.bf16.mxu0 0
      %722 = vmatpush1.bf16.msra.mxu0 0
      %723 = vmatprep.subr.bf16.mxu0 0
      %724 = vmatpush1.bf16.msra.mxu0 0
      %725 = vmatprep.subr.bf16.mxu0 0
      %726 = vmatpush1.bf16.msra.mxu0 0
      %727 = vmatprep.subr.bf16.mxu0 0
      %728 = vmatpush1.bf16.msra.mxu0 0
      %729 = vmatprep.subr.bf16.mxu0 0
      %730 = vmatpush1.bf16.msra.mxu0 0
      %731 = vmatprep.subr.bf16.mxu0 0
      %732 = vmatpush1.bf16.msra.mxu0 0
      %733 = vmatprep.subr.bf16.mxu0 0
      %734 = vmatpush1.bf16.msra.mxu0 0
      %735 = vmatprep.subr.bf16.mxu0 0
      %736 = vmatpush1.bf16.msra.mxu0 0
      %737 = vmatprep.subr.bf16.mxu0 0
      %738 = vmatpush1.bf16.msra.mxu0 0
      %739 = vmatprep.subr.bf16.mxu0 0
      %740 = vmatpush1.bf16.msra.mxu0 0
      %741 = vmatprep.subr.bf16.mxu0 0
      %742 = vmatpush1.bf16.msra.mxu0 0
      %743 = vmatprep.subr.bf16.mxu0 0
      %744 = vmatpush1.bf16.msra.mxu0 0
      %745 = vmatprep.mubr.bf16.mxu0 0
      %746 = vmatmul.mubr.bf16.gmra.mrb[0].mxu0 %v666
      %v747 = vpop.f32.mrb[0].mxu0
      %v748 = vadd.f32 %v539, %v747
      %v749 = vpop.f32.mrb[0].mxu0
      %v750 = vpop.f32.mrb[0].mxu0
      %v751 = vadd.f32 %v542, %v750
      %v752 = vpop.f32.mrb[0].mxu0
      %753 = vmatprep.mubr.bf16.mxu0 0
      %754 = vmatmul.mubr.bf16.gmra.mrb[0].mxu0 %v669
      %v755 = vpop.f32.mrb[0].mxu0
      %v756 = vadd.f32 %v547, %v755
      %v757 = vpop.f32.mrb[0].mxu0
      %v758 = vpop.f32.mrb[0].mxu0
      %v759 = vadd.f32 %v550, %v758
      %v760 = vpop.f32.mrb[0].mxu0
      %761 = vmatprep.mubr.bf16.mxu0 0
      %762 = vmatmul.mubr.bf16.gmra.mrb[0].mxu0 %v666
      %v763 = vpop.f32.mrb[0].mxu0
      %v764 = vadd.f32 %v555, %v763
      %v765 = vpop.f32.mrb[0].mxu0
      %v766 = vpop.f32.mrb[0].mxu0
      %v767 = vadd.f32 %v558, %v766
      %v768 = vpop.f32.mrb[0].mxu0
      %769 = vmatprep.mubr.bf16.mxu0 0
      %770 = vmatmul.mubr.bf16.gmra.mrb[0].mxu0 %v672
      %v771 = vpop.f32.mrb[0].mxu0
      %v772 = vadd.f32 %v563, %v771
      %v773 = vpop.f32.mrb[0].mxu0
      %v774 = vpop.f32.mrb[0].mxu0
      %v775 = vadd.f32 %v566, %v774
      %v776 = vpop.f32.mrb[0].mxu0
      %777 = vmatprep.mubr.bf16.mxu0 0
      %778 = vmatmul.mubr.bf16.gmra.mrb[0].mxu0 %v675
      %v779 = vpop.f32.mrb[0].mxu0
      %v780 = vadd.f32 %v571, %v779
      %v781 = vpop.f32.mrb[0].mxu0
      %v782 = vpop.f32.mrb[0].mxu0
      %v783 = vadd.f32 %v574, %v782
      %v784 = vpop.f32.mrb[0].mxu0
      %785 = vmatprep.mubr.bf16.mxu0 0
      %786 = vmatmul.mubr.bf16.gmra.mrb[0].mxu0 %v678
      %v787 = vpop.f32.mrb[0].mxu0
      %v788 = vadd.f32 %v579, %v787
      %v789 = vpop.f32.mrb[0].mxu0
      %v790 = vpop.f32.mrb[0].mxu0
      %v791 = vadd.f32 %v582, %v790
      %v792 = vpop.f32.mrb[0].mxu0
      %793 = vmatprep.mubr.bf16.mxu0 0
      %794 = vmatmul.mubr.bf16.gmra.mrb[0].mxu0 %v681
      %v795 = vpop.f32.mrb[0].mxu0
      %v796 = vadd.f32 %v587, %v795
      %v797 = vpop.f32.mrb[0].mxu0
      %v798 = vpop.f32.mrb[0].mxu0
      %v799 = vadd.f32 %v590, %v798
      %v800 = vpop.f32.mrb[0].mxu0
      %801 = vmatprep.mubr.bf16.mxu0 0
      %802 = vmatmul.mubr.bf16.gmra.mrb[0].mxu0 %v684
      %v803 = vpop.f32.mrb[0].mxu0
      %v804 = vadd.f32 %v595, %v803
      %v805 = vpop.f32.mrb[0].mxu0
      %v806 = vpop.f32.mrb[0].mxu0
      %v807 = vadd.f32 %v598, %v806
      %v808 = vpop.f32.mrb[0].mxu0
      %809 = vmatprep.mubr.bf16.mxu0 0
      %810 = vmatmul.mubr.bf16.gmra.mrb[0].mxu0 %v687
      %v811 = vpop.f32.mrb[0].mxu0
      %v812 = vadd.f32 %v603, %v811
      %v813 = vpop.f32.mrb[0].mxu0
      %v814 = vpop.f32.mrb[0].mxu0
      %v815 = vadd.f32 %v606, %v814
      %v816 = vpop.f32.mrb[0].mxu0
      %817 = vmatprep.mubr.bf16.mxu0 0
      %818 = vmatmul.mubr.bf16.gmra.mrb[0].mxu0 %v690
      %v819 = vpop.f32.mrb[0].mxu0
      %v820 = vadd.f32 %v611, %v819
      %v821 = vpop.f32.mrb[0].mxu0
      %v822 = vpop.f32.mrb[0].mxu0
      %v823 = vadd.f32 %v614, %v822
      %v824 = vpop.f32.mrb[0].mxu0
      %825 = vmatprep.mubr.bf16.mxu0 0
      %826 = vmatmul.mubr.bf16.gmra.mrb[0].mxu0 %v693
      %v827 = vpop.f32.mrb[0].mxu0
      %v828 = vadd.f32 %v619, %v827
      %v829 = vpop.f32.mrb[0].mxu0
      %v830 = vpop.f32.mrb[0].mxu0
      %v831 = vadd.f32 %v622, %v830
      %v832 = vpop.f32.mrb[0].mxu0
      %833 = vmatprep.mubr.bf16.mxu0 0
      %834 = vmatmul.mubr.bf16.gmra.mrb[0].mxu0 %v696
      %v835 = vpop.f32.mrb[0].mxu0
      %v836 = vadd.f32 %v627, %v835
      %v837 = vpop.f32.mrb[0].mxu0
      %v838 = vpop.f32.mrb[0].mxu0
      %v839 = vadd.f32 %v630, %v838
      %v840 = vpop.f32.mrb[0].mxu0
      %841 = vmatprep.mubr.bf16.mxu0 0
      %842 = vmatmul.mubr.bf16.gmra.mrb[0].mxu0 %v699
      %v843 = vpop.f32.mrb[0].mxu0
      %v844 = vadd.f32 %v635, %v843
      %v845 = vpop.f32.mrb[0].mxu0
      %v846 = vpop.f32.mrb[0].mxu0
      %v847 = vadd.f32 %v638, %v846
      %v848 = vpop.f32.mrb[0].mxu0
      %849 = vmatprep.mubr.bf16.mxu0 0
      %850 = vmatmul.mubr.bf16.gmra.mrb[0].mxu0 %v702
      %v851 = vpop.f32.mrb[0].mxu0
      %v852 = vadd.f32 %v643, %v851
      %v853 = vpop.f32.mrb[0].mxu0
      %v854 = vpop.f32.mrb[0].mxu0
      %v855 = vadd.f32 %v646, %v854
      %v856 = vpop.f32.mrb[0].mxu0
      %857 = vmatprep.mubr.bf16.mxu0 0
      %858 = vmatmul.mubr.bf16.gmra.mrb[0].mxu0 %v705
      %v859 = vpop.f32.mrb[0].mxu0
      %v860 = vadd.f32 %v651, %v859
      %v861 = vpop.f32.mrb[0].mxu0
      %v862 = vpop.f32.mrb[0].mxu0
      %v863 = vadd.f32 %v654, %v862
      %v864 = vpop.f32.mrb[0].mxu0
      %865 = vmatprep.mubr.bf16.mxu0 0
      %866 = vmatmul.mubr.bf16.gmra.mrb[0].mxu0 %v708
      %v867 = vpop.f32.mrb[0].mxu0
      %v868 = vadd.f32 %v659, %v867
      %v869 = vpop.f32.mrb[0].mxu0
      %v870 = vpop.f32.mrb[0].mxu0
      %v871 = vadd.f32 %v662, %v870
      %v872 = vpop.f32.mrb[0].mxu0
      %873 = vdwg.mxu0
      %s874 = scalar_lea.vmem %s1, 4
      %v875 = vld [vmem:[%s874] sm:$0x3]
      %v877 = vsel %vm469, %v450, 0
      %v880 = vsel %vm469, %v451, 0
      %v883 = vsel %vm469, %v452, 0
      %v886 = vsel %vm469, %v453, 0
      %v889 = vsel %vm469, %v454, 0
      %v892 = vsel %vm469, %v455, 0
      %v895 = vsel %vm469, %v456, 0
      %v898 = vsel %vm469, %v457, 0
      %v901 = vsel %vm469, %v458, 0
      %v904 = vsel %vm469, %v459, 0
      %v907 = vsel %vm469, %v460, 0
      %v910 = vsel %vm469, %v461, 0
      %v913 = vsel %vm469, %v462, 0
      %v916 = vsel %vm469, %v463, 0
      %v919 = vsel %vm469, %v464, 0
      %v922 = vsel %vm500, %v875, 0
      %924 = vmatprep.subr.bf16.mxu0 0
      %925 = vmatpush1.bf16.msra.mxu0 %v922
      %926 = vmatprep.subr.bf16.mxu0 0
      %927 = vmatpush1.bf16.msra.mxu0 0
      %928 = vmatprep.subr.bf16.mxu0 0
      %929 = vmatpush1.bf16.msra.mxu0 0
      %930 = vmatprep.subr.bf16.mxu0 0
      %931 = vmatpush1.bf16.msra.mxu0 0
      %932 = vmatprep.subr.bf16.mxu0 0
      %933 = vmatpush1.bf16.msra.mxu0 0
      %934 = vmatprep.subr.bf16.mxu0 0
      %935 = vmatpush1.bf16.msra.mxu0 0
      %936 = vmatprep.subr.bf16.mxu0 0
      %937 = vmatpush1.bf16.msra.mxu0 0
      %938 = vmatprep.subr.bf16.mxu0 0
      %939 = vmatpush1.bf16.msra.mxu0 0
      %940 = vmatprep.subr.bf16.mxu0 0
      %941 = vmatpush1.bf16.msra.mxu0 0
      %942 = vmatprep.subr.bf16.mxu0 0
      %943 = vmatpush1.bf16.msra.mxu0 0
      %944 = vmatprep.subr.bf16.mxu0 0
      %945 = vmatpush1.bf16.msra.mxu0 0
      %946 = vmatprep.subr.bf16.mxu0 0
      %947 = vmatpush1.bf16.msra.mxu0 0
      %948 = vmatprep.subr.bf16.mxu0 0
      %949 = vmatpush1.bf16.msra.mxu0 0
      %950 = vmatprep.subr.bf16.mxu0 0
      %951 = vmatpush1.bf16.msra.mxu0 0
      %952 = vmatprep.subr.bf16.mxu0 0
      %953 = vmatpush1.bf16.msra.mxu0 0
      %954 = vmatprep.subr.bf16.mxu0 0
      %955 = vmatpush1.bf16.msra.mxu0 0
      %956 = vmatprep.mubr.bf16.mxu0 0
      %957 = vmatmul.mubr.bf16.gmra.mrb[0].mxu0 %v877
      %v958 = vpop.f32.mrb[0].mxu0
      %v959 = vadd.f32 0.0, %v958
      %v960 = vpop.f32.mrb[0].mxu0
      %v961 = vpop.f32.mrb[0].mxu0
      %v962 = vadd.f32 0.0, %v961
      %v963 = vpop.f32.mrb[0].mxu0
      %964 = vmatprep.mubr.bf16.mxu0 0
      %965 = vmatmul.mubr.bf16.gmra.mrb[0].mxu0 %v880
      %v966 = vpop.f32.mrb[0].mxu0
      %v967 = vadd.f32 0.0, %v966
      %v968 = vpop.f32.mrb[0].mxu0
      %v969 = vpop.f32.mrb[0].mxu0
      %v970 = vadd.f32 0.0, %v969
      %v971 = vpop.f32.mrb[0].mxu0
      %972 = vmatprep.mubr.bf16.mxu0 0
      %973 = vmatmul.mubr.bf16.gmra.mrb[0].mxu0 %v877
      %v974 = vpop.f32.mrb[0].mxu0
      %v975 = vadd.f32 0.0, %v974
      %v976 = vpop.f32.mrb[0].mxu0
      %v977 = vpop.f32.mrb[0].mxu0
      %v978 = vadd.f32 0.0, %v977
      %v979 = vpop.f32.mrb[0].mxu0
      %980 = vmatprep.mubr.bf16.mxu0 0
      %981 = vmatmul.mubr.bf16.gmra.mrb[0].mxu0 %v883
      %v982 = vpop.f32.mrb[0].mxu0
      %v983 = vadd.f32 0.0, %v982
      %v984 = vpop.f32.mrb[0].mxu0
      %v985 = vpop.f32.mrb[0].mxu0
      %v986 = vadd.f32 0.0, %v985
      %v987 = vpop.f32.mrb[0].mxu0
      %988 = vmatprep.mubr.bf16.mxu0 0
      %989 = vmatmul.mubr.bf16.gmra.mrb[0].mxu0 %v886
      %v990 = vpop.f32.mrb[0].mxu0
      %v991 = vadd.f32 0.0, %v990
      %v992 = vpop.f32.mrb[0].mxu0
      %v993 = vpop.f32.mrb[0].mxu0
      %v994 = vadd.f32 0.0, %v993
      %v995 = vpop.f32.mrb[0].mxu0
      %996 = vmatprep.mubr.bf16.mxu0 0
      %997 = vmatmul.mubr.bf16.gmra.mrb[0].mxu0 %v889
      %v998 = vpop.f32.mrb[0].mxu0
      %v999 = vadd.f32 0.0, %v998
      %v1000 = vpop.f32.mrb[0].mxu0
      %v1001 = vpop.f32.mrb[0].mxu0
      %v1002 = vadd.f32 0.0, %v1001
      %v1003 = vpop.f32.mrb[0].mxu0
      %1004 = vmatprep.mubr.bf16.mxu0 0
      %1005 = vmatmul.mubr.bf16.gmra.mrb[0].mxu0 %v892
      %v1006 = vpop.f32.mrb[0].mxu0
      %v1007 = vadd.f32 0.0, %v1006
      %v1008 = vpop.f32.mrb[0].mxu0
      %v1009 = vpop.f32.mrb[0].mxu0
      %v1010 = vadd.f32 0.0, %v1009
      %v1011 = vpop.f32.mrb[0].mxu0
      %1012 = vmatprep.mubr.bf16.mxu0 0
      %1013 = vmatmul.mubr.bf16.gmra.mrb[0].mxu0 %v895
      %v1014 = vpop.f32.mrb[0].mxu0
      %v1015 = vadd.f32 0.0, %v1014
      %v1016 = vpop.f32.mrb[0].mxu0
      %v1017 = vpop.f32.mrb[0].mxu0
      %v1018 = vadd.f32 0.0, %v1017
      %v1019 = vpop.f32.mrb[0].mxu0
      %1020 = vmatprep.mubr.bf16.mxu0 0
      %1021 = vmatmul.mubr.bf16.gmra.mrb[0].mxu0 %v898
      %v1022 = vpop.f32.mrb[0].mxu0
      %v1023 = vadd.f32 0.0, %v1022
      %v1024 = vpop.f32.mrb[0].mxu0
      %v1025 = vpop.f32.mrb[0].mxu0
      %v1026 = vadd.f32 0.0, %v1025
      %v1027 = vpop.f32.mrb[0].mxu0
      %1028 = vmatprep.mubr.bf16.mxu0 0
      %1029 = vmatmul.mubr.bf16.gmra.mrb[0].mxu0 %v901
      %v1030 = vpop.f32.mrb[0].mxu0
      %v1031 = vadd.f32 0.0, %v1030
      %v1032 = vpop.f32.mrb[0].mxu0
      %v1033 = vpop.f32.mrb[0].mxu0
      %v1034 = vadd.f32 0.0, %v1033
      %v1035 = vpop.f32.mrb[0].mxu0
      %1036 = vmatprep.mubr.bf16.mxu0 0
      %1037 = vmatmul.mubr.bf16.gmra.mrb[0].mxu0 %v904
      %v1038 = vpop.f32.mrb[0].mxu0
      %v1039 = vadd.f32 0.0, %v1038
      %v1040 = vpop.f32.mrb[0].mxu0
      %v1041 = vpop.f32.mrb[0].mxu0
      %v1042 = vadd.f32 0.0, %v1041
      %v1043 = vpop.f32.mrb[0].mxu0
      %1044 = vmatprep.mubr.bf16.mxu0 0
      %1045 = vmatmul.mubr.bf16.gmra.mrb[0].mxu0 %v907
      %v1046 = vpop.f32.mrb[0].mxu0
      %v1047 = vadd.f32 0.0, %v1046
      %v1048 = vpop.f32.mrb[0].mxu0
      %v1049 = vpop.f32.mrb[0].mxu0
      %v1050 = vadd.f32 0.0, %v1049
      %v1051 = vpop.f32.mrb[0].mxu0
      %1052 = vmatprep.mubr.bf16.mxu0 0
      %1053 = vmatmul.mubr.bf16.gmra.mrb[0].mxu0 %v910
      %v1054 = vpop.f32.mrb[0].mxu0
      %v1055 = vadd.f32 0.0, %v1054
      %v1056 = vpop.f32.mrb[0].mxu0
      %v1057 = vpop.f32.mrb[0].mxu0
      %v1058 = vadd.f32 0.0, %v1057
      %v1059 = vpop.f32.mrb[0].mxu0
      %1060 = vmatprep.mubr.bf16.mxu0 0
      %1061 = vmatmul.mubr.bf16.gmra.mrb[0].mxu0 %v913
      %v1062 = vpop.f32.mrb[0].mxu0
      %v1063 = vadd.f32 0.0, %v1062
      %v1064 = vpop.f32.mrb[0].mxu0
      %v1065 = vpop.f32.mrb[0].mxu0
      %v1066 = vadd.f32 0.0, %v1065
      %v1067 = vpop.f32.mrb[0].mxu0
      %1068 = vmatprep.mubr.bf16.mxu0 0
      %1069 = vmatmul.mubr.bf16.gmra.mrb[0].mxu0 %v916
      %v1070 = vpop.f32.mrb[0].mxu0
      %v1071 = vadd.f32 0.0, %v1070
      %v1072 = vpop.f32.mrb[0].mxu0
      %v1073 = vpop.f32.mrb[0].mxu0
      %v1074 = vadd.f32 0.0, %v1073
      %v1075 = vpop.f32.mrb[0].mxu0
      %1076 = vmatprep.mubr.bf16.mxu0 0
      %1077 = vmatmul.mubr.bf16.gmra.mrb[0].mxu0 %v919
      %v1078 = vpop.f32.mrb[0].mxu0
      %v1079 = vadd.f32 0.0, %v1078
      %v1080 = vpop.f32.mrb[0].mxu0
      %v1081 = vpop.f32.mrb[0].mxu0
      %v1082 = vadd.f32 0.0, %v1081
      %v1083 = vpop.f32.mrb[0].mxu0
      %1084 = vdwg.mxu0
      %v1085 = vadd.f32 %v748, %v959
      %v1086 = vadd.f32 %v751, %v962
      %v1087 = vadd.f32 %v756, %v967
      %v1088 = vadd.f32 %v759, %v970
      %v1089 = vadd.f32 %v764, %v975
      %v1090 = vadd.f32 %v767, %v978
      %v1091 = vadd.f32 %v772, %v983
      %v1092 = vadd.f32 %v775, %v986
      %v1093 = vadd.f32 %v780, %v991
      %v1094 = vadd.f32 %v783, %v994
      %v1095 = vadd.f32 %v788, %v999
      %v1096 = vadd.f32 %v791, %v1002
      %v1097 = vadd.f32 %v796, %v1007
      %v1098 = vadd.f32 %v799, %v1010
      %v1099 = vadd.f32 %v804, %v1015
      %v1100 = vadd.f32 %v807, %v1018
      %v1101 = vadd.f32 %v812, %v1023
      %v1102 = vadd.f32 %v815, %v1026
      %v1103 = vadd.f32 %v820, %v1031
      %v1104 = vadd.f32 %v823, %v1034
      %v1105 = vadd.f32 %v828, %v1039
      %v1106 = vadd.f32 %v831, %v1042
      %v1107 = vadd.f32 %v836, %v1047
      %v1108 = vadd.f32 %v839, %v1050
      %v1109 = vadd.f32 %v844, %v1055
      %v1110 = vadd.f32 %v847, %v1058
      %v1111 = vadd.f32 %v852, %v1063
      %v1112 = vadd.f32 %v855, %v1066
      %v1113 = vadd.f32 %v860, %v1071
      %v1114 = vadd.f32 %v863, %v1074
      %v1115 = vadd.f32 %v868, %v1079
      %v1116 = vadd.f32 %v871, %v1082
      %s1117 = scalar_lea.vmem %s1, 6
      %v1118 = vld [vmem:[%s1117] sm:$0x3]
      %v1120 = vsel %vm469, %v382, 0
      %v1123 = vsel %vm500, %v1118, 0
      %1125 = vmatprep.subr.bf16.mxu0 0
      %1126 = vmatpush1.bf16.msra.mxu0 %v1123
      %1127 = vmatprep.subr.bf16.mxu0 0
      %1128 = vmatpush1.bf16.msra.mxu0 0
      %1129 = vmatprep.subr.bf16.mxu0 0
      %1130 = vmatpush1.bf16.msra.mxu0 0
      %1131 = vmatprep.subr.bf16.mxu0 0
      %1132 = vmatpush1.bf16.msra.mxu0 0
      %1133 = vmatprep.subr.bf16.mxu0 0
      %1134 = vmatpush1.bf16.msra.mxu0 0
      %1135 = vmatprep.subr.bf16.mxu0 0
      %1136 = vmatpush1.bf16.msra.mxu0 0
      %1137 = vmatprep.subr.bf16.mxu0 0
      %1138 = vmatpush1.bf16.msra.mxu0 0
      %1139 = vmatprep.subr.bf16.mxu0 0
      %1140 = vmatpush1.bf16.msra.mxu0 0
      %1141 = vmatprep.subr.bf16.mxu0 0
      %1142 = vmatpush1.bf16.msra.mxu0 0
      %1143 = vmatprep.subr.bf16.mxu0 0
      %1144 = vmatpush1.bf16.msra.mxu0 0
      %1145 = vmatprep.subr.bf16.mxu0 0
      %1146 = vmatpush1.bf16.msra.mxu0 0
      %1147 = vmatprep.subr.bf16.mxu0 0
      %1148 = vmatpush1.bf16.msra.mxu0 0
      %1149 = vmatprep.subr.bf16.mxu0 0
      %1150 = vmatpush1.bf16.msra.mxu0 0
      %1151 = vmatprep.subr.bf16.mxu0 0
      %1152 = vmatpush1.bf16.msra.mxu0 0
      %1153 = vmatprep.subr.bf16.mxu0 0
      %1154 = vmatpush1.bf16.msra.mxu0 0
      %1155 = vmatprep.subr.bf16.mxu0 0
      %1156 = vmatpush1.bf16.msra.mxu0 0
      %1157 = vmatprep.mubr.bf16.mxu0 0
      %1158 = vmatmul.mubr.bf16.gmra.mrb[0].mxu0 %v669
      %v1159 = vpop.f32.mrb[0].mxu0
      %v1160 = vadd.f32 0.0, %v1159
      %v1161 = vpop.f32.mrb[0].mxu0
      %v1162 = vpop.f32.mrb[0].mxu0
      %v1163 = vadd.f32 0.0, %v1162
      %v1164 = vpop.f32.mrb[0].mxu0
      %1165 = vmatprep.mubr.bf16.mxu0 0
      %1166 = vmatmul.mubr.bf16.gmra.mrb[0].mxu0 %v666
      %v1167 = vpop.f32.mrb[0].mxu0
      %v1168 = vadd.f32 0.0, %v1167
      %v1169 = vpop.f32.mrb[0].mxu0
      %v1170 = vpop.f32.mrb[0].mxu0
      %v1171 = vadd.f32 0.0, %v1170
      %v1172 = vpop.f32.mrb[0].mxu0
      %1173 = vmatprep.mubr.bf16.mxu0 0
      %1174 = vmatmul.mubr.bf16.gmra.mrb[0].mxu0 %v672
      %v1175 = vpop.f32.mrb[0].mxu0
      %v1176 = vadd.f32 0.0, %v1175
      %v1177 = vpop.f32.mrb[0].mxu0
      %v1178 = vpop.f32.mrb[0].mxu0
      %v1179 = vadd.f32 0.0, %v1178
      %v1180 = vpop.f32.mrb[0].mxu0
      %1181 = vmatprep.mubr.bf16.mxu0 0
      %1182 = vmatmul.mubr.bf16.gmra.mrb[0].mxu0 %v675
      %v1183 = vpop.f32.mrb[0].mxu0
      %v1184 = vadd.f32 0.0, %v1183
      %v1185 = vpop.f32.mrb[0].mxu0
      %v1186 = vpop.f32.mrb[0].mxu0
      %v1187 = vadd.f32 0.0, %v1186
      %v1188 = vpop.f32.mrb[0].mxu0
      %1189 = vmatprep.mubr.bf16.mxu0 0
      %1190 = vmatmul.mubr.bf16.gmra.mrb[0].mxu0 %v678
      %v1191 = vpop.f32.mrb[0].mxu0
      %v1192 = vadd.f32 0.0, %v1191
      %v1193 = vpop.f32.mrb[0].mxu0
      %v1194 = vpop.f32.mrb[0].mxu0
      %v1195 = vadd.f32 0.0, %v1194
      %v1196 = vpop.f32.mrb[0].mxu0
      %1197 = vmatprep.mubr.bf16.mxu0 0
      %1198 = vmatmul.mubr.bf16.gmra.mrb[0].mxu0 %v681
      %v1199 = vpop.f32.mrb[0].mxu0
      %v1200 = vadd.f32 0.0, %v1199
      %v1201 = vpop.f32.mrb[0].mxu0
      %v1202 = vpop.f32.mrb[0].mxu0
      %v1203 = vadd.f32 0.0, %v1202
      %v1204 = vpop.f32.mrb[0].mxu0
      %1205 = vmatprep.mubr.bf16.mxu0 0
      %1206 = vmatmul.mubr.bf16.gmra.mrb[0].mxu0 %v684
      %v1207 = vpop.f32.mrb[0].mxu0
      %v1208 = vadd.f32 0.0, %v1207
      %v1209 = vpop.f32.mrb[0].mxu0
      %v1210 = vpop.f32.mrb[0].mxu0
      %v1211 = vadd.f32 0.0, %v1210
      %v1212 = vpop.f32.mrb[0].mxu0
      %1213 = vmatprep.mubr.bf16.mxu0 0
      %1214 = vmatmul.mubr.bf16.gmra.mrb[0].mxu0 %v687
      %v1215 = vpop.f32.mrb[0].mxu0
      %v1216 = vadd.f32 0.0, %v1215
      %v1217 = vpop.f32.mrb[0].mxu0
      %v1218 = vpop.f32.mrb[0].mxu0
      %v1219 = vadd.f32 0.0, %v1218
      %v1220 = vpop.f32.mrb[0].mxu0
      %1221 = vmatprep.mubr.bf16.mxu0 0
      %1222 = vmatmul.mubr.bf16.gmra.mrb[0].mxu0 %v690
      %v1223 = vpop.f32.mrb[0].mxu0
      %v1224 = vadd.f32 0.0, %v1223
      %v1225 = vpop.f32.mrb[0].mxu0
      %v1226 = vpop.f32.mrb[0].mxu0
      %v1227 = vadd.f32 0.0, %v1226
      %v1228 = vpop.f32.mrb[0].mxu0
      %1229 = vmatprep.mubr.bf16.mxu0 0
      %1230 = vmatmul.mubr.bf16.gmra.mrb[0].mxu0 %v693
      %v1231 = vpop.f32.mrb[0].mxu0
      %v1232 = vadd.f32 0.0, %v1231
      %v1233 = vpop.f32.mrb[0].mxu0
      %v1234 = vpop.f32.mrb[0].mxu0
      %v1235 = vadd.f32 0.0, %v1234
      %v1236 = vpop.f32.mrb[0].mxu0
      %1237 = vmatprep.mubr.bf16.mxu0 0
      %1238 = vmatmul.mubr.bf16.gmra.mrb[0].mxu0 %v696
      %v1239 = vpop.f32.mrb[0].mxu0
      %v1240 = vadd.f32 0.0, %v1239
      %v1241 = vpop.f32.mrb[0].mxu0
      %v1242 = vpop.f32.mrb[0].mxu0
      %v1243 = vadd.f32 0.0, %v1242
      %v1244 = vpop.f32.mrb[0].mxu0
      %1245 = vmatprep.mubr.bf16.mxu0 0
      %1246 = vmatmul.mubr.bf16.gmra.mrb[0].mxu0 %v699
      %v1247 = vpop.f32.mrb[0].mxu0
      %v1248 = vadd.f32 0.0, %v1247
      %v1249 = vpop.f32.mrb[0].mxu0
      %v1250 = vpop.f32.mrb[0].mxu0
      %v1251 = vadd.f32 0.0, %v1250
      %v1252 = vpop.f32.mrb[0].mxu0
      %1253 = vmatprep.mubr.bf16.mxu0 0
      %1254 = vmatmul.mubr.bf16.gmra.mrb[0].mxu0 %v702
      %v1255 = vpop.f32.mrb[0].mxu0
      %v1256 = vadd.f32 0.0, %v1255
      %v1257 = vpop.f32.mrb[0].mxu0
      %v1258 = vpop.f32.mrb[0].mxu0
      %v1259 = vadd.f32 0.0, %v1258
      %v1260 = vpop.f32.mrb[0].mxu0
      %1261 = vmatprep.mubr.bf16.mxu0 0
      %1262 = vmatmul.mubr.bf16.gmra.mrb[0].mxu0 %v705
      %v1263 = vpop.f32.mrb[0].mxu0
      %v1264 = vadd.f32 0.0, %v1263
      %v1265 = vpop.f32.mrb[0].mxu0
      %v1266 = vpop.f32.mrb[0].mxu0
      %v1267 = vadd.f32 0.0, %v1266
      %v1268 = vpop.f32.mrb[0].mxu0
      %1269 = vmatprep.mubr.bf16.mxu0 0
      %1270 = vmatmul.mubr.bf16.gmra.mrb[0].mxu0 %v708
      %v1271 = vpop.f32.mrb[0].mxu0
      %v1272 = vadd.f32 0.0, %v1271
      %v1273 = vpop.f32.mrb[0].mxu0
      %v1274 = vpop.f32.mrb[0].mxu0
      %v1275 = vadd.f32 0.0, %v1274
      %v1276 = vpop.f32.mrb[0].mxu0
      %1277 = vmatprep.mubr.bf16.mxu0 0
      %1278 = vmatmul.mubr.bf16.gmra.mrb[0].mxu0 %v1120
      %v1279 = vpop.f32.mrb[0].mxu0
      %v1280 = vadd.f32 0.0, %v1279
      %v1281 = vpop.f32.mrb[0].mxu0
      %v1282 = vpop.f32.mrb[0].mxu0
      %v1283 = vadd.f32 0.0, %v1282
      %v1284 = vpop.f32.mrb[0].mxu0
      %1285 = vdwg.mxu0
      %v1286 = vadd.f32 %v1085, %v1160
      %v1287 = vadd.f32 %v1086, %v1163
      %v1288 = vadd.f32 %v1087, %v1168
      %v1289 = vadd.f32 %v1088, %v1171
      %v1290 = vadd.f32 %v1089, %v1176
      %v1291 = vadd.f32 %v1090, %v1179
      %v1292 = vadd.f32 %v1091, %v1184
      %v1293 = vadd.f32 %v1092, %v1187
      %v1294 = vadd.f32 %v1093, %v1192
      %v1295 = vadd.f32 %v1094, %v1195
      %v1296 = vadd.f32 %v1095, %v1200
      %v1297 = vadd.f32 %v1096, %v1203
      %v1298 = vadd.f32 %v1097, %v1208
      %v1299 = vadd.f32 %v1098, %v1211
      %v1300 = vadd.f32 %v1099, %v1216
      %v1301 = vadd.f32 %v1100, %v1219
      %v1302 = vadd.f32 %v1101, %v1224
      %v1303 = vadd.f32 %v1102, %v1227
      %v1304 = vadd.f32 %v1103, %v1232
      %v1305 = vadd.f32 %v1104, %v1235
      %v1306 = vadd.f32 %v1105, %v1240
      %v1307 = vadd.f32 %v1106, %v1243
      %v1308 = vadd.f32 %v1107, %v1248
      %v1309 = vadd.f32 %v1108, %v1251
      %v1310 = vadd.f32 %v1109, %v1256
      %v1311 = vadd.f32 %v1110, %v1259
      %v1312 = vadd.f32 %v1111, %v1264
      %v1313 = vadd.f32 %v1112, %v1267
      %v1314 = vadd.f32 %v1113, %v1272
      %v1315 = vadd.f32 %v1114, %v1275
      %v1316 = vadd.f32 %v1115, %v1280
      %v1317 = vadd.f32 %v1116, %v1283
      %s1318 = scalar_lea.vmem %s1, 8
      %v1319 = vld [vmem:[%s1318] sm:$0x3]
      %v1320 = vsel %vm469, %v219, 0
      %v1323 = vsel %vm500, %v1319, 0
      %1325 = vmatprep.subr.bf16.mxu0 0
      %1326 = vmatpush1.bf16.msra.mxu0 %v1323
      %1327 = vmatprep.subr.bf16.mxu0 0
      %1328 = vmatpush1.bf16.msra.mxu0 0
      %1329 = vmatprep.subr.bf16.mxu0 0
      %1330 = vmatpush1.bf16.msra.mxu0 0
      %1331 = vmatprep.subr.bf16.mxu0 0
      %1332 = vmatpush1.bf16.msra.mxu0 0
      %1333 = vmatprep.subr.bf16.mxu0 0
      %1334 = vmatpush1.bf16.msra.mxu0 0
      %1335 = vmatprep.subr.bf16.mxu0 0
      %1336 = vmatpush1.bf16.msra.mxu0 0
      %1337 = vmatprep.subr.bf16.mxu0 0
      %1338 = vmatpush1.bf16.msra.mxu0 0
      %1339 = vmatprep.subr.bf16.mxu0 0
      %1340 = vmatpush1.bf16.msra.mxu0 0
      %1341 = vmatprep.subr.bf16.mxu0 0
      %1342 = vmatpush1.bf16.msra.mxu0 0
      %1343 = vmatprep.subr.bf16.mxu0 0
      %1344 = vmatpush1.bf16.msra.mxu0 0
      %1345 = vmatprep.subr.bf16.mxu0 0
      %1346 = vmatpush1.bf16.msra.mxu0 0
      %1347 = vmatprep.subr.bf16.mxu0 0
      %1348 = vmatpush1.bf16.msra.mxu0 0
      %1349 = vmatprep.subr.bf16.mxu0 0
      %1350 = vmatpush1.bf16.msra.mxu0 0
      %1351 = vmatprep.subr.bf16.mxu0 0
      %1352 = vmatpush1.bf16.msra.mxu0 0
      %1353 = vmatprep.subr.bf16.mxu0 0
      %1354 = vmatpush1.bf16.msra.mxu0 0
      %1355 = vmatprep.subr.bf16.mxu0 0
      %1356 = vmatpush1.bf16.msra.mxu0 0
      %1357 = vmatprep.mubr.bf16.mxu0 0
      %1358 = vmatmul.mubr.bf16.gmra.mrb[0].mxu0 %v472
      %v1359 = vpop.f32.mrb[0].mxu0
      %v1360 = vadd.f32 0.0, %v1359
      %v1361 = vpop.f32.mrb[0].mxu0
      %v1362 = vpop.f32.mrb[0].mxu0
      %v1363 = vadd.f32 0.0, %v1362
      %v1364 = vpop.f32.mrb[0].mxu0
      %1365 = vmatprep.mubr.bf16.mxu0 0
      %1366 = vmatmul.mubr.bf16.gmra.mrb[0].mxu0 %v470
      %v1367 = vpop.f32.mrb[0].mxu0
      %v1368 = vadd.f32 0.0, %v1367
      %v1369 = vpop.f32.mrb[0].mxu0
      %v1370 = vpop.f32.mrb[0].mxu0
      %v1371 = vadd.f32 0.0, %v1370
      %v1372 = vpop.f32.mrb[0].mxu0
      %1373 = vmatprep.mubr.bf16.mxu0 0
      %1374 = vmatmul.mubr.bf16.gmra.mrb[0].mxu0 %v474
      %v1375 = vpop.f32.mrb[0].mxu0
      %v1376 = vadd.f32 0.0, %v1375
      %v1377 = vpop.f32.mrb[0].mxu0
      %v1378 = vpop.f32.mrb[0].mxu0
      %v1379 = vadd.f32 0.0, %v1378
      %v1380 = vpop.f32.mrb[0].mxu0
      %1381 = vmatprep.mubr.bf16.mxu0 0
      %1382 = vmatmul.mubr.bf16.gmra.mrb[0].mxu0 %v476
      %v1383 = vpop.f32.mrb[0].mxu0
      %v1384 = vadd.f32 0.0, %v1383
      %v1385 = vpop.f32.mrb[0].mxu0
      %v1386 = vpop.f32.mrb[0].mxu0
      %v1387 = vadd.f32 0.0, %v1386
      %v1388 = vpop.f32.mrb[0].mxu0
      %1389 = vmatprep.mubr.bf16.mxu0 0
      %1390 = vmatmul.mubr.bf16.gmra.mrb[0].mxu0 %v478
      %v1391 = vpop.f32.mrb[0].mxu0
      %v1392 = vadd.f32 0.0, %v1391
      %v1393 = vpop.f32.mrb[0].mxu0
      %v1394 = vpop.f32.mrb[0].mxu0
      %v1395 = vadd.f32 0.0, %v1394
      %v1396 = vpop.f32.mrb[0].mxu0
      %1397 = vmatprep.mubr.bf16.mxu0 0
      %1398 = vmatmul.mubr.bf16.gmra.mrb[0].mxu0 %v480
      %v1399 = vpop.f32.mrb[0].mxu0
      %v1400 = vadd.f32 0.0, %v1399
      %v1401 = vpop.f32.mrb[0].mxu0
      %v1402 = vpop.f32.mrb[0].mxu0
      %v1403 = vadd.f32 0.0, %v1402
      %v1404 = vpop.f32.mrb[0].mxu0
      %1405 = vmatprep.mubr.bf16.mxu0 0
      %1406 = vmatmul.mubr.bf16.gmra.mrb[0].mxu0 %v482
      %v1407 = vpop.f32.mrb[0].mxu0
      %v1408 = vadd.f32 0.0, %v1407
      %v1409 = vpop.f32.mrb[0].mxu0
      %v1410 = vpop.f32.mrb[0].mxu0
      %v1411 = vadd.f32 0.0, %v1410
      %v1412 = vpop.f32.mrb[0].mxu0
      %1413 = vmatprep.mubr.bf16.mxu0 0
      %1414 = vmatmul.mubr.bf16.gmra.mrb[0].mxu0 %v484
      %v1415 = vpop.f32.mrb[0].mxu0
      %v1416 = vadd.f32 0.0, %v1415
      %v1417 = vpop.f32.mrb[0].mxu0
      %v1418 = vpop.f32.mrb[0].mxu0
      %v1419 = vadd.f32 0.0, %v1418
      %v1420 = vpop.f32.mrb[0].mxu0
      %1421 = vmatprep.mubr.bf16.mxu0 0
      %1422 = vmatmul.mubr.bf16.gmra.mrb[0].mxu0 %v486
      %v1423 = vpop.f32.mrb[0].mxu0
      %v1424 = vadd.f32 0.0, %v1423
      %v1425 = vpop.f32.mrb[0].mxu0
      %v1426 = vpop.f32.mrb[0].mxu0
      %v1427 = vadd.f32 0.0, %v1426
      %v1428 = vpop.f32.mrb[0].mxu0
      %1429 = vmatprep.mubr.bf16.mxu0 0
      %1430 = vmatmul.mubr.bf16.gmra.mrb[0].mxu0 %v488
      %v1431 = vpop.f32.mrb[0].mxu0
      %v1432 = vadd.f32 0.0, %v1431
      %v1433 = vpop.f32.mrb[0].mxu0
      %v1434 = vpop.f32.mrb[0].mxu0
      %v1435 = vadd.f32 0.0, %v1434
      %v1436 = vpop.f32.mrb[0].mxu0
      %1437 = vmatprep.mubr.bf16.mxu0 0
      %1438 = vmatmul.mubr.bf16.gmra.mrb[0].mxu0 %v490
      %v1439 = vpop.f32.mrb[0].mxu0
      %v1440 = vadd.f32 0.0, %v1439
      %v1441 = vpop.f32.mrb[0].mxu0
      %v1442 = vpop.f32.mrb[0].mxu0
      %v1443 = vadd.f32 0.0, %v1442
      %v1444 = vpop.f32.mrb[0].mxu0
      %1445 = vmatprep.mubr.bf16.mxu0 0
      %1446 = vmatmul.mubr.bf16.gmra.mrb[0].mxu0 %v492
      %v1447 = vpop.f32.mrb[0].mxu0
      %v1448 = vadd.f32 0.0, %v1447
      %v1449 = vpop.f32.mrb[0].mxu0
      %v1450 = vpop.f32.mrb[0].mxu0
      %v1451 = vadd.f32 0.0, %v1450
      %v1452 = vpop.f32.mrb[0].mxu0
      %1453 = vmatprep.mubr.bf16.mxu0 0
      %1454 = vmatmul.mubr.bf16.gmra.mrb[0].mxu0 %v494
      %v1455 = vpop.f32.mrb[0].mxu0
      %v1456 = vadd.f32 0.0, %v1455
      %v1457 = vpop.f32.mrb[0].mxu0
      %v1458 = vpop.f32.mrb[0].mxu0
      %v1459 = vadd.f32 0.0, %v1458
      %v1460 = vpop.f32.mrb[0].mxu0
      %1461 = vmatprep.mubr.bf16.mxu0 0
      %1462 = vmatmul.mubr.bf16.gmra.mrb[0].mxu0 %v496
      %v1463 = vpop.f32.mrb[0].mxu0
      %v1464 = vadd.f32 0.0, %v1463
      %v1465 = vpop.f32.mrb[0].mxu0
      %v1466 = vpop.f32.mrb[0].mxu0
      %v1467 = vadd.f32 0.0, %v1466
      %v1468 = vpop.f32.mrb[0].mxu0
      %1469 = vmatprep.mubr.bf16.mxu0 0
      %1470 = vmatmul.mubr.bf16.gmra.mrb[0].mxu0 %v498
      %v1471 = vpop.f32.mrb[0].mxu0
      %v1472 = vadd.f32 0.0, %v1471
      %v1473 = vpop.f32.mrb[0].mxu0
      %v1474 = vpop.f32.mrb[0].mxu0
      %v1475 = vadd.f32 0.0, %v1474
      %v1476 = vpop.f32.mrb[0].mxu0
      %1477 = vmatprep.mubr.bf16.mxu0 0
      %1478 = vmatmul.mubr.bf16.gmra.mrb[0].mxu0 %v1320
      %v1479 = vpop.f32.mrb[0].mxu0
      %v1480 = vadd.f32 0.0, %v1479
      %v1481 = vpop.f32.mrb[0].mxu0
      %v1482 = vpop.f32.mrb[0].mxu0
      %v1483 = vadd.f32 0.0, %v1482
      %v1484 = vpop.f32.mrb[0].mxu0
      %1485 = vdwg.mxu0
      %v1486 = vadd.f32 %v1286, %v1360
      %v1487 = vadd.f32 %v1287, %v1363
      %v1488 = vadd.f32 %v1288, %v1368
      %v1489 = vadd.f32 %v1289, %v1371
      %v1490 = vadd.f32 %v1290, %v1376
      %v1491 = vadd.f32 %v1291, %v1379
      %v1492 = vadd.f32 %v1292, %v1384
      %v1493 = vadd.f32 %v1293, %v1387
      %v1494 = vadd.f32 %v1294, %v1392
      %v1495 = vadd.f32 %v1295, %v1395
      %v1496 = vadd.f32 %v1296, %v1400
      %v1497 = vadd.f32 %v1297, %v1403
      %v1498 = vadd.f32 %v1298, %v1408
      %v1499 = vadd.f32 %v1299, %v1411
      %v1500 = vadd.f32 %v1300, %v1416
      %v1501 = vadd.f32 %v1301, %v1419
      %v1502 = vadd.f32 %v1302, %v1424
      %v1503 = vadd.f32 %v1303, %v1427
      %v1504 = vadd.f32 %v1304, %v1432
      %v1505 = vadd.f32 %v1305, %v1435
      %v1506 = vadd.f32 %v1306, %v1440
      %v1507 = vadd.f32 %v1307, %v1443
      %v1508 = vadd.f32 %v1308, %v1448
      %v1509 = vadd.f32 %v1309, %v1451
      %v1510 = vadd.f32 %v1310, %v1456
      %v1511 = vadd.f32 %v1311, %v1459
      %v1512 = vadd.f32 %v1312, %v1464
      %v1513 = vadd.f32 %v1313, %v1467
      %v1514 = vadd.f32 %v1314, %v1472
      %v1515 = vadd.f32 %v1315, %v1475
      %v1516 = vadd.f32 %v1316, %v1480
      %v1517 = vadd.f32 %v1317, %v1483
      %s1518 = scalar_lea.vmem %s1, 10
      %v1519 = vld [vmem:[%s1518] sm:$0x3]
      %v1521 = vsel %vm469, %v465, 0
      %v1524 = vsel %vm500, %v1519, 0
      %1526 = vmatprep.subr.bf16.mxu0 0
      %1527 = vmatpush1.bf16.msra.mxu0 %v1524
      %1528 = vmatprep.subr.bf16.mxu0 0
      %1529 = vmatpush1.bf16.msra.mxu0 0
      %1530 = vmatprep.subr.bf16.mxu0 0
      %1531 = vmatpush1.bf16.msra.mxu0 0
      %1532 = vmatprep.subr.bf16.mxu0 0
      %1533 = vmatpush1.bf16.msra.mxu0 0
      %1534 = vmatprep.subr.bf16.mxu0 0
      %1535 = vmatpush1.bf16.msra.mxu0 0
      %1536 = vmatprep.subr.bf16.mxu0 0
      %1537 = vmatpush1.bf16.msra.mxu0 0
      %1538 = vmatprep.subr.bf16.mxu0 0
      %1539 = vmatpush1.bf16.msra.mxu0 0
      %1540 = vmatprep.subr.bf16.mxu0 0
      %1541 = vmatpush1.bf16.msra.mxu0 0
      %1542 = vmatprep.subr.bf16.mxu0 0
      %1543 = vmatpush1.bf16.msra.mxu0 0
      %1544 = vmatprep.subr.bf16.mxu0 0
      %1545 = vmatpush1.bf16.msra.mxu0 0
      %1546 = vmatprep.subr.bf16.mxu0 0
      %1547 = vmatpush1.bf16.msra.mxu0 0
      %1548 = vmatprep.subr.bf16.mxu0 0
      %1549 = vmatpush1.bf16.msra.mxu0 0
      %1550 = vmatprep.subr.bf16.mxu0 0
      %1551 = vmatpush1.bf16.msra.mxu0 0
      %1552 = vmatprep.subr.bf16.mxu0 0
      %1553 = vmatpush1.bf16.msra.mxu0 0
      %1554 = vmatprep.subr.bf16.mxu0 0
      %1555 = vmatpush1.bf16.msra.mxu0 0
      %1556 = vmatprep.subr.bf16.mxu0 0
      %1557 = vmatpush1.bf16.msra.mxu0 0
      %1558 = vmatprep.mubr.bf16.mxu0 0
      %1559 = vmatmul.mubr.bf16.gmra.mrb[0].mxu0 %v880
      %v1560 = vpop.f32.mrb[0].mxu0
      %v1561 = vadd.f32 0.0, %v1560
      %v1562 = vpop.f32.mrb[0].mxu0
      %v1563 = vpop.f32.mrb[0].mxu0
      %v1564 = vadd.f32 0.0, %v1563
      %v1565 = vpop.f32.mrb[0].mxu0
      %1566 = vmatprep.mubr.bf16.mxu0 0
      %1567 = vmatmul.mubr.bf16.gmra.mrb[0].mxu0 %v877
      %v1568 = vpop.f32.mrb[0].mxu0
      %v1569 = vadd.f32 0.0, %v1568
      %v1570 = vpop.f32.mrb[0].mxu0
      %v1571 = vpop.f32.mrb[0].mxu0
      %v1572 = vadd.f32 0.0, %v1571
      %v1573 = vpop.f32.mrb[0].mxu0
      %1574 = vmatprep.mubr.bf16.mxu0 0
      %1575 = vmatmul.mubr.bf16.gmra.mrb[0].mxu0 %v883
      %v1576 = vpop.f32.mrb[0].mxu0
      %v1577 = vadd.f32 0.0, %v1576
      %v1578 = vpop.f32.mrb[0].mxu0
      %v1579 = vpop.f32.mrb[0].mxu0
      %v1580 = vadd.f32 0.0, %v1579
      %v1581 = vpop.f32.mrb[0].mxu0
      %1582 = vmatprep.mubr.bf16.mxu0 0
      %1583 = vmatmul.mubr.bf16.gmra.mrb[0].mxu0 %v886
      %v1584 = vpop.f32.mrb[0].mxu0
      %v1585 = vadd.f32 0.0, %v1584
      %v1586 = vpop.f32.mrb[0].mxu0
      %v1587 = vpop.f32.mrb[0].mxu0
      %v1588 = vadd.f32 0.0, %v1587
      %v1589 = vpop.f32.mrb[0].mxu0
      %1590 = vmatprep.mubr.bf16.mxu0 0
      %1591 = vmatmul.mubr.bf16.gmra.mrb[0].mxu0 %v889
      %v1592 = vpop.f32.mrb[0].mxu0
      %v1593 = vadd.f32 0.0, %v1592
      %v1594 = vpop.f32.mrb[0].mxu0
      %v1595 = vpop.f32.mrb[0].mxu0
      %v1596 = vadd.f32 0.0, %v1595
      %v1597 = vpop.f32.mrb[0].mxu0
      %1598 = vmatprep.mubr.bf16.mxu0 0
      %1599 = vmatmul.mubr.bf16.gmra.mrb[0].mxu0 %v892
      %v1600 = vpop.f32.mrb[0].mxu0
      %v1601 = vadd.f32 0.0, %v1600
      %v1602 = vpop.f32.mrb[0].mxu0
      %v1603 = vpop.f32.mrb[0].mxu0
      %v1604 = vadd.f32 0.0, %v1603
      %v1605 = vpop.f32.mrb[0].mxu0
      %1606 = vmatprep.mubr.bf16.mxu0 0
      %1607 = vmatmul.mubr.bf16.gmra.mrb[0].mxu0 %v895
      %v1608 = vpop.f32.mrb[0].mxu0
      %v1609 = vadd.f32 0.0, %v1608
      %v1610 = vpop.f32.mrb[0].mxu0
      %v1611 = vpop.f32.mrb[0].mxu0
      %v1612 = vadd.f32 0.0, %v1611
      %v1613 = vpop.f32.mrb[0].mxu0
      %1614 = vmatprep.mubr.bf16.mxu0 0
      %1615 = vmatmul.mubr.bf16.gmra.mrb[0].mxu0 %v898
      %v1616 = vpop.f32.mrb[0].mxu0
      %v1617 = vadd.f32 0.0, %v1616
      %v1618 = vpop.f32.mrb[0].mxu0
      %v1619 = vpop.f32.mrb[0].mxu0
      %v1620 = vadd.f32 0.0, %v1619
      %v1621 = vpop.f32.mrb[0].mxu0
      %1622 = vmatprep.mubr.bf16.mxu0 0
      %1623 = vmatmul.mubr.bf16.gmra.mrb[0].mxu0 %v901
      %v1624 = vpop.f32.mrb[0].mxu0
      %v1625 = vadd.f32 0.0, %v1624
      %v1626 = vpop.f32.mrb[0].mxu0
      %v1627 = vpop.f32.mrb[0].mxu0
      %v1628 = vadd.f32 0.0, %v1627
      %v1629 = vpop.f32.mrb[0].mxu0
      %1630 = vmatprep.mubr.bf16.mxu0 0
      %1631 = vmatmul.mubr.bf16.gmra.mrb[0].mxu0 %v904
      %v1632 = vpop.f32.mrb[0].mxu0
      %v1633 = vadd.f32 0.0, %v1632
      %v1634 = vpop.f32.mrb[0].mxu0
      %v1635 = vpop.f32.mrb[0].mxu0
      %v1636 = vadd.f32 0.0, %v1635
      %v1637 = vpop.f32.mrb[0].mxu0
      %1638 = vmatprep.mubr.bf16.mxu0 0
      %1639 = vmatmul.mubr.bf16.gmra.mrb[0].mxu0 %v907
      %v1640 = vpop.f32.mrb[0].mxu0
      %v1641 = vadd.f32 0.0, %v1640
      %v1642 = vpop.f32.mrb[0].mxu0
      %v1643 = vpop.f32.mrb[0].mxu0
      %v1644 = vadd.f32 0.0, %v1643
      %v1645 = vpop.f32.mrb[0].mxu0
      %1646 = vmatprep.mubr.bf16.mxu0 0
      %1647 = vmatmul.mubr.bf16.gmra.mrb[0].mxu0 %v910
      %v1648 = vpop.f32.mrb[0].mxu0
      %v1649 = vadd.f32 0.0, %v1648
      %v1650 = vpop.f32.mrb[0].mxu0
      %v1651 = vpop.f32.mrb[0].mxu0
      %v1652 = vadd.f32 0.0, %v1651
      %v1653 = vpop.f32.mrb[0].mxu0
      %1654 = vmatprep.mubr.bf16.mxu0 0
      %1655 = vmatmul.mubr.bf16.gmra.mrb[0].mxu0 %v913
      %v1656 = vpop.f32.mrb[0].mxu0
      %v1657 = vadd.f32 0.0, %v1656
      %v1658 = vpop.f32.mrb[0].mxu0
      %v1659 = vpop.f32.mrb[0].mxu0
      %v1660 = vadd.f32 0.0, %v1659
      %v1661 = vpop.f32.mrb[0].mxu0
      %1662 = vmatprep.mubr.bf16.mxu0 0
      %1663 = vmatmul.mubr.bf16.gmra.mrb[0].mxu0 %v916
      %v1664 = vpop.f32.mrb[0].mxu0
      %v1665 = vadd.f32 0.0, %v1664
      %v1666 = vpop.f32.mrb[0].mxu0
      %v1667 = vpop.f32.mrb[0].mxu0
      %v1668 = vadd.f32 0.0, %v1667
      %v1669 = vpop.f32.mrb[0].mxu0
      %1670 = vmatprep.mubr.bf16.mxu0 0
      %1671 = vmatmul.mubr.bf16.gmra.mrb[0].mxu0 %v919
      %v1672 = vpop.f32.mrb[0].mxu0
      %v1673 = vadd.f32 0.0, %v1672
      %v1674 = vpop.f32.mrb[0].mxu0
      %v1675 = vpop.f32.mrb[0].mxu0
      %v1676 = vadd.f32 0.0, %v1675
      %v1677 = vpop.f32.mrb[0].mxu0
      %1678 = vmatprep.mubr.bf16.mxu0 0
      %1679 = vmatmul.mubr.bf16.gmra.mrb[0].mxu0 %v1521
      %v1680 = vpop.f32.mrb[0].mxu0
      %v1681 = vadd.f32 0.0, %v1680
      %v1682 = vpop.f32.mrb[0].mxu0
      %v1683 = vpop.f32.mrb[0].mxu0
      %v1684 = vadd.f32 0.0, %v1683
      %v1685 = vpop.f32.mrb[0].mxu0
      %1686 = vdwg.mxu0
      %v1687 = vadd.f32 %v1486, %v1561
      %v1688 = vadd.f32 %v1487, %v1564
      %v1689 = vadd.f32 %v1488, %v1569
      %v1690 = vadd.f32 %v1489, %v1572
      %v1691 = vadd.f32 %v1490, %v1577
      %v1692 = vadd.f32 %v1491, %v1580
      %v1693 = vadd.f32 %v1492, %v1585
      %v1694 = vadd.f32 %v1493, %v1588
      %v1695 = vadd.f32 %v1494, %v1593
      %v1696 = vadd.f32 %v1495, %v1596
      %v1697 = vadd.f32 %v1496, %v1601
      %v1698 = vadd.f32 %v1497, %v1604
      %v1699 = vadd.f32 %v1498, %v1609
      %v1700 = vadd.f32 %v1499, %v1612
      %v1701 = vadd.f32 %v1500, %v1617
      %v1702 = vadd.f32 %v1501, %v1620
      %v1703 = vadd.f32 %v1502, %v1625
      %v1704 = vadd.f32 %v1503, %v1628
      %v1705 = vadd.f32 %v1504, %v1633
      %v1706 = vadd.f32 %v1505, %v1636
      %v1707 = vadd.f32 %v1506, %v1641
      %v1708 = vadd.f32 %v1507, %v1644
      %v1709 = vadd.f32 %v1508, %v1649
      %v1710 = vadd.f32 %v1509, %v1652
      %v1711 = vadd.f32 %v1510, %v1657
      %v1712 = vadd.f32 %v1511, %v1660
      %v1713 = vadd.f32 %v1512, %v1665
      %v1714 = vadd.f32 %v1513, %v1668
      %v1715 = vadd.f32 %v1514, %v1673
      %v1716 = vadd.f32 %v1515, %v1676
      %v1717 = vadd.f32 %v1516, %v1681
      %v1718 = vadd.f32 %v1517, %v1684
      %s1719 = scalar_lea.vmem %s1, 12
      %v1720 = vld [vmem:[%s1719] sm:$0x3]
      %v1722 = vsel %vm500, %v1720, 0
      %1724 = vmatprep.subr.bf16.mxu0 0
      %1725 = vmatpush1.bf16.msra.mxu0 %v1722
      %1726 = vmatprep.subr.bf16.mxu0 0
      %1727 = vmatpush1.bf16.msra.mxu0 0
      %1728 = vmatprep.subr.bf16.mxu0 0
      %1729 = vmatpush1.bf16.msra.mxu0 0
      %1730 = vmatprep.subr.bf16.mxu0 0
      %1731 = vmatpush1.bf16.msra.mxu0 0
      %1732 = vmatprep.subr.bf16.mxu0 0
      %1733 = vmatpush1.bf16.msra.mxu0 0
      %1734 = vmatprep.subr.bf16.mxu0 0
      %1735 = vmatpush1.bf16.msra.mxu0 0
      %1736 = vmatprep.subr.bf16.mxu0 0
      %1737 = vmatpush1.bf16.msra.mxu0 0
      %1738 = vmatprep.subr.bf16.mxu0 0
      %1739 = vmatpush1.bf16.msra.mxu0 0
      %1740 = vmatprep.subr.bf16.mxu0 0
      %1741 = vmatpush1.bf16.msra.mxu0 0
      %1742 = vmatprep.subr.bf16.mxu0 0
      %1743 = vmatpush1.bf16.msra.mxu0 0
      %1744 = vmatprep.subr.bf16.mxu0 0
      %1745 = vmatpush1.bf16.msra.mxu0 0
      %1746 = vmatprep.subr.bf16.mxu0 0
      %1747 = vmatpush1.bf16.msra.mxu0 0
      %1748 = vmatprep.subr.bf16.mxu0 0
      %1749 = vmatpush1.bf16.msra.mxu0 0
      %1750 = vmatprep.subr.bf16.mxu0 0
      %1751 = vmatpush1.bf16.msra.mxu0 0
      %1752 = vmatprep.subr.bf16.mxu0 0
      %1753 = vmatpush1.bf16.msra.mxu0 0
      %1754 = vmatprep.subr.bf16.mxu0 0
      %1755 = vmatpush1.bf16.msra.mxu0 0
      %1756 = vmatprep.mubr.bf16.mxu0 0
      %1757 = vmatmul.mubr.bf16.gmra.mrb[0].mxu0 %v666
      %v1758 = vpop.f32.mrb[0].mxu0
      %v1759 = vadd.f32 0.0, %v1758
      %v1760 = vpop.f32.mrb[0].mxu0
      %v1761 = vpop.f32.mrb[0].mxu0
      %v1762 = vadd.f32 0.0, %v1761
      %v1763 = vpop.f32.mrb[0].mxu0
      %1764 = vmatprep.mubr.bf16.mxu0 0
      %1765 = vmatmul.mubr.bf16.gmra.mrb[0].mxu0 %v672
      %v1766 = vpop.f32.mrb[0].mxu0
      %v1767 = vadd.f32 0.0, %v1766
      %v1768 = vpop.f32.mrb[0].mxu0
      %v1769 = vpop.f32.mrb[0].mxu0
      %v1770 = vadd.f32 0.0, %v1769
      %v1771 = vpop.f32.mrb[0].mxu0
      %1772 = vmatprep.mubr.bf16.mxu0 0
      %1773 = vmatmul.mubr.bf16.gmra.mrb[0].mxu0 %v675
      %v1774 = vpop.f32.mrb[0].mxu0
      %v1775 = vadd.f32 0.0, %v1774
      %v1776 = vpop.f32.mrb[0].mxu0
      %v1777 = vpop.f32.mrb[0].mxu0
      %v1778 = vadd.f32 0.0, %v1777
      %v1779 = vpop.f32.mrb[0].mxu0
      %1780 = vmatprep.mubr.bf16.mxu0 0
      %1781 = vmatmul.mubr.bf16.gmra.mrb[0].mxu0 %v678
      %v1782 = vpop.f32.mrb[0].mxu0
      %v1783 = vadd.f32 0.0, %v1782
      %v1784 = vpop.f32.mrb[0].mxu0
      %v1785 = vpop.f32.mrb[0].mxu0
      %v1786 = vadd.f32 0.0, %v1785
      %v1787 = vpop.f32.mrb[0].mxu0
      %1788 = vmatprep.mubr.bf16.mxu0 0
      %1789 = vmatmul.mubr.bf16.gmra.mrb[0].mxu0 %v681
      %v1790 = vpop.f32.mrb[0].mxu0
      %v1791 = vadd.f32 0.0, %v1790
      %v1792 = vpop.f32.mrb[0].mxu0
      %v1793 = vpop.f32.mrb[0].mxu0
      %v1794 = vadd.f32 0.0, %v1793
      %v1795 = vpop.f32.mrb[0].mxu0
      %1796 = vmatprep.mubr.bf16.mxu0 0
      %1797 = vmatmul.mubr.bf16.gmra.mrb[0].mxu0 %v684
      %v1798 = vpop.f32.mrb[0].mxu0
      %v1799 = vadd.f32 0.0, %v1798
      %v1800 = vpop.f32.mrb[0].mxu0
      %v1801 = vpop.f32.mrb[0].mxu0
      %v1802 = vadd.f32 0.0, %v1801
      %v1803 = vpop.f32.mrb[0].mxu0
      %1804 = vmatprep.mubr.bf16.mxu0 0
      %1805 = vmatmul.mubr.bf16.gmra.mrb[0].mxu0 %v687
      %v1806 = vpop.f32.mrb[0].mxu0
      %v1807 = vadd.f32 0.0, %v1806
      %v1808 = vpop.f32.mrb[0].mxu0
      %v1809 = vpop.f32.mrb[0].mxu0
      %v1810 = vadd.f32 0.0, %v1809
      %v1811 = vpop.f32.mrb[0].mxu0
      %1812 = vmatprep.mubr.bf16.mxu0 0
      %1813 = vmatmul.mubr.bf16.gmra.mrb[0].mxu0 %v690
      %v1814 = vpop.f32.mrb[0].mxu0
      %v1815 = vadd.f32 0.0, %v1814
      %v1816 = vpop.f32.mrb[0].mxu0
      %v1817 = vpop.f32.mrb[0].mxu0
      %v1818 = vadd.f32 0.0, %v1817
      %v1819 = vpop.f32.mrb[0].mxu0
      %1820 = vmatprep.mubr.bf16.mxu0 0
      %1821 = vmatmul.mubr.bf16.gmra.mrb[0].mxu0 %v693
      %v1822 = vpop.f32.mrb[0].mxu0
      %v1823 = vadd.f32 0.0, %v1822
      %v1824 = vpop.f32.mrb[0].mxu0
      %v1825 = vpop.f32.mrb[0].mxu0
      %v1826 = vadd.f32 0.0, %v1825
      %v1827 = vpop.f32.mrb[0].mxu0
      %1828 = vmatprep.mubr.bf16.mxu0 0
      %1829 = vmatmul.mubr.bf16.gmra.mrb[0].mxu0 %v696
      %v1830 = vpop.f32.mrb[0].mxu0
      %v1831 = vadd.f32 0.0, %v1830
      %v1832 = vpop.f32.mrb[0].mxu0
      %v1833 = vpop.f32.mrb[0].mxu0
      %v1834 = vadd.f32 0.0, %v1833
      %v1835 = vpop.f32.mrb[0].mxu0
      %1836 = vmatprep.mubr.bf16.mxu0 0
      %1837 = vmatmul.mubr.bf16.gmra.mrb[0].mxu0 %v699
      %v1838 = vpop.f32.mrb[0].mxu0
      %v1839 = vadd.f32 0.0, %v1838
      %v1840 = vpop.f32.mrb[0].mxu0
      %v1841 = vpop.f32.mrb[0].mxu0
      %v1842 = vadd.f32 0.0, %v1841
      %v1843 = vpop.f32.mrb[0].mxu0
      %1844 = vmatprep.mubr.bf16.mxu0 0
      %1845 = vmatmul.mubr.bf16.gmra.mrb[0].mxu0 %v702
      %v1846 = vpop.f32.mrb[0].mxu0
      %v1847 = vadd.f32 0.0, %v1846
      %v1848 = vpop.f32.mrb[0].mxu0
      %v1849 = vpop.f32.mrb[0].mxu0
      %v1850 = vadd.f32 0.0, %v1849
      %v1851 = vpop.f32.mrb[0].mxu0
      %1852 = vmatprep.mubr.bf16.mxu0 0
      %1853 = vmatmul.mubr.bf16.gmra.mrb[0].mxu0 %v705
      %v1854 = vpop.f32.mrb[0].mxu0
      %v1855 = vadd.f32 0.0, %v1854
      %v1856 = vpop.f32.mrb[0].mxu0
      %v1857 = vpop.f32.mrb[0].mxu0
      %v1858 = vadd.f32 0.0, %v1857
      %v1859 = vpop.f32.mrb[0].mxu0
      %1860 = vmatprep.mubr.bf16.mxu0 0
      %1861 = vmatmul.mubr.bf16.gmra.mrb[0].mxu0 %v708
      %v1862 = vpop.f32.mrb[0].mxu0
      %v1863 = vadd.f32 0.0, %v1862
      %v1864 = vpop.f32.mrb[0].mxu0
      %v1865 = vpop.f32.mrb[0].mxu0
      %v1866 = vadd.f32 0.0, %v1865
      %v1867 = vpop.f32.mrb[0].mxu0
      %1868 = vmatprep.mubr.bf16.mxu0 0
      %1869 = vmatmul.mubr.bf16.gmra.mrb[0].mxu0 %v1120
      %v1870 = vpop.f32.mrb[0].mxu0
      %v1871 = vadd.f32 0.0, %v1870
      %v1872 = vpop.f32.mrb[0].mxu0
      %v1873 = vpop.f32.mrb[0].mxu0
      %v1874 = vadd.f32 0.0, %v1873
      %v1875 = vpop.f32.mrb[0].mxu0
      %1876 = vmatprep.mubr.bf16.mxu0 0
      %1877 = vmatmul.mubr.bf16.gmra.mrb[0].mxu0 %v708
      %v1878 = vpop.f32.mrb[0].mxu0
      %v1879 = vadd.f32 0.0, %v1878
      %v1880 = vpop.f32.mrb[0].mxu0
      %v1881 = vpop.f32.mrb[0].mxu0
      %v1882 = vadd.f32 0.0, %v1881
      %v1883 = vpop.f32.mrb[0].mxu0
      %1884 = vdwg.mxu0
      %v1885 = vadd.f32 %v1687, %v1759
      %v1886 = vadd.f32 %v1688, %v1762
      %v1887 = vadd.f32 %v1689, %v1767
      %v1888 = vadd.f32 %v1690, %v1770
      %v1889 = vadd.f32 %v1691, %v1775
      %v1890 = vadd.f32 %v1692, %v1778
      %v1891 = vadd.f32 %v1693, %v1783
      %v1892 = vadd.f32 %v1694, %v1786
      %v1893 = vadd.f32 %v1695, %v1791
      %v1894 = vadd.f32 %v1696, %v1794
      %v1895 = vadd.f32 %v1697, %v1799
      %v1896 = vadd.f32 %v1698, %v1802
      %v1897 = vadd.f32 %v1699, %v1807
      %v1898 = vadd.f32 %v1700, %v1810
      %v1899 = vadd.f32 %v1701, %v1815
      %v1900 = vadd.f32 %v1702, %v1818
      %v1901 = vadd.f32 %v1703, %v1823
      %v1902 = vadd.f32 %v1704, %v1826
      %v1903 = vadd.f32 %v1705, %v1831
      %v1904 = vadd.f32 %v1706, %v1834
      %v1905 = vadd.f32 %v1707, %v1839
      %v1906 = vadd.f32 %v1708, %v1842
      %v1907 = vadd.f32 %v1709, %v1847
      %v1908 = vadd.f32 %v1710, %v1850
      %v1909 = vadd.f32 %v1711, %v1855
      %v1910 = vadd.f32 %v1712, %v1858
      %v1911 = vadd.f32 %v1713, %v1863
      %v1912 = vadd.f32 %v1714, %v1866
      %v1913 = vadd.f32 %v1715, %v1871
      %v1914 = vadd.f32 %v1716, %v1874
      %v1915 = vadd.f32 %v1717, %v1879
      %v1916 = vadd.f32 %v1718, %v1882
      %s1917 = scalar_lea.vmem %s1, 14
      %v1918 = vld [vmem:[%s1917] sm:$0x3]
      %v1920 = vsel %vm500, %v1918, 0
      %1922 = vmatprep.subr.bf16.mxu0 0
      %1923 = vmatpush1.bf16.msra.mxu0 %v1920
      %1924 = vmatprep.subr.bf16.mxu0 0
      %1925 = vmatpush1.bf16.msra.mxu0 0
      %1926 = vmatprep.subr.bf16.mxu0 0
      %1927 = vmatpush1.bf16.msra.mxu0 0
      %1928 = vmatprep.subr.bf16.mxu0 0
      %1929 = vmatpush1.bf16.msra.mxu0 0
      %1930 = vmatprep.subr.bf16.mxu0 0
      %1931 = vmatpush1.bf16.msra.mxu0 0
      %1932 = vmatprep.subr.bf16.mxu0 0
      %1933 = vmatpush1.bf16.msra.mxu0 0
      %1934 = vmatprep.subr.bf16.mxu0 0
      %1935 = vmatpush1.bf16.msra.mxu0 0
      %1936 = vmatprep.subr.bf16.mxu0 0
      %1937 = vmatpush1.bf16.msra.mxu0 0
      %1938 = vmatprep.subr.bf16.mxu0 0
      %1939 = vmatpush1.bf16.msra.mxu0 0
      %1940 = vmatprep.subr.bf16.mxu0 0
      %1941 = vmatpush1.bf16.msra.mxu0 0
      %1942 = vmatprep.subr.bf16.mxu0 0
      %1943 = vmatpush1.bf16.msra.mxu0 0
      %1944 = vmatprep.subr.bf16.mxu0 0
      %1945 = vmatpush1.bf16.msra.mxu0 0
      %1946 = vmatprep.subr.bf16.mxu0 0
      %1947 = vmatpush1.bf16.msra.mxu0 0
      %1948 = vmatprep.subr.bf16.mxu0 0
      %1949 = vmatpush1.bf16.msra.mxu0 0
      %1950 = vmatprep.subr.bf16.mxu0 0
      %1951 = vmatpush1.bf16.msra.mxu0 0
      %1952 = vmatprep.subr.bf16.mxu0 0
      %1953 = vmatpush1.bf16.msra.mxu0 0
      %1954 = vmatprep.mubr.bf16.mxu0 0
      %1955 = vmatmul.mubr.bf16.gmra.mrb[0].mxu0 %v470
      %v1956 = vpop.f32.mrb[0].mxu0
      %v1957 = vadd.f32 0.0, %v1956
      %v1958 = vpop.f32.mrb[0].mxu0
      %v1959 = vpop.f32.mrb[0].mxu0
      %v1960 = vadd.f32 0.0, %v1959
      %v1961 = vpop.f32.mrb[0].mxu0
      %1962 = vmatprep.mubr.bf16.mxu0 0
      %1963 = vmatmul.mubr.bf16.gmra.mrb[0].mxu0 %v474
      %v1964 = vpop.f32.mrb[0].mxu0
      %v1965 = vadd.f32 0.0, %v1964
      %v1966 = vpop.f32.mrb[0].mxu0
      %v1967 = vpop.f32.mrb[0].mxu0
      %v1968 = vadd.f32 0.0, %v1967
      %v1969 = vpop.f32.mrb[0].mxu0
      %1970 = vmatprep.mubr.bf16.mxu0 0
      %1971 = vmatmul.mubr.bf16.gmra.mrb[0].mxu0 %v476
      %v1972 = vpop.f32.mrb[0].mxu0
      %v1973 = vadd.f32 0.0, %v1972
      %v1974 = vpop.f32.mrb[0].mxu0
      %v1975 = vpop.f32.mrb[0].mxu0
      %v1976 = vadd.f32 0.0, %v1975
      %v1977 = vpop.f32.mrb[0].mxu0
      %1978 = vmatprep.mubr.bf16.mxu0 0
      %1979 = vmatmul.mubr.bf16.gmra.mrb[0].mxu0 %v478
      %v1980 = vpop.f32.mrb[0].mxu0
      %v1981 = vadd.f32 0.0, %v1980
      %v1982 = vpop.f32.mrb[0].mxu0
      %v1983 = vpop.f32.mrb[0].mxu0
      %v1984 = vadd.f32 0.0, %v1983
      %v1985 = vpop.f32.mrb[0].mxu0
      %1986 = vmatprep.mubr.bf16.mxu0 0
      %1987 = vmatmul.mubr.bf16.gmra.mrb[0].mxu0 %v480
      %v1988 = vpop.f32.mrb[0].mxu0
      %v1989 = vadd.f32 0.0, %v1988
      %v1990 = vpop.f32.mrb[0].mxu0
      %v1991 = vpop.f32.mrb[0].mxu0
      %v1992 = vadd.f32 0.0, %v1991
      %v1993 = vpop.f32.mrb[0].mxu0
      %1994 = vmatprep.mubr.bf16.mxu0 0
      %1995 = vmatmul.mubr.bf16.gmra.mrb[0].mxu0 %v482
      %v1996 = vpop.f32.mrb[0].mxu0
      %v1997 = vadd.f32 0.0, %v1996
      %v1998 = vpop.f32.mrb[0].mxu0
      %v1999 = vpop.f32.mrb[0].mxu0
      %v2000 = vadd.f32 0.0, %v1999
      %v2001 = vpop.f32.mrb[0].mxu0
      %2002 = vmatprep.mubr.bf16.mxu0 0
      %2003 = vmatmul.mubr.bf16.gmra.mrb[0].mxu0 %v484
      %v2004 = vpop.f32.mrb[0].mxu0
      %v2005 = vadd.f32 0.0, %v2004
      %v2006 = vpop.f32.mrb[0].mxu0
      %v2007 = vpop.f32.mrb[0].mxu0
      %v2008 = vadd.f32 0.0, %v2007
      %v2009 = vpop.f32.mrb[0].mxu0
      %2010 = vmatprep.mubr.bf16.mxu0 0
      %2011 = vmatmul.mubr.bf16.gmra.mrb[0].mxu0 %v486
      %v2012 = vpop.f32.mrb[0].mxu0
      %v2013 = vadd.f32 0.0, %v2012
      %v2014 = vpop.f32.mrb[0].mxu0
      %v2015 = vpop.f32.mrb[0].mxu0
      %v2016 = vadd.f32 0.0, %v2015
      %v2017 = vpop.f32.mrb[0].mxu0
      %2018 = vmatprep.mubr.bf16.mxu0 0
      %2019 = vmatmul.mubr.bf16.gmra.mrb[0].mxu0 %v488
      %v2020 = vpop.f32.mrb[0].mxu0
      %v2021 = vadd.f32 0.0, %v2020
      %v2022 = vpop.f32.mrb[0].mxu0
      %v2023 = vpop.f32.mrb[0].mxu0
      %v2024 = vadd.f32 0.0, %v2023
      %v2025 = vpop.f32.mrb[0].mxu0
      %2026 = vmatprep.mubr.bf16.mxu0 0
      %2027 = vmatmul.mubr.bf16.gmra.mrb[0].mxu0 %v490
      %v2028 = vpop.f32.mrb[0].mxu0
      %v2029 = vadd.f32 0.0, %v2028
      %v2030 = vpop.f32.mrb[0].mxu0
      %v2031 = vpop.f32.mrb[0].mxu0
      %v2032 = vadd.f32 0.0, %v2031
      %v2033 = vpop.f32.mrb[0].mxu0
      %2034 = vmatprep.mubr.bf16.mxu0 0
      %2035 = vmatmul.mubr.bf16.gmra.mrb[0].mxu0 %v492
      %v2036 = vpop.f32.mrb[0].mxu0
      %v2037 = vadd.f32 0.0, %v2036
      %v2038 = vpop.f32.mrb[0].mxu0
      %v2039 = vpop.f32.mrb[0].mxu0
      %v2040 = vadd.f32 0.0, %v2039
      %v2041 = vpop.f32.mrb[0].mxu0
      %2042 = vmatprep.mubr.bf16.mxu0 0
      %2043 = vmatmul.mubr.bf16.gmra.mrb[0].mxu0 %v494
      %v2044 = vpop.f32.mrb[0].mxu0
      %v2045 = vadd.f32 0.0, %v2044
      %v2046 = vpop.f32.mrb[0].mxu0
      %v2047 = vpop.f32.mrb[0].mxu0
      %v2048 = vadd.f32 0.0, %v2047
      %v2049 = vpop.f32.mrb[0].mxu0
      %2050 = vmatprep.mubr.bf16.mxu0 0
      %2051 = vmatmul.mubr.bf16.gmra.mrb[0].mxu0 %v496
      %v2052 = vpop.f32.mrb[0].mxu0
      %v2053 = vadd.f32 0.0, %v2052
      %v2054 = vpop.f32.mrb[0].mxu0
      %v2055 = vpop.f32.mrb[0].mxu0
      %v2056 = vadd.f32 0.0, %v2055
      %v2057 = vpop.f32.mrb[0].mxu0
      %2058 = vmatprep.mubr.bf16.mxu0 0
      %2059 = vmatmul.mubr.bf16.gmra.mrb[0].mxu0 %v498
      %v2060 = vpop.f32.mrb[0].mxu0
      %v2061 = vadd.f32 0.0, %v2060
      %v2062 = vpop.f32.mrb[0].mxu0
      %v2063 = vpop.f32.mrb[0].mxu0
      %v2064 = vadd.f32 0.0, %v2063
      %v2065 = vpop.f32.mrb[0].mxu0
      %2066 = vmatprep.mubr.bf16.mxu0 0
      %2067 = vmatmul.mubr.bf16.gmra.mrb[0].mxu0 %v1320
      %v2068 = vpop.f32.mrb[0].mxu0
      %v2069 = vadd.f32 0.0, %v2068
      %v2070 = vpop.f32.mrb[0].mxu0
      %v2071 = vpop.f32.mrb[0].mxu0
      %v2072 = vadd.f32 0.0, %v2071
      %v2073 = vpop.f32.mrb[0].mxu0
      %2074 = vmatprep.mubr.bf16.mxu0 0
      %2075 = vmatmul.mubr.bf16.gmra.mrb[0].mxu0 %v498
      %v2076 = vpop.f32.mrb[0].mxu0
      %v2077 = vadd.f32 0.0, %v2076
      %v2078 = vpop.f32.mrb[0].mxu0
      %v2079 = vpop.f32.mrb[0].mxu0
      %v2080 = vadd.f32 0.0, %v2079
      %v2081 = vpop.f32.mrb[0].mxu0
      %2082 = vdwg.mxu0
      %v2083 = vadd.f32 %v1885, %v1957
      %v2084 = vadd.f32 %v1886, %v1960
      %v2085 = vadd.f32 %v1887, %v1965
      %v2086 = vadd.f32 %v1888, %v1968
      %v2087 = vadd.f32 %v1889, %v1973
      %v2088 = vadd.f32 %v1890, %v1976
      %v2089 = vadd.f32 %v1891, %v1981
      %v2090 = vadd.f32 %v1892, %v1984
      %v2091 = vadd.f32 %v1893, %v1989
      %v2092 = vadd.f32 %v1894, %v1992
      %v2093 = vadd.f32 %v1895, %v1997
      %v2094 = vadd.f32 %v1896, %v2000
      %v2095 = vadd.f32 %v1897, %v2005
      %v2096 = vadd.f32 %v1898, %v2008
      %v2097 = vadd.f32 %v1899, %v2013
      %v2098 = vadd.f32 %v1900, %v2016
      %v2099 = vadd.f32 %v1901, %v2021
      %v2100 = vadd.f32 %v1902, %v2024
      %v2101 = vadd.f32 %v1903, %v2029
      %v2102 = vadd.f32 %v1904, %v2032
      %v2103 = vadd.f32 %v1905, %v2037
      %v2104 = vadd.f32 %v1906, %v2040
      %v2105 = vadd.f32 %v1907, %v2045
      %v2106 = vadd.f32 %v1908, %v2048
      %v2107 = vadd.f32 %v1909, %v2053
      %v2108 = vadd.f32 %v1910, %v2056
      %v2109 = vadd.f32 %v1911, %v2061
      %v2110 = vadd.f32 %v1912, %v2064
      %v2111 = vadd.f32 %v1913, %v2069
      %v2112 = vadd.f32 %v1914, %v2072
      %v2113 = vadd.f32 %v1915, %v2077
      %v2114 = vadd.f32 %v1916, %v2080
      %s2115 = scalar_lea.vmem %s1, 16
      %v2116 = vld [vmem:[%s2115] sm:$0x3]
      %v2118 = vsel %vm500, %v2116, 0
      %2120 = vmatprep.subr.bf16.mxu0 0
      %2121 = vmatpush1.bf16.msra.mxu0 %v2118
      %2122 = vmatprep.subr.bf16.mxu0 0
      %2123 = vmatpush1.bf16.msra.mxu0 0
      %2124 = vmatprep.subr.bf16.mxu0 0
      %2125 = vmatpush1.bf16.msra.mxu0 0
      %2126 = vmatprep.subr.bf16.mxu0 0
      %2127 = vmatpush1.bf16.msra.mxu0 0
      %2128 = vmatprep.subr.bf16.mxu0 0
      %2129 = vmatpush1.bf16.msra.mxu0 0
      %2130 = vmatprep.subr.bf16.mxu0 0
      %2131 = vmatpush1.bf16.msra.mxu0 0
      %2132 = vmatprep.subr.bf16.mxu0 0
      %2133 = vmatpush1.bf16.msra.mxu0 0
      %2134 = vmatprep.subr.bf16.mxu0 0
      %2135 = vmatpush1.bf16.msra.mxu0 0
      %2136 = vmatprep.subr.bf16.mxu0 0
      %2137 = vmatpush1.bf16.msra.mxu0 0
      %2138 = vmatprep.subr.bf16.mxu0 0
      %2139 = vmatpush1.bf16.msra.mxu0 0
      %2140 = vmatprep.subr.bf16.mxu0 0
      %2141 = vmatpush1.bf16.msra.mxu0 0
      %2142 = vmatprep.subr.bf16.mxu0 0
      %2143 = vmatpush1.bf16.msra.mxu0 0
      %2144 = vmatprep.subr.bf16.mxu0 0
      %2145 = vmatpush1.bf16.msra.mxu0 0
      %2146 = vmatprep.subr.bf16.mxu0 0
      %2147 = vmatpush1.bf16.msra.mxu0 0
      %2148 = vmatprep.subr.bf16.mxu0 0
      %2149 = vmatpush1.bf16.msra.mxu0 0
      %2150 = vmatprep.subr.bf16.mxu0 0
      %2151 = vmatpush1.bf16.msra.mxu0 0
      %2152 = vmatprep.mubr.bf16.mxu0 0
      %2153 = vmatmul.mubr.bf16.gmra.mrb[0].mxu0 %v877
      %v2154 = vpop.f32.mrb[0].mxu0
      %v2155 = vadd.f32 0.0, %v2154
      %v2156 = vpop.f32.mrb[0].mxu0
      %v2157 = vpop.f32.mrb[0].mxu0
      %v2158 = vadd.f32 0.0, %v2157
      %v2159 = vpop.f32.mrb[0].mxu0
      %2160 = vmatprep.mubr.bf16.mxu0 0
      %2161 = vmatmul.mubr.bf16.gmra.mrb[0].mxu0 %v883
      %v2162 = vpop.f32.mrb[0].mxu0
      %v2163 = vadd.f32 0.0, %v2162
      %v2164 = vpop.f32.mrb[0].mxu0
      %v2165 = vpop.f32.mrb[0].mxu0
      %v2166 = vadd.f32 0.0, %v2165
      %v2167 = vpop.f32.mrb[0].mxu0
      %2168 = vmatprep.mubr.bf16.mxu0 0
      %2169 = vmatmul.mubr.bf16.gmra.mrb[0].mxu0 %v886
      %v2170 = vpop.f32.mrb[0].mxu0
      %v2171 = vadd.f32 0.0, %v2170
      %v2172 = vpop.f32.mrb[0].mxu0
      %v2173 = vpop.f32.mrb[0].mxu0
      %v2174 = vadd.f32 0.0, %v2173
      %v2175 = vpop.f32.mrb[0].mxu0
      %2176 = vmatprep.mubr.bf16.mxu0 0
      %2177 = vmatmul.mubr.bf16.gmra.mrb[0].mxu0 %v889
      %v2178 = vpop.f32.mrb[0].mxu0
      %v2179 = vadd.f32 0.0, %v2178
      %v2180 = vpop.f32.mrb[0].mxu0
      %v2181 = vpop.f32.mrb[0].mxu0
      %v2182 = vadd.f32 0.0, %v2181
      %v2183 = vpop.f32.mrb[0].mxu0
      %2184 = vmatprep.mubr.bf16.mxu0 0
      %2185 = vmatmul.mubr.bf16.gmra.mrb[0].mxu0 %v892
      %v2186 = vpop.f32.mrb[0].mxu0
      %v2187 = vadd.f32 0.0, %v2186
      %v2188 = vpop.f32.mrb[0].mxu0
      %v2189 = vpop.f32.mrb[0].mxu0
      %v2190 = vadd.f32 0.0, %v2189
      %v2191 = vpop.f32.mrb[0].mxu0
      %2192 = vmatprep.mubr.bf16.mxu0 0
      %2193 = vmatmul.mubr.bf16.gmra.mrb[0].mxu0 %v895
      %v2194 = vpop.f32.mrb[0].mxu0
      %v2195 = vadd.f32 0.0, %v2194
      %v2196 = vpop.f32.mrb[0].mxu0
      %v2197 = vpop.f32.mrb[0].mxu0
      %v2198 = vadd.f32 0.0, %v2197
      %v2199 = vpop.f32.mrb[0].mxu0
      %2200 = vmatprep.mubr.bf16.mxu0 0
      %2201 = vmatmul.mubr.bf16.gmra.mrb[0].mxu0 %v898
      %v2202 = vpop.f32.mrb[0].mxu0
      %v2203 = vadd.f32 0.0, %v2202
      %v2204 = vpop.f32.mrb[0].mxu0
      %v2205 = vpop.f32.mrb[0].mxu0
      %v2206 = vadd.f32 0.0, %v2205
      %v2207 = vpop.f32.mrb[0].mxu0
      %2208 = vmatprep.mubr.bf16.mxu0 0
      %2209 = vmatmul.mubr.bf16.gmra.mrb[0].mxu0 %v901
      %v2210 = vpop.f32.mrb[0].mxu0
      %v2211 = vadd.f32 0.0, %v2210
      %v2212 = vpop.f32.mrb[0].mxu0
      %v2213 = vpop.f32.mrb[0].mxu0
      %v2214 = vadd.f32 0.0, %v2213
      %v2215 = vpop.f32.mrb[0].mxu0
      %2216 = vmatprep.mubr.bf16.mxu0 0
      %2217 = vmatmul.mubr.bf16.gmra.mrb[0].mxu0 %v904
      %v2218 = vpop.f32.mrb[0].mxu0
      %v2219 = vadd.f32 0.0, %v2218
      %v2220 = vpop.f32.mrb[0].mxu0
      %v2221 = vpop.f32.mrb[0].mxu0
      %v2222 = vadd.f32 0.0, %v2221
      %v2223 = vpop.f32.mrb[0].mxu0
      %2224 = vmatprep.mubr.bf16.mxu0 0
      %2225 = vmatmul.mubr.bf16.gmra.mrb[0].mxu0 %v907
      %v2226 = vpop.f32.mrb[0].mxu0
      %v2227 = vadd.f32 0.0, %v2226
      %v2228 = vpop.f32.mrb[0].mxu0
      %v2229 = vpop.f32.mrb[0].mxu0
      %v2230 = vadd.f32 0.0, %v2229
      %v2231 = vpop.f32.mrb[0].mxu0
      %2232 = vmatprep.mubr.bf16.mxu0 0
      %2233 = vmatmul.mubr.bf16.gmra.mrb[0].mxu0 %v910
      %v2234 = vpop.f32.mrb[0].mxu0
      %v2235 = vadd.f32 0.0, %v2234
      %v2236 = vpop.f32.mrb[0].mxu0
      %v2237 = vpop.f32.mrb[0].mxu0
      %v2238 = vadd.f32 0.0, %v2237
      %v2239 = vpop.f32.mrb[0].mxu0
      %2240 = vmatprep.mubr.bf16.mxu0 0
      %2241 = vmatmul.mubr.bf16.gmra.mrb[0].mxu0 %v913
      %v2242 = vpop.f32.mrb[0].mxu0
      %v2243 = vadd.f32 0.0, %v2242
      %v2244 = vpop.f32.mrb[0].mxu0
      %v2245 = vpop.f32.mrb[0].mxu0
      %v2246 = vadd.f32 0.0, %v2245
      %v2247 = vpop.f32.mrb[0].mxu0
      %2248 = vmatprep.mubr.bf16.mxu0 0
      %2249 = vmatmul.mubr.bf16.gmra.mrb[0].mxu0 %v916
      %v2250 = vpop.f32.mrb[0].mxu0
      %v2251 = vadd.f32 0.0, %v2250
      %v2252 = vpop.f32.mrb[0].mxu0
      %v2253 = vpop.f32.mrb[0].mxu0
      %v2254 = vadd.f32 0.0, %v2253
      %v2255 = vpop.f32.mrb[0].mxu0
      %2256 = vmatprep.mubr.bf16.mxu0 0
      %2257 = vmatmul.mubr.bf16.gmra.mrb[0].mxu0 %v919
      %v2258 = vpop.f32.mrb[0].mxu0
      %v2259 = vadd.f32 0.0, %v2258
      %v2260 = vpop.f32.mrb[0].mxu0
      %v2261 = vpop.f32.mrb[0].mxu0
      %v2262 = vadd.f32 0.0, %v2261
      %v2263 = vpop.f32.mrb[0].mxu0
      %2264 = vmatprep.mubr.bf16.mxu0 0
      %2265 = vmatmul.mubr.bf16.gmra.mrb[0].mxu0 %v1521
      %v2266 = vpop.f32.mrb[0].mxu0
      %v2267 = vadd.f32 0.0, %v2266
      %v2268 = vpop.f32.mrb[0].mxu0
      %v2269 = vpop.f32.mrb[0].mxu0
      %v2270 = vadd.f32 0.0, %v2269
      %v2271 = vpop.f32.mrb[0].mxu0
      %2272 = vmatprep.mubr.bf16.mxu0 0
      %2273 = vmatmul.mubr.bf16.gmra.mrb[0].mxu0 %v919
      %v2274 = vpop.f32.mrb[0].mxu0
      %v2275 = vadd.f32 0.0, %v2274
      %v2276 = vpop.f32.mrb[0].mxu0
      %v2277 = vpop.f32.mrb[0].mxu0
      %v2278 = vadd.f32 0.0, %v2277
      %v2279 = vpop.f32.mrb[0].mxu0
      %2280 = vdwg.mxu0
      %v2281 = vadd.f32 %v2083, %v2155
      %v2282 = vadd.f32 %v2084, %v2158
      %v2283 = vadd.f32 %v2085, %v2163
      %v2284 = vadd.f32 %v2086, %v2166
      %v2285 = vadd.f32 %v2087, %v2171
      %v2286 = vadd.f32 %v2088, %v2174
      %v2287 = vadd.f32 %v2089, %v2179
      %v2288 = vadd.f32 %v2090, %v2182
      %v2289 = vadd.f32 %v2091, %v2187
      %v2290 = vadd.f32 %v2092, %v2190
      %v2291 = vadd.f32 %v2093, %v2195
      %v2292 = vadd.f32 %v2094, %v2198
      %v2293 = vadd.f32 %v2095, %v2203
      %v2294 = vadd.f32 %v2096, %v2206
      %v2295 = vadd.f32 %v2097, %v2211
      %v2296 = vadd.f32 %v2098, %v2214
      %v2297 = vadd.f32 %v2099, %v2219
      %v2298 = vadd.f32 %v2100, %v2222
      %v2299 = vadd.f32 %v2101, %v2227
      %v2300 = vadd.f32 %v2102, %v2230
      %v2301 = vadd.f32 %v2103, %v2235
      %v2302 = vadd.f32 %v2104, %v2238
      %v2303 = vadd.f32 %v2105, %v2243
      %v2304 = vadd.f32 %v2106, %v2246
      %v2305 = vadd.f32 %v2107, %v2251
      %v2306 = vadd.f32 %v2108, %v2254
      %v2307 = vadd.f32 %v2109, %v2259
      %v2308 = vadd.f32 %v2110, %v2262
      %v2309 = vadd.f32 %v2111, %v2267
      %v2310 = vadd.f32 %v2112, %v2270
      %v2311 = vadd.f32 %v2113, %v2275
      %v2312 = vadd.f32 %v2114, %v2278
      %v2313 = vsel %vm469, %v2281, 0.0
      %v2314 = vsel %vm469, %v2282, 0.0
      %v2315 = vadd.f32 %v2313, %v2314
      %v2316 = vsel %vm469, %v2283, 0.0
      %v2317 = vadd.f32 %v2315, %v2316
      %v2318 = vsel %vm469, %v2284, 0.0
      %v2319 = vadd.f32 %v2317, %v2318
      %v2320 = vsel %vm469, %v2285, 0.0
      %v2321 = vadd.f32 %v2319, %v2320
      %v2322 = vsel %vm469, %v2286, 0.0
      %v2323 = vadd.f32 %v2321, %v2322
      %v2324 = vsel %vm469, %v2287, 0.0
      %v2325 = vadd.f32 %v2323, %v2324
      %v2326 = vsel %vm469, %v2288, 0.0
      %v2327 = vadd.f32 %v2325, %v2326
      %v2328 = vsel %vm469, %v2289, 0.0
      %v2329 = vadd.f32 %v2327, %v2328
      %v2330 = vsel %vm469, %v2290, 0.0
      %v2331 = vadd.f32 %v2329, %v2330
      %v2332 = vsel %vm469, %v2291, 0.0
      %v2333 = vadd.f32 %v2331, %v2332
      %v2334 = vsel %vm469, %v2292, 0.0
      %v2335 = vadd.f32 %v2333, %v2334
      %v2336 = vsel %vm469, %v2293, 0.0
      %v2337 = vadd.f32 %v2335, %v2336
      %v2338 = vsel %vm469, %v2294, 0.0
      %v2339 = vadd.f32 %v2337, %v2338
      %v2340 = vsel %vm469, %v2295, 0.0
      %v2341 = vadd.f32 %v2339, %v2340
      %v2342 = vsel %vm469, %v2296, 0.0
      %v2343 = vadd.f32 %v2341, %v2342
      %v2344 = vsel %vm469, %v2297, 0.0
      %v2345 = vadd.f32 %v2343, %v2344
      %v2346 = vsel %vm469, %v2298, 0.0
      %v2347 = vadd.f32 %v2345, %v2346
      %v2348 = vsel %vm469, %v2299, 0.0
      %v2349 = vadd.f32 %v2347, %v2348
      %v2350 = vsel %vm469, %v2300, 0.0
      %v2351 = vadd.f32 %v2349, %v2350
      %v2352 = vsel %vm469, %v2301, 0.0
      %v2353 = vadd.f32 %v2351, %v2352
      %v2354 = vsel %vm469, %v2302, 0.0
      %v2355 = vadd.f32 %v2353, %v2354
      %v2356 = vsel %vm469, %v2303, 0.0
      %v2357 = vadd.f32 %v2355, %v2356
      %v2358 = vsel %vm469, %v2304, 0.0
      %v2359 = vadd.f32 %v2357, %v2358
      %v2360 = vsel %vm469, %v2305, 0.0
      %v2361 = vadd.f32 %v2359, %v2360
      %v2362 = vsel %vm469, %v2306, 0.0
      %v2363 = vadd.f32 %v2361, %v2362
      %v2364 = vsel %vm469, %v2307, 0.0
      %v2365 = vadd.f32 %v2363, %v2364
      %v2366 = vsel %vm469, %v2308, 0.0
      %v2367 = vadd.f32 %v2365, %v2366
      %v2368 = vsel %vm469, %v2309, 0.0
      %v2369 = vadd.f32 %v2367, %v2368
      %v2370 = vsel %vm469, %v2310, 0.0
      %v2371 = vadd.f32 %v2369, %v2370
      %v2372 = vsel %vm469, %v2311, 0.0
      %v2373 = vadd.f32 %v2371, %v2372
      %v2374 = vsel %vm469, %v2312, 0.0
      %v2375 = vadd.f32 %v2373, %v2374
      %v2376 = vrot.slane %v2375, 4
      %v2377 = vadd.f32 %v2375, %v2376
      %v2378 = vrot.slane %v2377, 2
      %v2379 = vadd.f32 %v2377, %v2378
      %v2380 = vrot.slane %v2379, 1
      %v2381 = vadd.f32 %v2379, %v2380
      %v2382 = vmul.f32 %v2281, %v2281
      %v2383 = vmul.f32 %v2282, %v2282
      %v2384 = vmul.f32 %v2283, %v2283
      %v2385 = vmul.f32 %v2284, %v2284
      %v2386 = vmul.f32 %v2285, %v2285
      %v2387 = vmul.f32 %v2286, %v2286
      %v2388 = vmul.f32 %v2287, %v2287
      %v2389 = vmul.f32 %v2288, %v2288
      %v2390 = vmul.f32 %v2289, %v2289
      %v2391 = vmul.f32 %v2290, %v2290
      %v2392 = vmul.f32 %v2291, %v2291
      %v2393 = vmul.f32 %v2292, %v2292
      %v2394 = vmul.f32 %v2293, %v2293
      %v2395 = vmul.f32 %v2294, %v2294
      %v2396 = vmul.f32 %v2295, %v2295
      %v2397 = vmul.f32 %v2296, %v2296
      %v2398 = vmul.f32 %v2297, %v2297
      %v2399 = vmul.f32 %v2298, %v2298
      %v2400 = vmul.f32 %v2299, %v2299
      %v2401 = vmul.f32 %v2300, %v2300
      %v2402 = vmul.f32 %v2301, %v2301
      %v2403 = vmul.f32 %v2302, %v2302
      %v2404 = vmul.f32 %v2303, %v2303
      %v2405 = vmul.f32 %v2304, %v2304
      %v2406 = vmul.f32 %v2305, %v2305
      %v2407 = vmul.f32 %v2306, %v2306
      %v2408 = vmul.f32 %v2307, %v2307
      %v2409 = vmul.f32 %v2308, %v2308
      %v2410 = vmul.f32 %v2309, %v2309
      %v2411 = vmul.f32 %v2310, %v2310
      %v2412 = vmul.f32 %v2311, %v2311
      %v2413 = vmul.f32 %v2312, %v2312
      %v2414 = vsel %vm469, %v2382, 0.0
      %v2415 = vsel %vm469, %v2383, 0.0
      %v2416 = vadd.f32 %v2414, %v2415
      %v2417 = vsel %vm469, %v2384, 0.0
      %v2418 = vadd.f32 %v2416, %v2417
      %v2419 = vsel %vm469, %v2385, 0.0
      %v2420 = vadd.f32 %v2418, %v2419
      %v2421 = vsel %vm469, %v2386, 0.0
      %v2422 = vadd.f32 %v2420, %v2421
      %v2423 = vsel %vm469, %v2387, 0.0
      %v2424 = vadd.f32 %v2422, %v2423
      %v2425 = vsel %vm469, %v2388, 0.0
      %v2426 = vadd.f32 %v2424, %v2425
      %v2427 = vsel %vm469, %v2389, 0.0
      %v2428 = vadd.f32 %v2426, %v2427
      %v2429 = vsel %vm469, %v2390, 0.0
      %v2430 = vadd.f32 %v2428, %v2429
      %v2431 = vsel %vm469, %v2391, 0.0
      %v2432 = vadd.f32 %v2430, %v2431
      %v2433 = vsel %vm469, %v2392, 0.0
      %v2434 = vadd.f32 %v2432, %v2433
      %v2435 = vsel %vm469, %v2393, 0.0
      %v2436 = vadd.f32 %v2434, %v2435
      %v2437 = vsel %vm469, %v2394, 0.0
      %v2438 = vadd.f32 %v2436, %v2437
      %v2439 = vsel %vm469, %v2395, 0.0
      %v2440 = vadd.f32 %v2438, %v2439
      %v2441 = vsel %vm469, %v2396, 0.0
      %v2442 = vadd.f32 %v2440, %v2441
      %v2443 = vsel %vm469, %v2397, 0.0
      %v2444 = vadd.f32 %v2442, %v2443
      %v2445 = vsel %vm469, %v2398, 0.0
      %v2446 = vadd.f32 %v2444, %v2445
      %v2447 = vsel %vm469, %v2399, 0.0
      %v2448 = vadd.f32 %v2446, %v2447
      %v2449 = vsel %vm469, %v2400, 0.0
      %v2450 = vadd.f32 %v2448, %v2449
      %v2451 = vsel %vm469, %v2401, 0.0
      %v2452 = vadd.f32 %v2450, %v2451
      %v2453 = vsel %vm469, %v2402, 0.0
      %v2454 = vadd.f32 %v2452, %v2453
      %v2455 = vsel %vm469, %v2403, 0.0
      %v2456 = vadd.f32 %v2454, %v2455
      %v2457 = vsel %vm469, %v2404, 0.0
      %v2458 = vadd.f32 %v2456, %v2457
      %v2459 = vsel %vm469, %v2405, 0.0
      %v2460 = vadd.f32 %v2458, %v2459
      %v2461 = vsel %vm469, %v2406, 0.0
      %v2462 = vadd.f32 %v2460, %v2461
      %v2463 = vsel %vm469, %v2407, 0.0
      %v2464 = vadd.f32 %v2462, %v2463
      %v2465 = vsel %vm469, %v2408, 0.0
      %v2466 = vadd.f32 %v2464, %v2465
      %v2467 = vsel %vm469, %v2409, 0.0
      %v2468 = vadd.f32 %v2466, %v2467
      %v2469 = vsel %vm469, %v2410, 0.0
      %v2470 = vadd.f32 %v2468, %v2469
      %v2471 = vsel %vm469, %v2411, 0.0
      %v2472 = vadd.f32 %v2470, %v2471
      %v2473 = vsel %vm469, %v2412, 0.0
      %v2474 = vadd.f32 %v2472, %v2473
      %v2475 = vsel %vm469, %v2413, 0.0
      %v2476 = vadd.f32 %v2474, %v2475
      %v2477 = vrot.slane %v2476, 4
      %v2478 = vadd.f32 %v2476, %v2477
      %v2479 = vrot.slane %v2478, 2
      %v2480 = vadd.f32 %v2478, %v2479
      %v2481 = vrot.slane %v2480, 1
      %v2482 = vadd.f32 %v2480, %v2481
      %v2483 = vmul.f32 %v2381, 0.00390625
      %v2484 = vmul.f32 %v2482, 0.00390625
      %v2485 = vmul.f32 %v2483, %v2483
      %v2486 = vsub.f32 %v2484, %v2485
      %v2487 = vmax.f32 %v2486, 0.0
      %v2488 = vsub.f32 %v2281, %v2483
      %v2489 = vsub.f32 %v2282, %v2483
      %v2490 = vsub.f32 %v2283, %v2483
      %v2491 = vsub.f32 %v2284, %v2483
      %v2492 = vsub.f32 %v2285, %v2483
      %v2493 = vsub.f32 %v2286, %v2483
      %v2494 = vsub.f32 %v2287, %v2483
      %v2495 = vsub.f32 %v2288, %v2483
      %v2496 = vsub.f32 %v2289, %v2483
      %v2497 = vsub.f32 %v2290, %v2483
      %v2498 = vsub.f32 %v2291, %v2483
      %v2499 = vsub.f32 %v2292, %v2483
      %v2500 = vsub.f32 %v2293, %v2483
      %v2501 = vsub.f32 %v2294, %v2483
      %v2502 = vsub.f32 %v2295, %v2483
      %v2503 = vsub.f32 %v2296, %v2483
      %v2504 = vsub.f32 %v2297, %v2483
      %v2505 = vsub.f32 %v2298, %v2483
      %v2506 = vsub.f32 %v2299, %v2483
      %v2507 = vsub.f32 %v2300, %v2483
      %v2508 = vsub.f32 %v2301, %v2483
      %v2509 = vsub.f32 %v2302, %v2483
      %v2510 = vsub.f32 %v2303, %v2483
      %v2511 = vsub.f32 %v2304, %v2483
      %v2512 = vsub.f32 %v2305, %v2483
      %v2513 = vsub.f32 %v2306, %v2483
      %v2514 = vsub.f32 %v2307, %v2483
      %v2515 = vsub.f32 %v2308, %v2483
      %v2516 = vsub.f32 %v2309, %v2483
      %v2517 = vsub.f32 %v2310, %v2483
      %v2518 = vsub.f32 %v2311, %v2483
      %v2519 = vsub.f32 %v2312, %v2483
      %v2520 = vadd.f32 %v2487, 1e-05
      %v2521 = vrsqrt.pop %v2520
      %v2522 = vmul.f32 %v2488, %v2521
      %v2523 = vmul.f32 %v2489, %v2521
      %v2524 = vmul.f32 %v2490, %v2521
      %v2525 = vmul.f32 %v2491, %v2521
      %v2526 = vmul.f32 %v2492, %v2521
      %v2527 = vmul.f32 %v2493, %v2521
      %v2528 = vmul.f32 %v2494, %v2521
      %v2529 = vmul.f32 %v2495, %v2521
      %v2530 = vmul.f32 %v2496, %v2521
      %v2531 = vmul.f32 %v2497, %v2521
      %v2532 = vmul.f32 %v2498, %v2521
      %v2533 = vmul.f32 %v2499, %v2521
      %v2534 = vmul.f32 %v2500, %v2521
      %v2535 = vmul.f32 %v2501, %v2521
      %v2536 = vmul.f32 %v2502, %v2521
      %v2537 = vmul.f32 %v2503, %v2521
      %v2538 = vmul.f32 %v2504, %v2521
      %v2539 = vmul.f32 %v2505, %v2521
      %v2540 = vmul.f32 %v2506, %v2521
      %v2541 = vmul.f32 %v2507, %v2521
      %v2542 = vmul.f32 %v2508, %v2521
      %v2543 = vmul.f32 %v2509, %v2521
      %v2544 = vmul.f32 %v2510, %v2521
      %v2545 = vmul.f32 %v2511, %v2521
      %v2546 = vmul.f32 %v2512, %v2521
      %v2547 = vmul.f32 %v2513, %v2521
      %v2548 = vmul.f32 %v2514, %v2521
      %v2549 = vmul.f32 %v2515, %v2521
      %v2550 = vmul.f32 %v2516, %v2521
      %v2551 = vmul.f32 %v2517, %v2521
      %v2552 = vmul.f32 %v2518, %v2521
      %v2553 = vmul.f32 %v2519, %v2521
      %v2554 = vmax.f32 %v2522, 0.0
      %v2555 = vmax.f32 %v2523, 0.0
      %v2556 = vmax.f32 %v2524, 0.0
      %v2557 = vmax.f32 %v2525, 0.0
      %v2558 = vmax.f32 %v2526, 0.0
      %v2559 = vmax.f32 %v2527, 0.0
      %v2560 = vmax.f32 %v2528, 0.0
      %v2561 = vmax.f32 %v2529, 0.0
      %v2562 = vmax.f32 %v2530, 0.0
      %v2563 = vmax.f32 %v2531, 0.0
      %v2564 = vmax.f32 %v2532, 0.0
      %v2565 = vmax.f32 %v2533, 0.0
      %v2566 = vmax.f32 %v2534, 0.0
      %v2567 = vmax.f32 %v2535, 0.0
      %v2568 = vmax.f32 %v2536, 0.0
      %v2569 = vmax.f32 %v2537, 0.0
      %v2570 = vmax.f32 %v2538, 0.0
      %v2571 = vmax.f32 %v2539, 0.0
      %v2572 = vmax.f32 %v2540, 0.0
      %v2573 = vmax.f32 %v2541, 0.0
      %v2574 = vmax.f32 %v2542, 0.0
      %v2575 = vmax.f32 %v2543, 0.0
      %v2576 = vmax.f32 %v2544, 0.0
      %v2577 = vmax.f32 %v2545, 0.0
      %v2578 = vmax.f32 %v2546, 0.0
      %v2579 = vmax.f32 %v2547, 0.0
      %v2580 = vmax.f32 %v2548, 0.0
      %v2581 = vmax.f32 %v2549, 0.0
      %v2582 = vmax.f32 %v2550, 0.0
      %v2583 = vmax.f32 %v2551, 0.0
      %v2584 = vmax.f32 %v2552, 0.0
      %v2585 = vmax.f32 %v2553, 0.0
      %v2586 = vpack.c.bf16 %v2555, %v2554
      %v2587 = vpack.c.bf16 %v2557, %v2556
      %v2588 = vpack.c.bf16 %v2559, %v2558
      %v2589 = vpack.c.bf16 %v2561, %v2560
      %v2590 = vpack.c.bf16 %v2563, %v2562
      %v2591 = vpack.c.bf16 %v2565, %v2564
      %v2592 = vpack.c.bf16 %v2567, %v2566
      %v2593 = vpack.c.bf16 %v2569, %v2568
      %v2594 = vpack.c.bf16 %v2571, %v2570
      %v2595 = vpack.c.bf16 %v2573, %v2572
      %v2596 = vpack.c.bf16 %v2575, %v2574
      %v2597 = vpack.c.bf16 %v2577, %v2576
      %v2598 = vpack.c.bf16 %v2579, %v2578
      %v2599 = vpack.c.bf16 %v2581, %v2580
      %v2600 = vpack.c.bf16 %v2583, %v2582
      %v2601 = vpack.c.bf16 %v2585, %v2584
      %v2603 = vshrl.u32 %v2587, 16
      %v2606 = vshrl.u32 %v2586, 16
      %v2609 = vshrl.u32 %v2588, 16
      %v2612 = vshrl.u32 %v2589, 16
      %v2615 = vshrl.u32 %v2590, 16
      %v2618 = vshrl.u32 %v2591, 16
      %v2621 = vshrl.u32 %v2592, 16
      %v2624 = vshrl.u32 %v2593, 16
      %v2627 = vshrl.u32 %v2594, 16
      %v2630 = vshrl.u32 %v2595, 16
      %v2633 = vshrl.u32 %v2596, 16
      %v2636 = vshrl.u32 %v2597, 16
      %v2639 = vshrl.u32 %v2598, 16
      %v2642 = vshrl.u32 %v2599, 16
      %v2645 = vshrl.u32 %v2600, 16
      %v2648 = vshrl.u32 %v2601, 16
      %v2666 = vrot.slane %v2603, 7
      %v2667 = vshll.u32 %v2587, 16
      %v2669 = vor.u32 %v2666, %v2667
      %v2670 = vrot.slane %v2606, 7
      %v2671 = vshll.u32 %v2586, 16
      %v2673 = vor.u32 %v2670, %v2671
      %v2674 = vrot.slane %v2609, 7
      %v2675 = vshll.u32 %v2588, 16
      %v2677 = vor.u32 %v2674, %v2675
      %v2678 = vrot.slane %v2612, 7
      %v2679 = vshll.u32 %v2589, 16
      %v2681 = vor.u32 %v2678, %v2679
      %v2682 = vrot.slane %v2615, 7
      %v2683 = vshll.u32 %v2590, 16
      %v2685 = vor.u32 %v2682, %v2683
      %v2686 = vrot.slane %v2618, 7
      %v2687 = vshll.u32 %v2591, 16
      %v2689 = vor.u32 %v2686, %v2687
      %v2690 = vrot.slane %v2621, 7
      %v2691 = vshll.u32 %v2592, 16
      %v2693 = vor.u32 %v2690, %v2691
      %v2694 = vrot.slane %v2624, 7
      %v2695 = vshll.u32 %v2593, 16
      %v2697 = vor.u32 %v2694, %v2695
      %v2698 = vrot.slane %v2627, 7
      %v2699 = vshll.u32 %v2594, 16
      %v2701 = vor.u32 %v2698, %v2699
      %v2702 = vrot.slane %v2630, 7
      %v2703 = vshll.u32 %v2595, 16
      %v2705 = vor.u32 %v2702, %v2703
      %v2706 = vrot.slane %v2633, 7
      %v2707 = vshll.u32 %v2596, 16
      %v2709 = vor.u32 %v2706, %v2707
      %v2710 = vrot.slane %v2636, 7
      %v2711 = vshll.u32 %v2597, 16
      %v2713 = vor.u32 %v2710, %v2711
      %v2714 = vrot.slane %v2639, 7
      %v2715 = vshll.u32 %v2598, 16
      %v2717 = vor.u32 %v2714, %v2715
      %v2718 = vrot.slane %v2642, 7
      %v2719 = vshll.u32 %v2599, 16
      %v2721 = vor.u32 %v2718, %v2719
      %v2722 = vrot.slane %v2645, 7
      %v2723 = vshll.u32 %v2600, 16
      %v2725 = vor.u32 %v2722, %v2723
      %v2726 = vrot.slane %v2648, 7
      %v2727 = vshll.u32 %v2601, 16
      %v2729 = vor.u32 %v2726, %v2727
      %v2746 = vsel %vm366, %v2603, %v2669
      %v2747 = vsel %vm366, %v2606, %v2673
      %v2748 = vsel %vm366, %v2609, %v2677
      %v2749 = vsel %vm366, %v2612, %v2681
      %v2750 = vsel %vm366, %v2615, %v2685
      %v2751 = vsel %vm366, %v2618, %v2689
      %v2752 = vsel %vm366, %v2621, %v2693
      %v2753 = vsel %vm366, %v2624, %v2697
      %v2754 = vsel %vm366, %v2627, %v2701
      %v2755 = vsel %vm366, %v2630, %v2705
      %v2756 = vsel %vm366, %v2633, %v2709
      %v2757 = vsel %vm366, %v2636, %v2713
      %v2758 = vsel %vm366, %v2639, %v2717
      %v2759 = vsel %vm366, %v2642, %v2721
      %v2760 = vsel %vm366, %v2645, %v2725
      %v2761 = vsel %vm366, %v2648, %v2729
      %v2762 = vrot.slane %v2667, 1
      %v2763 = vor.u32 %v2603, %v2762
      %v2764 = vrot.slane %v2671, 1
      %v2765 = vor.u32 %v2606, %v2764
      %v2766 = vrot.slane %v2675, 1
      %v2767 = vor.u32 %v2609, %v2766
      %v2768 = vrot.slane %v2679, 1
      %v2769 = vor.u32 %v2612, %v2768
      %v2770 = vrot.slane %v2683, 1
      %v2771 = vor.u32 %v2615, %v2770
      %v2772 = vrot.slane %v2687, 1
      %v2773 = vor.u32 %v2618, %v2772
      %v2774 = vrot.slane %v2691, 1
      %v2775 = vor.u32 %v2621, %v2774
      %v2776 = vrot.slane %v2695, 1
      %v2777 = vor.u32 %v2624, %v2776
      %v2778 = vrot.slane %v2699, 1
      %v2779 = vor.u32 %v2627, %v2778
      %v2780 = vrot.slane %v2703, 1
      %v2781 = vor.u32 %v2630, %v2780
      %v2782 = vrot.slane %v2707, 1
      %v2783 = vor.u32 %v2633, %v2782
      %v2784 = vrot.slane %v2711, 1
      %v2785 = vor.u32 %v2636, %v2784
      %v2786 = vrot.slane %v2715, 1
      %v2787 = vor.u32 %v2639, %v2786
      %v2788 = vrot.slane %v2719, 1
      %v2789 = vor.u32 %v2642, %v2788
      %v2790 = vrot.slane %v2723, 1
      %v2791 = vor.u32 %v2645, %v2790
      %v2792 = vrot.slane %v2727, 1
      %v2793 = vor.u32 %v2648, %v2792
      %v2826 = vsel %vm449, %v2763, %v2667
      %v2827 = vsel %vm449, %v2765, %v2671
      %v2828 = vsel %vm449, %v2767, %v2675
      %v2829 = vsel %vm449, %v2769, %v2679
      %v2830 = vsel %vm449, %v2771, %v2683
      %v2831 = vsel %vm449, %v2773, %v2687
      %v2832 = vsel %vm449, %v2775, %v2691
      %v2833 = vsel %vm449, %v2777, %v2695
      %v2834 = vsel %vm449, %v2779, %v2699
      %v2835 = vsel %vm449, %v2781, %v2703
      %v2836 = vsel %vm449, %v2783, %v2707
      %v2837 = vsel %vm449, %v2785, %v2711
      %v2838 = vsel %vm449, %v2787, %v2715
      %v2839 = vsel %vm449, %v2789, %v2719
      %v2840 = vsel %vm449, %v2791, %v2723
      %v2841 = vsel %vm449, %v2793, %v2727
      %v2842 = vld [vmem:[%s2] sm:$0x3]
      %s2843 = scalar_lea.vmem %s2, 2
      %v2844 = vld [vmem:[%s2843] sm:$0x3]
      %v2845 = vsel %vm469, %v2587, 0
      %v2847 = vsel %vm469, %v2586, 0
      %v2849 = vsel %vm469, %v2588, 0
      %v2851 = vsel %vm469, %v2589, 0
      %v2853 = vsel %vm469, %v2590, 0
      %v2855 = vsel %vm469, %v2591, 0
      %v2857 = vsel %vm469, %v2592, 0
      %v2859 = vsel %vm469, %v2593, 0
      %v2861 = vsel %vm469, %v2594, 0
      %v2863 = vsel %vm469, %v2595, 0
      %v2865 = vsel %vm469, %v2596, 0
      %v2867 = vsel %vm469, %v2597, 0
      %v2869 = vsel %vm469, %v2598, 0
      %v2871 = vsel %vm469, %v2599, 0
      %v2873 = vsel %vm469, %v2600, 0
      %v2876 = vsel %vm500, %v2844, 0
      %2878 = vmatprep.subr.bf16.mxu0 0
      %2879 = vmatpush1.bf16.msra.mxu0 %v2876
      %2880 = vmatprep.subr.bf16.mxu0 0
      %2881 = vmatpush1.bf16.msra.mxu0 0
      %2882 = vmatprep.subr.bf16.mxu0 0
      %2883 = vmatpush1.bf16.msra.mxu0 0
      %2884 = vmatprep.subr.bf16.mxu0 0
      %2885 = vmatpush1.bf16.msra.mxu0 0
      %2886 = vmatprep.subr.bf16.mxu0 0
      %2887 = vmatpush1.bf16.msra.mxu0 0
      %2888 = vmatprep.subr.bf16.mxu0 0
      %2889 = vmatpush1.bf16.msra.mxu0 0
      %2890 = vmatprep.subr.bf16.mxu0 0
      %2891 = vmatpush1.bf16.msra.mxu0 0
      %2892 = vmatprep.subr.bf16.mxu0 0
      %2893 = vmatpush1.bf16.msra.mxu0 0
      %2894 = vmatprep.subr.bf16.mxu0 0
      %2895 = vmatpush1.bf16.msra.mxu0 0
      %2896 = vmatprep.subr.bf16.mxu0 0
      %2897 = vmatpush1.bf16.msra.mxu0 0
      %2898 = vmatprep.subr.bf16.mxu0 0
      %2899 = vmatpush1.bf16.msra.mxu0 0
      %2900 = vmatprep.subr.bf16.mxu0 0
      %2901 = vmatpush1.bf16.msra.mxu0 0
      %2902 = vmatprep.subr.bf16.mxu0 0
      %2903 = vmatpush1.bf16.msra.mxu0 0
      %2904 = vmatprep.subr.bf16.mxu0 0
      %2905 = vmatpush1.bf16.msra.mxu0 0
      %2906 = vmatprep.subr.bf16.mxu0 0
      %2907 = vmatpush1.bf16.msra.mxu0 0
      %2908 = vmatprep.subr.bf16.mxu0 0
      %2909 = vmatpush1.bf16.msra.mxu0 0
      %2910 = vmatprep.mubr.bf16.mxu0 0
      %2911 = vmatmul.mubr.bf16.gmra.mrb[0].mxu0 %v2845
      %v2912 = vpop.f32.mrb[0].mxu0
      %v2913 = vadd.f32 0.0, %v2912
      %v2914 = vpop.f32.mrb[0].mxu0
      %v2915 = vpop.f32.mrb[0].mxu0
      %v2916 = vadd.f32 0.0, %v2915
      %v2917 = vpop.f32.mrb[0].mxu0
      %2918 = vmatprep.mubr.bf16.mxu0 0
      %2919 = vmatmul.mubr.bf16.gmra.mrb[0].mxu0 %v2847
      %v2920 = vpop.f32.mrb[0].mxu0
      %v2921 = vadd.f32 0.0, %v2920
      %v2922 = vpop.f32.mrb[0].mxu0
      %v2923 = vpop.f32.mrb[0].mxu0
      %v2924 = vadd.f32 0.0, %v2923
      %v2925 = vpop.f32.mrb[0].mxu0
      %2926 = vmatprep.mubr.bf16.mxu0 0
      %2927 = vmatmul.mubr.bf16.gmra.mrb[0].mxu0 %v2845
      %v2928 = vpop.f32.mrb[0].mxu0
      %v2929 = vadd.f32 0.0, %v2928
      %v2930 = vpop.f32.mrb[0].mxu0
      %v2931 = vpop.f32.mrb[0].mxu0
      %v2932 = vadd.f32 0.0, %v2931
      %v2933 = vpop.f32.mrb[0].mxu0
      %2934 = vmatprep.mubr.bf16.mxu0 0
      %2935 = vmatmul.mubr.bf16.gmra.mrb[0].mxu0 %v2849
      %v2936 = vpop.f32.mrb[0].mxu0
      %v2937 = vadd.f32 0.0, %v2936
      %v2938 = vpop.f32.mrb[0].mxu0
      %v2939 = vpop.f32.mrb[0].mxu0
      %v2940 = vadd.f32 0.0, %v2939
      %v2941 = vpop.f32.mrb[0].mxu0
      %2942 = vmatprep.mubr.bf16.mxu0 0
      %2943 = vmatmul.mubr.bf16.gmra.mrb[0].mxu0 %v2851
      %v2944 = vpop.f32.mrb[0].mxu0
      %v2945 = vadd.f32 0.0, %v2944
      %v2946 = vpop.f32.mrb[0].mxu0
      %v2947 = vpop.f32.mrb[0].mxu0
      %v2948 = vadd.f32 0.0, %v2947
      %v2949 = vpop.f32.mrb[0].mxu0
      %2950 = vmatprep.mubr.bf16.mxu0 0
      %2951 = vmatmul.mubr.bf16.gmra.mrb[0].mxu0 %v2853
      %v2952 = vpop.f32.mrb[0].mxu0
      %v2953 = vadd.f32 0.0, %v2952
      %v2954 = vpop.f32.mrb[0].mxu0
      %v2955 = vpop.f32.mrb[0].mxu0
      %v2956 = vadd.f32 0.0, %v2955
      %v2957 = vpop.f32.mrb[0].mxu0
      %2958 = vmatprep.mubr.bf16.mxu0 0
      %2959 = vmatmul.mubr.bf16.gmra.mrb[0].mxu0 %v2855
      %v2960 = vpop.f32.mrb[0].mxu0
      %v2961 = vadd.f32 0.0, %v2960
      %v2962 = vpop.f32.mrb[0].mxu0
      %v2963 = vpop.f32.mrb[0].mxu0
      %v2964 = vadd.f32 0.0, %v2963
      %v2965 = vpop.f32.mrb[0].mxu0
      %2966 = vmatprep.mubr.bf16.mxu0 0
      %2967 = vmatmul.mubr.bf16.gmra.mrb[0].mxu0 %v2857
      %v2968 = vpop.f32.mrb[0].mxu0
      %v2969 = vadd.f32 0.0, %v2968
      %v2970 = vpop.f32.mrb[0].mxu0
      %v2971 = vpop.f32.mrb[0].mxu0
      %v2972 = vadd.f32 0.0, %v2971
      %v2973 = vpop.f32.mrb[0].mxu0
      %2974 = vmatprep.mubr.bf16.mxu0 0
      %2975 = vmatmul.mubr.bf16.gmra.mrb[0].mxu0 %v2859
      %v2976 = vpop.f32.mrb[0].mxu0
      %v2977 = vadd.f32 0.0, %v2976
      %v2978 = vpop.f32.mrb[0].mxu0
      %v2979 = vpop.f32.mrb[0].mxu0
      %v2980 = vadd.f32 0.0, %v2979
      %v2981 = vpop.f32.mrb[0].mxu0
      %2982 = vmatprep.mubr.bf16.mxu0 0
      %2983 = vmatmul.mubr.bf16.gmra.mrb[0].mxu0 %v2861
      %v2984 = vpop.f32.mrb[0].mxu0
      %v2985 = vadd.f32 0.0, %v2984
      %v2986 = vpop.f32.mrb[0].mxu0
      %v2987 = vpop.f32.mrb[0].mxu0
      %v2988 = vadd.f32 0.0, %v2987
      %v2989 = vpop.f32.mrb[0].mxu0
      %2990 = vmatprep.mubr.bf16.mxu0 0
      %2991 = vmatmul.mubr.bf16.gmra.mrb[0].mxu0 %v2863
      %v2992 = vpop.f32.mrb[0].mxu0
      %v2993 = vadd.f32 0.0, %v2992
      %v2994 = vpop.f32.mrb[0].mxu0
      %v2995 = vpop.f32.mrb[0].mxu0
      %v2996 = vadd.f32 0.0, %v2995
      %v2997 = vpop.f32.mrb[0].mxu0
      %2998 = vmatprep.mubr.bf16.mxu0 0
      %2999 = vmatmul.mubr.bf16.gmra.mrb[0].mxu0 %v2865
      %v3000 = vpop.f32.mrb[0].mxu0
      %v3001 = vadd.f32 0.0, %v3000
      %v3002 = vpop.f32.mrb[0].mxu0
      %v3003 = vpop.f32.mrb[0].mxu0
      %v3004 = vadd.f32 0.0, %v3003
      %v3005 = vpop.f32.mrb[0].mxu0
      %3006 = vmatprep.mubr.bf16.mxu0 0
      %3007 = vmatmul.mubr.bf16.gmra.mrb[0].mxu0 %v2867
      %v3008 = vpop.f32.mrb[0].mxu0
      %v3009 = vadd.f32 0.0, %v3008
      %v3010 = vpop.f32.mrb[0].mxu0
      %v3011 = vpop.f32.mrb[0].mxu0
      %v3012 = vadd.f32 0.0, %v3011
      %v3013 = vpop.f32.mrb[0].mxu0
      %3014 = vmatprep.mubr.bf16.mxu0 0
      %3015 = vmatmul.mubr.bf16.gmra.mrb[0].mxu0 %v2869
      %v3016 = vpop.f32.mrb[0].mxu0
      %v3017 = vadd.f32 0.0, %v3016
      %v3018 = vpop.f32.mrb[0].mxu0
      %v3019 = vpop.f32.mrb[0].mxu0
      %v3020 = vadd.f32 0.0, %v3019
      %v3021 = vpop.f32.mrb[0].mxu0
      %3022 = vmatprep.mubr.bf16.mxu0 0
      %3023 = vmatmul.mubr.bf16.gmra.mrb[0].mxu0 %v2871
      %v3024 = vpop.f32.mrb[0].mxu0
      %v3025 = vadd.f32 0.0, %v3024
      %v3026 = vpop.f32.mrb[0].mxu0
      %v3027 = vpop.f32.mrb[0].mxu0
      %v3028 = vadd.f32 0.0, %v3027
      %v3029 = vpop.f32.mrb[0].mxu0
      %3030 = vmatprep.mubr.bf16.mxu0 0
      %3031 = vmatmul.mubr.bf16.gmra.mrb[0].mxu0 %v2873
      %v3032 = vpop.f32.mrb[0].mxu0
      %v3033 = vadd.f32 0.0, %v3032
      %v3034 = vpop.f32.mrb[0].mxu0
      %v3035 = vpop.f32.mrb[0].mxu0
      %v3036 = vadd.f32 0.0, %v3035
      %v3037 = vpop.f32.mrb[0].mxu0
      %3038 = vdwg.mxu0
      %v3040 = vsel %vm469, %v2746, 0
      %v3043 = vsel %vm469, %v2747, 0
      %v3046 = vsel %vm469, %v2748, 0
      %v3049 = vsel %vm469, %v2749, 0
      %v3052 = vsel %vm469, %v2750, 0
      %v3055 = vsel %vm469, %v2751, 0
      %v3058 = vsel %vm469, %v2752, 0
      %v3061 = vsel %vm469, %v2753, 0
      %v3064 = vsel %vm469, %v2754, 0
      %v3067 = vsel %vm469, %v2755, 0
      %v3070 = vsel %vm469, %v2756, 0
      %v3073 = vsel %vm469, %v2757, 0
      %v3076 = vsel %vm469, %v2758, 0
      %v3079 = vsel %vm469, %v2759, 0
      %v3082 = vsel %vm469, %v2760, 0
      %v3085 = vsel %vm500, %v2842, 0
      %3087 = vmatprep.subr.bf16.mxu0 0
      %3088 = vmatpush1.bf16.msra.mxu0 %v3085
      %3089 = vmatprep.subr.bf16.mxu0 0
      %3090 = vmatpush1.bf16.msra.mxu0 0
      %3091 = vmatprep.subr.bf16.mxu0 0
      %3092 = vmatpush1.bf16.msra.mxu0 0
      %3093 = vmatprep.subr.bf16.mxu0 0
      %3094 = vmatpush1.bf16.msra.mxu0 0
      %3095 = vmatprep.subr.bf16.mxu0 0
      %3096 = vmatpush1.bf16.msra.mxu0 0
      %3097 = vmatprep.subr.bf16.mxu0 0
      %3098 = vmatpush1.bf16.msra.mxu0 0
      %3099 = vmatprep.subr.bf16.mxu0 0
      %3100 = vmatpush1.bf16.msra.mxu0 0
      %3101 = vmatprep.subr.bf16.mxu0 0
      %3102 = vmatpush1.bf16.msra.mxu0 0
      %3103 = vmatprep.subr.bf16.mxu0 0
      %3104 = vmatpush1.bf16.msra.mxu0 0
      %3105 = vmatprep.subr.bf16.mxu0 0
      %3106 = vmatpush1.bf16.msra.mxu0 0
      %3107 = vmatprep.subr.bf16.mxu0 0
      %3108 = vmatpush1.bf16.msra.mxu0 0
      %3109 = vmatprep.subr.bf16.mxu0 0
      %3110 = vmatpush1.bf16.msra.mxu0 0
      %3111 = vmatprep.subr.bf16.mxu0 0
      %3112 = vmatpush1.bf16.msra.mxu0 0
      %3113 = vmatprep.subr.bf16.mxu0 0
      %3114 = vmatpush1.bf16.msra.mxu0 0
      %3115 = vmatprep.subr.bf16.mxu0 0
      %3116 = vmatpush1.bf16.msra.mxu0 0
      %3117 = vmatprep.subr.bf16.mxu0 0
      %3118 = vmatpush1.bf16.msra.mxu0 0
      %3119 = vmatprep.mubr.bf16.mxu0 0
      %3120 = vmatmul.mubr.bf16.gmra.mrb[0].mxu0 %v3040
      %v3121 = vpop.f32.mrb[0].mxu0
      %v3122 = vadd.f32 %v2913, %v3121
      %v3123 = vpop.f32.mrb[0].mxu0
      %v3124 = vpop.f32.mrb[0].mxu0
      %v3125 = vadd.f32 %v2916, %v3124
      %v3126 = vpop.f32.mrb[0].mxu0
      %3127 = vmatprep.mubr.bf16.mxu0 0
      %3128 = vmatmul.mubr.bf16.gmra.mrb[0].mxu0 %v3043
      %v3129 = vpop.f32.mrb[0].mxu0
      %v3130 = vadd.f32 %v2921, %v3129
      %v3131 = vpop.f32.mrb[0].mxu0
      %v3132 = vpop.f32.mrb[0].mxu0
      %v3133 = vadd.f32 %v2924, %v3132
      %v3134 = vpop.f32.mrb[0].mxu0
      %3135 = vmatprep.mubr.bf16.mxu0 0
      %3136 = vmatmul.mubr.bf16.gmra.mrb[0].mxu0 %v3040
      %v3137 = vpop.f32.mrb[0].mxu0
      %v3138 = vadd.f32 %v2929, %v3137
      %v3139 = vpop.f32.mrb[0].mxu0
      %v3140 = vpop.f32.mrb[0].mxu0
      %v3141 = vadd.f32 %v2932, %v3140
      %v3142 = vpop.f32.mrb[0].mxu0
      %3143 = vmatprep.mubr.bf16.mxu0 0
      %3144 = vmatmul.mubr.bf16.gmra.mrb[0].mxu0 %v3046
      %v3145 = vpop.f32.mrb[0].mxu0
      %v3146 = vadd.f32 %v2937, %v3145
      %v3147 = vpop.f32.mrb[0].mxu0
      %v3148 = vpop.f32.mrb[0].mxu0
      %v3149 = vadd.f32 %v2940, %v3148
      %v3150 = vpop.f32.mrb[0].mxu0
      %3151 = vmatprep.mubr.bf16.mxu0 0
      %3152 = vmatmul.mubr.bf16.gmra.mrb[0].mxu0 %v3049
      %v3153 = vpop.f32.mrb[0].mxu0
      %v3154 = vadd.f32 %v2945, %v3153
      %v3155 = vpop.f32.mrb[0].mxu0
      %v3156 = vpop.f32.mrb[0].mxu0
      %v3157 = vadd.f32 %v2948, %v3156
      %v3158 = vpop.f32.mrb[0].mxu0
      %3159 = vmatprep.mubr.bf16.mxu0 0
      %3160 = vmatmul.mubr.bf16.gmra.mrb[0].mxu0 %v3052
      %v3161 = vpop.f32.mrb[0].mxu0
      %v3162 = vadd.f32 %v2953, %v3161
      %v3163 = vpop.f32.mrb[0].mxu0
      %v3164 = vpop.f32.mrb[0].mxu0
      %v3165 = vadd.f32 %v2956, %v3164
      %v3166 = vpop.f32.mrb[0].mxu0
      %3167 = vmatprep.mubr.bf16.mxu0 0
      %3168 = vmatmul.mubr.bf16.gmra.mrb[0].mxu0 %v3055
      %v3169 = vpop.f32.mrb[0].mxu0
      %v3170 = vadd.f32 %v2961, %v3169
      %v3171 = vpop.f32.mrb[0].mxu0
      %v3172 = vpop.f32.mrb[0].mxu0
      %v3173 = vadd.f32 %v2964, %v3172
      %v3174 = vpop.f32.mrb[0].mxu0
      %3175 = vmatprep.mubr.bf16.mxu0 0
      %3176 = vmatmul.mubr.bf16.gmra.mrb[0].mxu0 %v3058
      %v3177 = vpop.f32.mrb[0].mxu0
      %v3178 = vadd.f32 %v2969, %v3177
      %v3179 = vpop.f32.mrb[0].mxu0
      %v3180 = vpop.f32.mrb[0].mxu0
      %v3181 = vadd.f32 %v2972, %v3180
      %v3182 = vpop.f32.mrb[0].mxu0
      %3183 = vmatprep.mubr.bf16.mxu0 0
      %3184 = vmatmul.mubr.bf16.gmra.mrb[0].mxu0 %v3061
      %v3185 = vpop.f32.mrb[0].mxu0
      %v3186 = vadd.f32 %v2977, %v3185
      %v3187 = vpop.f32.mrb[0].mxu0
      %v3188 = vpop.f32.mrb[0].mxu0
      %v3189 = vadd.f32 %v2980, %v3188
      %v3190 = vpop.f32.mrb[0].mxu0
      %3191 = vmatprep.mubr.bf16.mxu0 0
      %3192 = vmatmul.mubr.bf16.gmra.mrb[0].mxu0 %v3064
      %v3193 = vpop.f32.mrb[0].mxu0
      %v3194 = vadd.f32 %v2985, %v3193
      %v3195 = vpop.f32.mrb[0].mxu0
      %v3196 = vpop.f32.mrb[0].mxu0
      %v3197 = vadd.f32 %v2988, %v3196
      %v3198 = vpop.f32.mrb[0].mxu0
      %3199 = vmatprep.mubr.bf16.mxu0 0
      %3200 = vmatmul.mubr.bf16.gmra.mrb[0].mxu0 %v3067
      %v3201 = vpop.f32.mrb[0].mxu0
      %v3202 = vadd.f32 %v2993, %v3201
      %v3203 = vpop.f32.mrb[0].mxu0
      %v3204 = vpop.f32.mrb[0].mxu0
      %v3205 = vadd.f32 %v2996, %v3204
      %v3206 = vpop.f32.mrb[0].mxu0
      %3207 = vmatprep.mubr.bf16.mxu0 0
      %3208 = vmatmul.mubr.bf16.gmra.mrb[0].mxu0 %v3070
      %v3209 = vpop.f32.mrb[0].mxu0
      %v3210 = vadd.f32 %v3001, %v3209
      %v3211 = vpop.f32.mrb[0].mxu0
      %v3212 = vpop.f32.mrb[0].mxu0
      %v3213 = vadd.f32 %v3004, %v3212
      %v3214 = vpop.f32.mrb[0].mxu0
      %3215 = vmatprep.mubr.bf16.mxu0 0
      %3216 = vmatmul.mubr.bf16.gmra.mrb[0].mxu0 %v3073
      %v3217 = vpop.f32.mrb[0].mxu0
      %v3218 = vadd.f32 %v3009, %v3217
      %v3219 = vpop.f32.mrb[0].mxu0
      %v3220 = vpop.f32.mrb[0].mxu0
      %v3221 = vadd.f32 %v3012, %v3220
      %v3222 = vpop.f32.mrb[0].mxu0
      %3223 = vmatprep.mubr.bf16.mxu0 0
      %3224 = vmatmul.mubr.bf16.gmra.mrb[0].mxu0 %v3076
      %v3225 = vpop.f32.mrb[0].mxu0
      %v3226 = vadd.f32 %v3017, %v3225
      %v3227 = vpop.f32.mrb[0].mxu0
      %v3228 = vpop.f32.mrb[0].mxu0
      %v3229 = vadd.f32 %v3020, %v3228
      %v3230 = vpop.f32.mrb[0].mxu0
      %3231 = vmatprep.mubr.bf16.mxu0 0
      %3232 = vmatmul.mubr.bf16.gmra.mrb[0].mxu0 %v3079
      %v3233 = vpop.f32.mrb[0].mxu0
      %v3234 = vadd.f32 %v3025, %v3233
      %v3235 = vpop.f32.mrb[0].mxu0
      %v3236 = vpop.f32.mrb[0].mxu0
      %v3237 = vadd.f32 %v3028, %v3236
      %v3238 = vpop.f32.mrb[0].mxu0
      %3239 = vmatprep.mubr.bf16.mxu0 0
      %3240 = vmatmul.mubr.bf16.gmra.mrb[0].mxu0 %v3082
      %v3241 = vpop.f32.mrb[0].mxu0
      %v3242 = vadd.f32 %v3033, %v3241
      %v3243 = vpop.f32.mrb[0].mxu0
      %v3244 = vpop.f32.mrb[0].mxu0
      %v3245 = vadd.f32 %v3036, %v3244
      %v3246 = vpop.f32.mrb[0].mxu0
      %3247 = vdwg.mxu0
      %s3248 = scalar_lea.vmem %s2, 4
      %v3249 = vld [vmem:[%s3248] sm:$0x3]
      %v3251 = vsel %vm469, %v2826, 0
      %v3254 = vsel %vm469, %v2827, 0
      %v3257 = vsel %vm469, %v2828, 0
      %v3260 = vsel %vm469, %v2829, 0
      %v3263 = vsel %vm469, %v2830, 0
      %v3266 = vsel %vm469, %v2831, 0
      %v3269 = vsel %vm469, %v2832, 0
      %v3272 = vsel %vm469, %v2833, 0
      %v3275 = vsel %vm469, %v2834, 0
      %v3278 = vsel %vm469, %v2835, 0
      %v3281 = vsel %vm469, %v2836, 0
      %v3284 = vsel %vm469, %v2837, 0
      %v3287 = vsel %vm469, %v2838, 0
      %v3290 = vsel %vm469, %v2839, 0
      %v3293 = vsel %vm469, %v2840, 0
      %v3296 = vsel %vm500, %v3249, 0
      %3298 = vmatprep.subr.bf16.mxu0 0
      %3299 = vmatpush1.bf16.msra.mxu0 %v3296
      %3300 = vmatprep.subr.bf16.mxu0 0
      %3301 = vmatpush1.bf16.msra.mxu0 0
      %3302 = vmatprep.subr.bf16.mxu0 0
      %3303 = vmatpush1.bf16.msra.mxu0 0
      %3304 = vmatprep.subr.bf16.mxu0 0
      %3305 = vmatpush1.bf16.msra.mxu0 0
      %3306 = vmatprep.subr.bf16.mxu0 0
      %3307 = vmatpush1.bf16.msra.mxu0 0
      %3308 = vmatprep.subr.bf16.mxu0 0
      %3309 = vmatpush1.bf16.msra.mxu0 0
      %3310 = vmatprep.subr.bf16.mxu0 0
      %3311 = vmatpush1.bf16.msra.mxu0 0
      %3312 = vmatprep.subr.bf16.mxu0 0
      %3313 = vmatpush1.bf16.msra.mxu0 0
      %3314 = vmatprep.subr.bf16.mxu0 0
      %3315 = vmatpush1.bf16.msra.mxu0 0
      %3316 = vmatprep.subr.bf16.mxu0 0
      %3317 = vmatpush1.bf16.msra.mxu0 0
      %3318 = vmatprep.subr.bf16.mxu0 0
      %3319 = vmatpush1.bf16.msra.mxu0 0
      %3320 = vmatprep.subr.bf16.mxu0 0
      %3321 = vmatpush1.bf16.msra.mxu0 0
      %3322 = vmatprep.subr.bf16.mxu0 0
      %3323 = vmatpush1.bf16.msra.mxu0 0
      %3324 = vmatprep.subr.bf16.mxu0 0
      %3325 = vmatpush1.bf16.msra.mxu0 0
      %3326 = vmatprep.subr.bf16.mxu0 0
      %3327 = vmatpush1.bf16.msra.mxu0 0
      %3328 = vmatprep.subr.bf16.mxu0 0
      %3329 = vmatpush1.bf16.msra.mxu0 0
      %3330 = vmatprep.mubr.bf16.mxu0 0
      %3331 = vmatmul.mubr.bf16.gmra.mrb[0].mxu0 %v3251
      %v3332 = vpop.f32.mrb[0].mxu0
      %v3333 = vadd.f32 0.0, %v3332
      %v3334 = vpop.f32.mrb[0].mxu0
      %v3335 = vpop.f32.mrb[0].mxu0
      %v3336 = vadd.f32 0.0, %v3335
      %v3337 = vpop.f32.mrb[0].mxu0
      %3338 = vmatprep.mubr.bf16.mxu0 0
      %3339 = vmatmul.mubr.bf16.gmra.mrb[0].mxu0 %v3254
      %v3340 = vpop.f32.mrb[0].mxu0
      %v3341 = vadd.f32 0.0, %v3340
      %v3342 = vpop.f32.mrb[0].mxu0
      %v3343 = vpop.f32.mrb[0].mxu0
      %v3344 = vadd.f32 0.0, %v3343
      %v3345 = vpop.f32.mrb[0].mxu0
      %3346 = vmatprep.mubr.bf16.mxu0 0
      %3347 = vmatmul.mubr.bf16.gmra.mrb[0].mxu0 %v3251
      %v3348 = vpop.f32.mrb[0].mxu0
      %v3349 = vadd.f32 0.0, %v3348
      %v3350 = vpop.f32.mrb[0].mxu0
      %v3351 = vpop.f32.mrb[0].mxu0
      %v3352 = vadd.f32 0.0, %v3351
      %v3353 = vpop.f32.mrb[0].mxu0
      %3354 = vmatprep.mubr.bf16.mxu0 0
      %3355 = vmatmul.mubr.bf16.gmra.mrb[0].mxu0 %v3257
      %v3356 = vpop.f32.mrb[0].mxu0
      %v3357 = vadd.f32 0.0, %v3356
      %v3358 = vpop.f32.mrb[0].mxu0
      %v3359 = vpop.f32.mrb[0].mxu0
      %v3360 = vadd.f32 0.0, %v3359
      %v3361 = vpop.f32.mrb[0].mxu0
      %3362 = vmatprep.mubr.bf16.mxu0 0
      %3363 = vmatmul.mubr.bf16.gmra.mrb[0].mxu0 %v3260
      %v3364 = vpop.f32.mrb[0].mxu0
      %v3365 = vadd.f32 0.0, %v3364
      %v3366 = vpop.f32.mrb[0].mxu0
      %v3367 = vpop.f32.mrb[0].mxu0
      %v3368 = vadd.f32 0.0, %v3367
      %v3369 = vpop.f32.mrb[0].mxu0
      %3370 = vmatprep.mubr.bf16.mxu0 0
      %3371 = vmatmul.mubr.bf16.gmra.mrb[0].mxu0 %v3263
      %v3372 = vpop.f32.mrb[0].mxu0
      %v3373 = vadd.f32 0.0, %v3372
      %v3374 = vpop.f32.mrb[0].mxu0
      %v3375 = vpop.f32.mrb[0].mxu0
      %v3376 = vadd.f32 0.0, %v3375
      %v3377 = vpop.f32.mrb[0].mxu0
      %3378 = vmatprep.mubr.bf16.mxu0 0
      %3379 = vmatmul.mubr.bf16.gmra.mrb[0].mxu0 %v3266
      %v3380 = vpop.f32.mrb[0].mxu0
      %v3381 = vadd.f32 0.0, %v3380
      %v3382 = vpop.f32.mrb[0].mxu0
      %v3383 = vpop.f32.mrb[0].mxu0
      %v3384 = vadd.f32 0.0, %v3383
      %v3385 = vpop.f32.mrb[0].mxu0
      %3386 = vmatprep.mubr.bf16.mxu0 0
      %3387 = vmatmul.mubr.bf16.gmra.mrb[0].mxu0 %v3269
      %v3388 = vpop.f32.mrb[0].mxu0
      %v3389 = vadd.f32 0.0, %v3388
      %v3390 = vpop.f32.mrb[0].mxu0
      %v3391 = vpop.f32.mrb[0].mxu0
      %v3392 = vadd.f32 0.0, %v3391
      %v3393 = vpop.f32.mrb[0].mxu0
      %3394 = vmatprep.mubr.bf16.mxu0 0
      %3395 = vmatmul.mubr.bf16.gmra.mrb[0].mxu0 %v3272
      %v3396 = vpop.f32.mrb[0].mxu0
      %v3397 = vadd.f32 0.0, %v3396
      %v3398 = vpop.f32.mrb[0].mxu0
      %v3399 = vpop.f32.mrb[0].mxu0
      %v3400 = vadd.f32 0.0, %v3399
      %v3401 = vpop.f32.mrb[0].mxu0
      %3402 = vmatprep.mubr.bf16.mxu0 0
      %3403 = vmatmul.mubr.bf16.gmra.mrb[0].mxu0 %v3275
      %v3404 = vpop.f32.mrb[0].mxu0
      %v3405 = vadd.f32 0.0, %v3404
      %v3406 = vpop.f32.mrb[0].mxu0
      %v3407 = vpop.f32.mrb[0].mxu0
      %v3408 = vadd.f32 0.0, %v3407
      %v3409 = vpop.f32.mrb[0].mxu0
      %3410 = vmatprep.mubr.bf16.mxu0 0
      %3411 = vmatmul.mubr.bf16.gmra.mrb[0].mxu0 %v3278
      %v3412 = vpop.f32.mrb[0].mxu0
      %v3413 = vadd.f32 0.0, %v3412
      %v3414 = vpop.f32.mrb[0].mxu0
      %v3415 = vpop.f32.mrb[0].mxu0
      %v3416 = vadd.f32 0.0, %v3415
      %v3417 = vpop.f32.mrb[0].mxu0
      %3418 = vmatprep.mubr.bf16.mxu0 0
      %3419 = vmatmul.mubr.bf16.gmra.mrb[0].mxu0 %v3281
      %v3420 = vpop.f32.mrb[0].mxu0
      %v3421 = vadd.f32 0.0, %v3420
      %v3422 = vpop.f32.mrb[0].mxu0
      %v3423 = vpop.f32.mrb[0].mxu0
      %v3424 = vadd.f32 0.0, %v3423
      %v3425 = vpop.f32.mrb[0].mxu0
      %3426 = vmatprep.mubr.bf16.mxu0 0
      %3427 = vmatmul.mubr.bf16.gmra.mrb[0].mxu0 %v3284
      %v3428 = vpop.f32.mrb[0].mxu0
      %v3429 = vadd.f32 0.0, %v3428
      %v3430 = vpop.f32.mrb[0].mxu0
      %v3431 = vpop.f32.mrb[0].mxu0
      %v3432 = vadd.f32 0.0, %v3431
      %v3433 = vpop.f32.mrb[0].mxu0
      %3434 = vmatprep.mubr.bf16.mxu0 0
      %3435 = vmatmul.mubr.bf16.gmra.mrb[0].mxu0 %v3287
      %v3436 = vpop.f32.mrb[0].mxu0
      %v3437 = vadd.f32 0.0, %v3436
      %v3438 = vpop.f32.mrb[0].mxu0
      %v3439 = vpop.f32.mrb[0].mxu0
      %v3440 = vadd.f32 0.0, %v3439
      %v3441 = vpop.f32.mrb[0].mxu0
      %3442 = vmatprep.mubr.bf16.mxu0 0
      %3443 = vmatmul.mubr.bf16.gmra.mrb[0].mxu0 %v3290
      %v3444 = vpop.f32.mrb[0].mxu0
      %v3445 = vadd.f32 0.0, %v3444
      %v3446 = vpop.f32.mrb[0].mxu0
      %v3447 = vpop.f32.mrb[0].mxu0
      %v3448 = vadd.f32 0.0, %v3447
      %v3449 = vpop.f32.mrb[0].mxu0
      %3450 = vmatprep.mubr.bf16.mxu0 0
      %3451 = vmatmul.mubr.bf16.gmra.mrb[0].mxu0 %v3293
      %v3452 = vpop.f32.mrb[0].mxu0
      %v3453 = vadd.f32 0.0, %v3452
      %v3454 = vpop.f32.mrb[0].mxu0
      %v3455 = vpop.f32.mrb[0].mxu0
      %v3456 = vadd.f32 0.0, %v3455
      %v3457 = vpop.f32.mrb[0].mxu0
      %3458 = vdwg.mxu0
      %v3459 = vadd.f32 %v3122, %v3333
      %v3460 = vadd.f32 %v3125, %v3336
      %v3461 = vadd.f32 %v3130, %v3341
      %v3462 = vadd.f32 %v3133, %v3344
      %v3463 = vadd.f32 %v3138, %v3349
      %v3464 = vadd.f32 %v3141, %v3352
      %v3465 = vadd.f32 %v3146, %v3357
      %v3466 = vadd.f32 %v3149, %v3360
      %v3467 = vadd.f32 %v3154, %v3365
      %v3468 = vadd.f32 %v3157, %v3368
      %v3469 = vadd.f32 %v3162, %v3373
      %v3470 = vadd.f32 %v3165, %v3376
      %v3471 = vadd.f32 %v3170, %v3381
      %v3472 = vadd.f32 %v3173, %v3384
      %v3473 = vadd.f32 %v3178, %v3389
      %v3474 = vadd.f32 %v3181, %v3392
      %v3475 = vadd.f32 %v3186, %v3397
      %v3476 = vadd.f32 %v3189, %v3400
      %v3477 = vadd.f32 %v3194, %v3405
      %v3478 = vadd.f32 %v3197, %v3408
      %v3479 = vadd.f32 %v3202, %v3413
      %v3480 = vadd.f32 %v3205, %v3416
      %v3481 = vadd.f32 %v3210, %v3421
      %v3482 = vadd.f32 %v3213, %v3424
      %v3483 = vadd.f32 %v3218, %v3429
      %v3484 = vadd.f32 %v3221, %v3432
      %v3485 = vadd.f32 %v3226, %v3437
      %v3486 = vadd.f32 %v3229, %v3440
      %v3487 = vadd.f32 %v3234, %v3445
      %v3488 = vadd.f32 %v3237, %v3448
      %v3489 = vadd.f32 %v3242, %v3453
      %v3490 = vadd.f32 %v3245, %v3456
      %s3491 = scalar_lea.vmem %s2, 6
      %v3492 = vld [vmem:[%s3491] sm:$0x3]
      %v3494 = vsel %vm469, %v2761, 0
      %v3497 = vsel %vm500, %v3492, 0
      %3499 = vmatprep.subr.bf16.mxu0 0
      %3500 = vmatpush1.bf16.msra.mxu0 %v3497
      %3501 = vmatprep.subr.bf16.mxu0 0
      %3502 = vmatpush1.bf16.msra.mxu0 0
      %3503 = vmatprep.subr.bf16.mxu0 0
      %3504 = vmatpush1.bf16.msra.mxu0 0
      %3505 = vmatprep.subr.bf16.mxu0 0
      %3506 = vmatpush1.bf16.msra.mxu0 0
      %3507 = vmatprep.subr.bf16.mxu0 0
      %3508 = vmatpush1.bf16.msra.mxu0 0
      %3509 = vmatprep.subr.bf16.mxu0 0
      %3510 = vmatpush1.bf16.msra.mxu0 0
      %3511 = vmatprep.subr.bf16.mxu0 0
      %3512 = vmatpush1.bf16.msra.mxu0 0
      %3513 = vmatprep.subr.bf16.mxu0 0
      %3514 = vmatpush1.bf16.msra.mxu0 0
      %3515 = vmatprep.subr.bf16.mxu0 0
      %3516 = vmatpush1.bf16.msra.mxu0 0
      %3517 = vmatprep.subr.bf16.mxu0 0
      %3518 = vmatpush1.bf16.msra.mxu0 0
      %3519 = vmatprep.subr.bf16.mxu0 0
      %3520 = vmatpush1.bf16.msra.mxu0 0
      %3521 = vmatprep.subr.bf16.mxu0 0
      %3522 = vmatpush1.bf16.msra.mxu0 0
      %3523 = vmatprep.subr.bf16.mxu0 0
      %3524 = vmatpush1.bf16.msra.mxu0 0
      %3525 = vmatprep.subr.bf16.mxu0 0
      %3526 = vmatpush1.bf16.msra.mxu0 0
      %3527 = vmatprep.subr.bf16.mxu0 0
      %3528 = vmatpush1.bf16.msra.mxu0 0
      %3529 = vmatprep.subr.bf16.mxu0 0
      %3530 = vmatpush1.bf16.msra.mxu0 0
      %3531 = vmatprep.mubr.bf16.mxu0 0
      %3532 = vmatmul.mubr.bf16.gmra.mrb[0].mxu0 %v3043
      %v3533 = vpop.f32.mrb[0].mxu0
      %v3534 = vadd.f32 0.0, %v3533
      %v3535 = vpop.f32.mrb[0].mxu0
      %v3536 = vpop.f32.mrb[0].mxu0
      %v3537 = vadd.f32 0.0, %v3536
      %v3538 = vpop.f32.mrb[0].mxu0
      %3539 = vmatprep.mubr.bf16.mxu0 0
      %3540 = vmatmul.mubr.bf16.gmra.mrb[0].mxu0 %v3040
      %v3541 = vpop.f32.mrb[0].mxu0
      %v3542 = vadd.f32 0.0, %v3541
      %v3543 = vpop.f32.mrb[0].mxu0
      %v3544 = vpop.f32.mrb[0].mxu0
      %v3545 = vadd.f32 0.0, %v3544
      %v3546 = vpop.f32.mrb[0].mxu0
      %3547 = vmatprep.mubr.bf16.mxu0 0
      %3548 = vmatmul.mubr.bf16.gmra.mrb[0].mxu0 %v3046
      %v3549 = vpop.f32.mrb[0].mxu0
      %v3550 = vadd.f32 0.0, %v3549
      %v3551 = vpop.f32.mrb[0].mxu0
      %v3552 = vpop.f32.mrb[0].mxu0
      %v3553 = vadd.f32 0.0, %v3552
      %v3554 = vpop.f32.mrb[0].mxu0
      %3555 = vmatprep.mubr.bf16.mxu0 0
      %3556 = vmatmul.mubr.bf16.gmra.mrb[0].mxu0 %v3049
      %v3557 = vpop.f32.mrb[0].mxu0
      %v3558 = vadd.f32 0.0, %v3557
      %v3559 = vpop.f32.mrb[0].mxu0
      %v3560 = vpop.f32.mrb[0].mxu0
      %v3561 = vadd.f32 0.0, %v3560
      %v3562 = vpop.f32.mrb[0].mxu0
      %3563 = vmatprep.mubr.bf16.mxu0 0
      %3564 = vmatmul.mubr.bf16.gmra.mrb[0].mxu0 %v3052
      %v3565 = vpop.f32.mrb[0].mxu0
      %v3566 = vadd.f32 0.0, %v3565
      %v3567 = vpop.f32.mrb[0].mxu0
      %v3568 = vpop.f32.mrb[0].mxu0
      %v3569 = vadd.f32 0.0, %v3568
      %v3570 = vpop.f32.mrb[0].mxu0
      %3571 = vmatprep.mubr.bf16.mxu0 0
      %3572 = vmatmul.mubr.bf16.gmra.mrb[0].mxu0 %v3055
      %v3573 = vpop.f32.mrb[0].mxu0
      %v3574 = vadd.f32 0.0, %v3573
      %v3575 = vpop.f32.mrb[0].mxu0
      %v3576 = vpop.f32.mrb[0].mxu0
      %v3577 = vadd.f32 0.0, %v3576
      %v3578 = vpop.f32.mrb[0].mxu0
      %3579 = vmatprep.mubr.bf16.mxu0 0
      %3580 = vmatmul.mubr.bf16.gmra.mrb[0].mxu0 %v3058
      %v3581 = vpop.f32.mrb[0].mxu0
      %v3582 = vadd.f32 0.0, %v3581
      %v3583 = vpop.f32.mrb[0].mxu0
      %v3584 = vpop.f32.mrb[0].mxu0
      %v3585 = vadd.f32 0.0, %v3584
      %v3586 = vpop.f32.mrb[0].mxu0
      %3587 = vmatprep.mubr.bf16.mxu0 0
      %3588 = vmatmul.mubr.bf16.gmra.mrb[0].mxu0 %v3061
      %v3589 = vpop.f32.mrb[0].mxu0
      %v3590 = vadd.f32 0.0, %v3589
      %v3591 = vpop.f32.mrb[0].mxu0
      %v3592 = vpop.f32.mrb[0].mxu0
      %v3593 = vadd.f32 0.0, %v3592
      %v3594 = vpop.f32.mrb[0].mxu0
      %3595 = vmatprep.mubr.bf16.mxu0 0
      %3596 = vmatmul.mubr.bf16.gmra.mrb[0].mxu0 %v3064
      %v3597 = vpop.f32.mrb[0].mxu0
      %v3598 = vadd.f32 0.0, %v3597
      %v3599 = vpop.f32.mrb[0].mxu0
      %v3600 = vpop.f32.mrb[0].mxu0
      %v3601 = vadd.f32 0.0, %v3600
      %v3602 = vpop.f32.mrb[0].mxu0
      %3603 = vmatprep.mubr.bf16.mxu0 0
      %3604 = vmatmul.mubr.bf16.gmra.mrb[0].mxu0 %v3067
      %v3605 = vpop.f32.mrb[0].mxu0
      %v3606 = vadd.f32 0.0, %v3605
      %v3607 = vpop.f32.mrb[0].mxu0
      %v3608 = vpop.f32.mrb[0].mxu0
      %v3609 = vadd.f32 0.0, %v3608
      %v3610 = vpop.f32.mrb[0].mxu0
      %3611 = vmatprep.mubr.bf16.mxu0 0
      %3612 = vmatmul.mubr.bf16.gmra.mrb[0].mxu0 %v3070
      %v3613 = vpop.f32.mrb[0].mxu0
      %v3614 = vadd.f32 0.0, %v3613
      %v3615 = vpop.f32.mrb[0].mxu0
      %v3616 = vpop.f32.mrb[0].mxu0
      %v3617 = vadd.f32 0.0, %v3616
      %v3618 = vpop.f32.mrb[0].mxu0
      %3619 = vmatprep.mubr.bf16.mxu0 0
      %3620 = vmatmul.mubr.bf16.gmra.mrb[0].mxu0 %v3073
      %v3621 = vpop.f32.mrb[0].mxu0
      %v3622 = vadd.f32 0.0, %v3621
      %v3623 = vpop.f32.mrb[0].mxu0
      %v3624 = vpop.f32.mrb[0].mxu0
      %v3625 = vadd.f32 0.0, %v3624
      %v3626 = vpop.f32.mrb[0].mxu0
      %3627 = vmatprep.mubr.bf16.mxu0 0
      %3628 = vmatmul.mubr.bf16.gmra.mrb[0].mxu0 %v3076
      %v3629 = vpop.f32.mrb[0].mxu0
      %v3630 = vadd.f32 0.0, %v3629
      %v3631 = vpop.f32.mrb[0].mxu0
      %v3632 = vpop.f32.mrb[0].mxu0
      %v3633 = vadd.f32 0.0, %v3632
      %v3634 = vpop.f32.mrb[0].mxu0
      %3635 = vmatprep.mubr.bf16.mxu0 0
      %3636 = vmatmul.mubr.bf16.gmra.mrb[0].mxu0 %v3079
      %v3637 = vpop.f32.mrb[0].mxu0
      %v3638 = vadd.f32 0.0, %v3637
      %v3639 = vpop.f32.mrb[0].mxu0
      %v3640 = vpop.f32.mrb[0].mxu0
      %v3641 = vadd.f32 0.0, %v3640
      %v3642 = vpop.f32.mrb[0].mxu0
      %3643 = vmatprep.mubr.bf16.mxu0 0
      %3644 = vmatmul.mubr.bf16.gmra.mrb[0].mxu0 %v3082
      %v3645 = vpop.f32.mrb[0].mxu0
      %v3646 = vadd.f32 0.0, %v3645
      %v3647 = vpop.f32.mrb[0].mxu0
      %v3648 = vpop.f32.mrb[0].mxu0
      %v3649 = vadd.f32 0.0, %v3648
      %v3650 = vpop.f32.mrb[0].mxu0
      %3651 = vmatprep.mubr.bf16.mxu0 0
      %3652 = vmatmul.mubr.bf16.gmra.mrb[0].mxu0 %v3494
      %v3653 = vpop.f32.mrb[0].mxu0
      %v3654 = vadd.f32 0.0, %v3653
      %v3655 = vpop.f32.mrb[0].mxu0
      %v3656 = vpop.f32.mrb[0].mxu0
      %v3657 = vadd.f32 0.0, %v3656
      %v3658 = vpop.f32.mrb[0].mxu0
      %3659 = vdwg.mxu0
      %v3660 = vadd.f32 %v3459, %v3534
      %v3661 = vadd.f32 %v3460, %v3537
      %v3662 = vadd.f32 %v3461, %v3542
      %v3663 = vadd.f32 %v3462, %v3545
      %v3664 = vadd.f32 %v3463, %v3550
      %v3665 = vadd.f32 %v3464, %v3553
      %v3666 = vadd.f32 %v3465, %v3558
      %v3667 = vadd.f32 %v3466, %v3561
      %v3668 = vadd.f32 %v3467, %v3566
      %v3669 = vadd.f32 %v3468, %v3569
      %v3670 = vadd.f32 %v3469, %v3574
      %v3671 = vadd.f32 %v3470, %v3577
      %v3672 = vadd.f32 %v3471, %v3582
      %v3673 = vadd.f32 %v3472, %v3585
      %v3674 = vadd.f32 %v3473, %v3590
      %v3675 = vadd.f32 %v3474, %v3593
      %v3676 = vadd.f32 %v3475, %v3598
      %v3677 = vadd.f32 %v3476, %v3601
      %v3678 = vadd.f32 %v3477, %v3606
      %v3679 = vadd.f32 %v3478, %v3609
      %v3680 = vadd.f32 %v3479, %v3614
      %v3681 = vadd.f32 %v3480, %v3617
      %v3682 = vadd.f32 %v3481, %v3622
      %v3683 = vadd.f32 %v3482, %v3625
      %v3684 = vadd.f32 %v3483, %v3630
      %v3685 = vadd.f32 %v3484, %v3633
      %v3686 = vadd.f32 %v3485, %v3638
      %v3687 = vadd.f32 %v3486, %v3641
      %v3688 = vadd.f32 %v3487, %v3646
      %v3689 = vadd.f32 %v3488, %v3649
      %v3690 = vadd.f32 %v3489, %v3654
      %v3691 = vadd.f32 %v3490, %v3657
      %s3692 = scalar_lea.vmem %s2, 8
      %v3693 = vld [vmem:[%s3692] sm:$0x3]
      %v3694 = vsel %vm469, %v2601, 0
      %v3697 = vsel %vm500, %v3693, 0
      %3699 = vmatprep.subr.bf16.mxu0 0
      %3700 = vmatpush1.bf16.msra.mxu0 %v3697
      %3701 = vmatprep.subr.bf16.mxu0 0
      %3702 = vmatpush1.bf16.msra.mxu0 0
      %3703 = vmatprep.subr.bf16.mxu0 0
      %3704 = vmatpush1.bf16.msra.mxu0 0
      %3705 = vmatprep.subr.bf16.mxu0 0
      %3706 = vmatpush1.bf16.msra.mxu0 0
      %3707 = vmatprep.subr.bf16.mxu0 0
      %3708 = vmatpush1.bf16.msra.mxu0 0
      %3709 = vmatprep.subr.bf16.mxu0 0
      %3710 = vmatpush1.bf16.msra.mxu0 0
      %3711 = vmatprep.subr.bf16.mxu0 0
      %3712 = vmatpush1.bf16.msra.mxu0 0
      %3713 = vmatprep.subr.bf16.mxu0 0
      %3714 = vmatpush1.bf16.msra.mxu0 0
      %3715 = vmatprep.subr.bf16.mxu0 0
      %3716 = vmatpush1.bf16.msra.mxu0 0
      %3717 = vmatprep.subr.bf16.mxu0 0
      %3718 = vmatpush1.bf16.msra.mxu0 0
      %3719 = vmatprep.subr.bf16.mxu0 0
      %3720 = vmatpush1.bf16.msra.mxu0 0
      %3721 = vmatprep.subr.bf16.mxu0 0
      %3722 = vmatpush1.bf16.msra.mxu0 0
      %3723 = vmatprep.subr.bf16.mxu0 0
      %3724 = vmatpush1.bf16.msra.mxu0 0
      %3725 = vmatprep.subr.bf16.mxu0 0
      %3726 = vmatpush1.bf16.msra.mxu0 0
      %3727 = vmatprep.subr.bf16.mxu0 0
      %3728 = vmatpush1.bf16.msra.mxu0 0
      %3729 = vmatprep.subr.bf16.mxu0 0
      %3730 = vmatpush1.bf16.msra.mxu0 0
      %3731 = vmatprep.mubr.bf16.mxu0 0
      %3732 = vmatmul.mubr.bf16.gmra.mrb[0].mxu0 %v2847
      %v3733 = vpop.f32.mrb[0].mxu0
      %v3734 = vadd.f32 0.0, %v3733
      %v3735 = vpop.f32.mrb[0].mxu0
      %v3736 = vpop.f32.mrb[0].mxu0
      %v3737 = vadd.f32 0.0, %v3736
      %v3738 = vpop.f32.mrb[0].mxu0
      %3739 = vmatprep.mubr.bf16.mxu0 0
      %3740 = vmatmul.mubr.bf16.gmra.mrb[0].mxu0 %v2845
      %v3741 = vpop.f32.mrb[0].mxu0
      %v3742 = vadd.f32 0.0, %v3741
      %v3743 = vpop.f32.mrb[0].mxu0
      %v3744 = vpop.f32.mrb[0].mxu0
      %v3745 = vadd.f32 0.0, %v3744
      %v3746 = vpop.f32.mrb[0].mxu0
      %3747 = vmatprep.mubr.bf16.mxu0 0
      %3748 = vmatmul.mubr.bf16.gmra.mrb[0].mxu0 %v2849
      %v3749 = vpop.f32.mrb[0].mxu0
      %v3750 = vadd.f32 0.0, %v3749
      %v3751 = vpop.f32.mrb[0].mxu0
      %v3752 = vpop.f32.mrb[0].mxu0
      %v3753 = vadd.f32 0.0, %v3752
      %v3754 = vpop.f32.mrb[0].mxu0
      %3755 = vmatprep.mubr.bf16.mxu0 0
      %3756 = vmatmul.mubr.bf16.gmra.mrb[0].mxu0 %v2851
      %v3757 = vpop.f32.mrb[0].mxu0
      %v3758 = vadd.f32 0.0, %v3757
      %v3759 = vpop.f32.mrb[0].mxu0
      %v3760 = vpop.f32.mrb[0].mxu0
      %v3761 = vadd.f32 0.0, %v3760
      %v3762 = vpop.f32.mrb[0].mxu0
      %3763 = vmatprep.mubr.bf16.mxu0 0
      %3764 = vmatmul.mubr.bf16.gmra.mrb[0].mxu0 %v2853
      %v3765 = vpop.f32.mrb[0].mxu0
      %v3766 = vadd.f32 0.0, %v3765
      %v3767 = vpop.f32.mrb[0].mxu0
      %v3768 = vpop.f32.mrb[0].mxu0
      %v3769 = vadd.f32 0.0, %v3768
      %v3770 = vpop.f32.mrb[0].mxu0
      %3771 = vmatprep.mubr.bf16.mxu0 0
      %3772 = vmatmul.mubr.bf16.gmra.mrb[0].mxu0 %v2855
      %v3773 = vpop.f32.mrb[0].mxu0
      %v3774 = vadd.f32 0.0, %v3773
      %v3775 = vpop.f32.mrb[0].mxu0
      %v3776 = vpop.f32.mrb[0].mxu0
      %v3777 = vadd.f32 0.0, %v3776
      %v3778 = vpop.f32.mrb[0].mxu0
      %3779 = vmatprep.mubr.bf16.mxu0 0
      %3780 = vmatmul.mubr.bf16.gmra.mrb[0].mxu0 %v2857
      %v3781 = vpop.f32.mrb[0].mxu0
      %v3782 = vadd.f32 0.0, %v3781
      %v3783 = vpop.f32.mrb[0].mxu0
      %v3784 = vpop.f32.mrb[0].mxu0
      %v3785 = vadd.f32 0.0, %v3784
      %v3786 = vpop.f32.mrb[0].mxu0
      %3787 = vmatprep.mubr.bf16.mxu0 0
      %3788 = vmatmul.mubr.bf16.gmra.mrb[0].mxu0 %v2859
      %v3789 = vpop.f32.mrb[0].mxu0
      %v3790 = vadd.f32 0.0, %v3789
      %v3791 = vpop.f32.mrb[0].mxu0
      %v3792 = vpop.f32.mrb[0].mxu0
      %v3793 = vadd.f32 0.0, %v3792
      %v3794 = vpop.f32.mrb[0].mxu0
      %3795 = vmatprep.mubr.bf16.mxu0 0
      %3796 = vmatmul.mubr.bf16.gmra.mrb[0].mxu0 %v2861
      %v3797 = vpop.f32.mrb[0].mxu0
      %v3798 = vadd.f32 0.0, %v3797
      %v3799 = vpop.f32.mrb[0].mxu0
      %v3800 = vpop.f32.mrb[0].mxu0
      %v3801 = vadd.f32 0.0, %v3800
      %v3802 = vpop.f32.mrb[0].mxu0
      %3803 = vmatprep.mubr.bf16.mxu0 0
      %3804 = vmatmul.mubr.bf16.gmra.mrb[0].mxu0 %v2863
      %v3805 = vpop.f32.mrb[0].mxu0
      %v3806 = vadd.f32 0.0, %v3805
      %v3807 = vpop.f32.mrb[0].mxu0
      %v3808 = vpop.f32.mrb[0].mxu0
      %v3809 = vadd.f32 0.0, %v3808
      %v3810 = vpop.f32.mrb[0].mxu0
      %3811 = vmatprep.mubr.bf16.mxu0 0
      %3812 = vmatmul.mubr.bf16.gmra.mrb[0].mxu0 %v2865
      %v3813 = vpop.f32.mrb[0].mxu0
      %v3814 = vadd.f32 0.0, %v3813
      %v3815 = vpop.f32.mrb[0].mxu0
      %v3816 = vpop.f32.mrb[0].mxu0
      %v3817 = vadd.f32 0.0, %v3816
      %v3818 = vpop.f32.mrb[0].mxu0
      %3819 = vmatprep.mubr.bf16.mxu0 0
      %3820 = vmatmul.mubr.bf16.gmra.mrb[0].mxu0 %v2867
      %v3821 = vpop.f32.mrb[0].mxu0
      %v3822 = vadd.f32 0.0, %v3821
      %v3823 = vpop.f32.mrb[0].mxu0
      %v3824 = vpop.f32.mrb[0].mxu0
      %v3825 = vadd.f32 0.0, %v3824
      %v3826 = vpop.f32.mrb[0].mxu0
      %3827 = vmatprep.mubr.bf16.mxu0 0
      %3828 = vmatmul.mubr.bf16.gmra.mrb[0].mxu0 %v2869
      %v3829 = vpop.f32.mrb[0].mxu0
      %v3830 = vadd.f32 0.0, %v3829
      %v3831 = vpop.f32.mrb[0].mxu0
      %v3832 = vpop.f32.mrb[0].mxu0
      %v3833 = vadd.f32 0.0, %v3832
      %v3834 = vpop.f32.mrb[0].mxu0
      %3835 = vmatprep.mubr.bf16.mxu0 0
      %3836 = vmatmul.mubr.bf16.gmra.mrb[0].mxu0 %v2871
      %v3837 = vpop.f32.mrb[0].mxu0
      %v3838 = vadd.f32 0.0, %v3837
      %v3839 = vpop.f32.mrb[0].mxu0
      %v3840 = vpop.f32.mrb[0].mxu0
      %v3841 = vadd.f32 0.0, %v3840
      %v3842 = vpop.f32.mrb[0].mxu0
      %3843 = vmatprep.mubr.bf16.mxu0 0
      %3844 = vmatmul.mubr.bf16.gmra.mrb[0].mxu0 %v2873
      %v3845 = vpop.f32.mrb[0].mxu0
      %v3846 = vadd.f32 0.0, %v3845
      %v3847 = vpop.f32.mrb[0].mxu0
      %v3848 = vpop.f32.mrb[0].mxu0
      %v3849 = vadd.f32 0.0, %v3848
      %v3850 = vpop.f32.mrb[0].mxu0
      %3851 = vmatprep.mubr.bf16.mxu0 0
      %3852 = vmatmul.mubr.bf16.gmra.mrb[0].mxu0 %v3694
      %v3853 = vpop.f32.mrb[0].mxu0
      %v3854 = vadd.f32 0.0, %v3853
      %v3855 = vpop.f32.mrb[0].mxu0
      %v3856 = vpop.f32.mrb[0].mxu0
      %v3857 = vadd.f32 0.0, %v3856
      %v3858 = vpop.f32.mrb[0].mxu0
      %3859 = vdwg.mxu0
      %v3860 = vadd.f32 %v3660, %v3734
      %v3861 = vadd.f32 %v3661, %v3737
      %v3862 = vadd.f32 %v3662, %v3742
      %v3863 = vadd.f32 %v3663, %v3745
      %v3864 = vadd.f32 %v3664, %v3750
      %v3865 = vadd.f32 %v3665, %v3753
      %v3866 = vadd.f32 %v3666, %v3758
      %v3867 = vadd.f32 %v3667, %v3761
      %v3868 = vadd.f32 %v3668, %v3766
      %v3869 = vadd.f32 %v3669, %v3769
      %v3870 = vadd.f32 %v3670, %v3774
      %v3871 = vadd.f32 %v3671, %v3777
      %v3872 = vadd.f32 %v3672, %v3782
      %v3873 = vadd.f32 %v3673, %v3785
      %v3874 = vadd.f32 %v3674, %v3790
      %v3875 = vadd.f32 %v3675, %v3793
      %v3876 = vadd.f32 %v3676, %v3798
      %v3877 = vadd.f32 %v3677, %v3801
      %v3878 = vadd.f32 %v3678, %v3806
      %v3879 = vadd.f32 %v3679, %v3809
      %v3880 = vadd.f32 %v3680, %v3814
      %v3881 = vadd.f32 %v3681, %v3817
      %v3882 = vadd.f32 %v3682, %v3822
      %v3883 = vadd.f32 %v3683, %v3825
      %v3884 = vadd.f32 %v3684, %v3830
      %v3885 = vadd.f32 %v3685, %v3833
      %v3886 = vadd.f32 %v3686, %v3838
      %v3887 = vadd.f32 %v3687, %v3841
      %v3888 = vadd.f32 %v3688, %v3846
      %v3889 = vadd.f32 %v3689, %v3849
      %v3890 = vadd.f32 %v3690, %v3854
      %v3891 = vadd.f32 %v3691, %v3857
      %s3892 = scalar_lea.vmem %s2, 10
      %v3893 = vld [vmem:[%s3892] sm:$0x3]
      %v3895 = vsel %vm469, %v2841, 0
      %v3898 = vsel %vm500, %v3893, 0
      %3900 = vmatprep.subr.bf16.mxu0 0
      %3901 = vmatpush1.bf16.msra.mxu0 %v3898
      %3902 = vmatprep.subr.bf16.mxu0 0
      %3903 = vmatpush1.bf16.msra.mxu0 0
      %3904 = vmatprep.subr.bf16.mxu0 0
      %3905 = vmatpush1.bf16.msra.mxu0 0
      %3906 = vmatprep.subr.bf16.mxu0 0
      %3907 = vmatpush1.bf16.msra.mxu0 0
      %3908 = vmatprep.subr.bf16.mxu0 0
      %3909 = vmatpush1.bf16.msra.mxu0 0
      %3910 = vmatprep.subr.bf16.mxu0 0
      %3911 = vmatpush1.bf16.msra.mxu0 0
      %3912 = vmatprep.subr.bf16.mxu0 0
      %3913 = vmatpush1.bf16.msra.mxu0 0
      %3914 = vmatprep.subr.bf16.mxu0 0
      %3915 = vmatpush1.bf16.msra.mxu0 0
      %3916 = vmatprep.subr.bf16.mxu0 0
      %3917 = vmatpush1.bf16.msra.mxu0 0
      %3918 = vmatprep.subr.bf16.mxu0 0
      %3919 = vmatpush1.bf16.msra.mxu0 0
      %3920 = vmatprep.subr.bf16.mxu0 0
      %3921 = vmatpush1.bf16.msra.mxu0 0
      %3922 = vmatprep.subr.bf16.mxu0 0
      %3923 = vmatpush1.bf16.msra.mxu0 0
      %3924 = vmatprep.subr.bf16.mxu0 0
      %3925 = vmatpush1.bf16.msra.mxu0 0
      %3926 = vmatprep.subr.bf16.mxu0 0
      %3927 = vmatpush1.bf16.msra.mxu0 0
      %3928 = vmatprep.subr.bf16.mxu0 0
      %3929 = vmatpush1.bf16.msra.mxu0 0
      %3930 = vmatprep.subr.bf16.mxu0 0
      %3931 = vmatpush1.bf16.msra.mxu0 0
      %3932 = vmatprep.mubr.bf16.mxu0 0
      %3933 = vmatmul.mubr.bf16.gmra.mrb[0].mxu0 %v3254
      %v3934 = vpop.f32.mrb[0].mxu0
      %v3935 = vadd.f32 0.0, %v3934
      %v3936 = vpop.f32.mrb[0].mxu0
      %v3937 = vpop.f32.mrb[0].mxu0
      %v3938 = vadd.f32 0.0, %v3937
      %v3939 = vpop.f32.mrb[0].mxu0
      %3940 = vmatprep.mubr.bf16.mxu0 0
      %3941 = vmatmul.mubr.bf16.gmra.mrb[0].mxu0 %v3251
      %v3942 = vpop.f32.mrb[0].mxu0
      %v3943 = vadd.f32 0.0, %v3942
      %v3944 = vpop.f32.mrb[0].mxu0
      %v3945 = vpop.f32.mrb[0].mxu0
      %v3946 = vadd.f32 0.0, %v3945
      %v3947 = vpop.f32.mrb[0].mxu0
      %3948 = vmatprep.mubr.bf16.mxu0 0
      %3949 = vmatmul.mubr.bf16.gmra.mrb[0].mxu0 %v3257
      %v3950 = vpop.f32.mrb[0].mxu0
      %v3951 = vadd.f32 0.0, %v3950
      %v3952 = vpop.f32.mrb[0].mxu0
      %v3953 = vpop.f32.mrb[0].mxu0
      %v3954 = vadd.f32 0.0, %v3953
      %v3955 = vpop.f32.mrb[0].mxu0
      %3956 = vmatprep.mubr.bf16.mxu0 0
      %3957 = vmatmul.mubr.bf16.gmra.mrb[0].mxu0 %v3260
      %v3958 = vpop.f32.mrb[0].mxu0
      %v3959 = vadd.f32 0.0, %v3958
      %v3960 = vpop.f32.mrb[0].mxu0
      %v3961 = vpop.f32.mrb[0].mxu0
      %v3962 = vadd.f32 0.0, %v3961
      %v3963 = vpop.f32.mrb[0].mxu0
      %3964 = vmatprep.mubr.bf16.mxu0 0
      %3965 = vmatmul.mubr.bf16.gmra.mrb[0].mxu0 %v3263
      %v3966 = vpop.f32.mrb[0].mxu0
      %v3967 = vadd.f32 0.0, %v3966
      %v3968 = vpop.f32.mrb[0].mxu0
      %v3969 = vpop.f32.mrb[0].mxu0
      %v3970 = vadd.f32 0.0, %v3969
      %v3971 = vpop.f32.mrb[0].mxu0
      %3972 = vmatprep.mubr.bf16.mxu0 0
      %3973 = vmatmul.mubr.bf16.gmra.mrb[0].mxu0 %v3266
      %v3974 = vpop.f32.mrb[0].mxu0
      %v3975 = vadd.f32 0.0, %v3974
      %v3976 = vpop.f32.mrb[0].mxu0
      %v3977 = vpop.f32.mrb[0].mxu0
      %v3978 = vadd.f32 0.0, %v3977
      %v3979 = vpop.f32.mrb[0].mxu0
      %3980 = vmatprep.mubr.bf16.mxu0 0
      %3981 = vmatmul.mubr.bf16.gmra.mrb[0].mxu0 %v3269
      %v3982 = vpop.f32.mrb[0].mxu0
      %v3983 = vadd.f32 0.0, %v3982
      %v3984 = vpop.f32.mrb[0].mxu0
      %v3985 = vpop.f32.mrb[0].mxu0
      %v3986 = vadd.f32 0.0, %v3985
      %v3987 = vpop.f32.mrb[0].mxu0
      %3988 = vmatprep.mubr.bf16.mxu0 0
      %3989 = vmatmul.mubr.bf16.gmra.mrb[0].mxu0 %v3272
      %v3990 = vpop.f32.mrb[0].mxu0
      %v3991 = vadd.f32 0.0, %v3990
      %v3992 = vpop.f32.mrb[0].mxu0
      %v3993 = vpop.f32.mrb[0].mxu0
      %v3994 = vadd.f32 0.0, %v3993
      %v3995 = vpop.f32.mrb[0].mxu0
      %3996 = vmatprep.mubr.bf16.mxu0 0
      %3997 = vmatmul.mubr.bf16.gmra.mrb[0].mxu0 %v3275
      %v3998 = vpop.f32.mrb[0].mxu0
      %v3999 = vadd.f32 0.0, %v3998
      %v4000 = vpop.f32.mrb[0].mxu0
      %v4001 = vpop.f32.mrb[0].mxu0
      %v4002 = vadd.f32 0.0, %v4001
      %v4003 = vpop.f32.mrb[0].mxu0
      %4004 = vmatprep.mubr.bf16.mxu0 0
      %4005 = vmatmul.mubr.bf16.gmra.mrb[0].mxu0 %v3278
      %v4006 = vpop.f32.mrb[0].mxu0
      %v4007 = vadd.f32 0.0, %v4006
      %v4008 = vpop.f32.mrb[0].mxu0
      %v4009 = vpop.f32.mrb[0].mxu0
      %v4010 = vadd.f32 0.0, %v4009
      %v4011 = vpop.f32.mrb[0].mxu0
      %4012 = vmatprep.mubr.bf16.mxu0 0
      %4013 = vmatmul.mubr.bf16.gmra.mrb[0].mxu0 %v3281
      %v4014 = vpop.f32.mrb[0].mxu0
      %v4015 = vadd.f32 0.0, %v4014
      %v4016 = vpop.f32.mrb[0].mxu0
      %v4017 = vpop.f32.mrb[0].mxu0
      %v4018 = vadd.f32 0.0, %v4017
      %v4019 = vpop.f32.mrb[0].mxu0
      %4020 = vmatprep.mubr.bf16.mxu0 0
      %4021 = vmatmul.mubr.bf16.gmra.mrb[0].mxu0 %v3284
      %v4022 = vpop.f32.mrb[0].mxu0
      %v4023 = vadd.f32 0.0, %v4022
      %v4024 = vpop.f32.mrb[0].mxu0
      %v4025 = vpop.f32.mrb[0].mxu0
      %v4026 = vadd.f32 0.0, %v4025
      %v4027 = vpop.f32.mrb[0].mxu0
      %4028 = vmatprep.mubr.bf16.mxu0 0
      %4029 = vmatmul.mubr.bf16.gmra.mrb[0].mxu0 %v3287
      %v4030 = vpop.f32.mrb[0].mxu0
      %v4031 = vadd.f32 0.0, %v4030
      %v4032 = vpop.f32.mrb[0].mxu0
      %v4033 = vpop.f32.mrb[0].mxu0
      %v4034 = vadd.f32 0.0, %v4033
      %v4035 = vpop.f32.mrb[0].mxu0
      %4036 = vmatprep.mubr.bf16.mxu0 0
      %4037 = vmatmul.mubr.bf16.gmra.mrb[0].mxu0 %v3290
      %v4038 = vpop.f32.mrb[0].mxu0
      %v4039 = vadd.f32 0.0, %v4038
      %v4040 = vpop.f32.mrb[0].mxu0
      %v4041 = vpop.f32.mrb[0].mxu0
      %v4042 = vadd.f32 0.0, %v4041
      %v4043 = vpop.f32.mrb[0].mxu0
      %4044 = vmatprep.mubr.bf16.mxu0 0
      %4045 = vmatmul.mubr.bf16.gmra.mrb[0].mxu0 %v3293
      %v4046 = vpop.f32.mrb[0].mxu0
      %v4047 = vadd.f32 0.0, %v4046
      %v4048 = vpop.f32.mrb[0].mxu0
      %v4049 = vpop.f32.mrb[0].mxu0
      %v4050 = vadd.f32 0.0, %v4049
      %v4051 = vpop.f32.mrb[0].mxu0
      %4052 = vmatprep.mubr.bf16.mxu0 0
      %4053 = vmatmul.mubr.bf16.gmra.mrb[0].mxu0 %v3895
      %v4054 = vpop.f32.mrb[0].mxu0
      %v4055 = vadd.f32 0.0, %v4054
      %v4056 = vpop.f32.mrb[0].mxu0
      %v4057 = vpop.f32.mrb[0].mxu0
      %v4058 = vadd.f32 0.0, %v4057
      %v4059 = vpop.f32.mrb[0].mxu0
      %4060 = vdwg.mxu0
      %v4061 = vadd.f32 %v3860, %v3935
      %v4062 = vadd.f32 %v3861, %v3938
      %v4063 = vadd.f32 %v3862, %v3943
      %v4064 = vadd.f32 %v3863, %v3946
      %v4065 = vadd.f32 %v3864, %v3951
      %v4066 = vadd.f32 %v3865, %v3954
      %v4067 = vadd.f32 %v3866, %v3959
      %v4068 = vadd.f32 %v3867, %v3962
      %v4069 = vadd.f32 %v3868, %v3967
      %v4070 = vadd.f32 %v3869, %v3970
      %v4071 = vadd.f32 %v3870, %v3975
      %v4072 = vadd.f32 %v3871, %v3978
      %v4073 = vadd.f32 %v3872, %v3983
      %v4074 = vadd.f32 %v3873, %v3986
      %v4075 = vadd.f32 %v3874, %v3991
      %v4076 = vadd.f32 %v3875, %v3994
      %v4077 = vadd.f32 %v3876, %v3999
      %v4078 = vadd.f32 %v3877, %v4002
      %v4079 = vadd.f32 %v3878, %v4007
      %v4080 = vadd.f32 %v3879, %v4010
      %v4081 = vadd.f32 %v3880, %v4015
      %v4082 = vadd.f32 %v3881, %v4018
      %v4083 = vadd.f32 %v3882, %v4023
      %v4084 = vadd.f32 %v3883, %v4026
      %v4085 = vadd.f32 %v3884, %v4031
      %v4086 = vadd.f32 %v3885, %v4034
      %v4087 = vadd.f32 %v3886, %v4039
      %v4088 = vadd.f32 %v3887, %v4042
      %v4089 = vadd.f32 %v3888, %v4047
      %v4090 = vadd.f32 %v3889, %v4050
      %v4091 = vadd.f32 %v3890, %v4055
      %v4092 = vadd.f32 %v3891, %v4058
      %s4093 = scalar_lea.vmem %s2, 12
      %v4094 = vld [vmem:[%s4093] sm:$0x3]
      %v4096 = vsel %vm500, %v4094, 0
      %4098 = vmatprep.subr.bf16.mxu0 0
      %4099 = vmatpush1.bf16.msra.mxu0 %v4096
      %4100 = vmatprep.subr.bf16.mxu0 0
      %4101 = vmatpush1.bf16.msra.mxu0 0
      %4102 = vmatprep.subr.bf16.mxu0 0
      %4103 = vmatpush1.bf16.msra.mxu0 0
      %4104 = vmatprep.subr.bf16.mxu0 0
      %4105 = vmatpush1.bf16.msra.mxu0 0
      %4106 = vmatprep.subr.bf16.mxu0 0
      %4107 = vmatpush1.bf16.msra.mxu0 0
      %4108 = vmatprep.subr.bf16.mxu0 0
      %4109 = vmatpush1.bf16.msra.mxu0 0
      %4110 = vmatprep.subr.bf16.mxu0 0
      %4111 = vmatpush1.bf16.msra.mxu0 0
      %4112 = vmatprep.subr.bf16.mxu0 0
      %4113 = vmatpush1.bf16.msra.mxu0 0
      %4114 = vmatprep.subr.bf16.mxu0 0
      %4115 = vmatpush1.bf16.msra.mxu0 0
      %4116 = vmatprep.subr.bf16.mxu0 0
      %4117 = vmatpush1.bf16.msra.mxu0 0
      %4118 = vmatprep.subr.bf16.mxu0 0
      %4119 = vmatpush1.bf16.msra.mxu0 0
      %4120 = vmatprep.subr.bf16.mxu0 0
      %4121 = vmatpush1.bf16.msra.mxu0 0
      %4122 = vmatprep.subr.bf16.mxu0 0
      %4123 = vmatpush1.bf16.msra.mxu0 0
      %4124 = vmatprep.subr.bf16.mxu0 0
      %4125 = vmatpush1.bf16.msra.mxu0 0
      %4126 = vmatprep.subr.bf16.mxu0 0
      %4127 = vmatpush1.bf16.msra.mxu0 0
      %4128 = vmatprep.subr.bf16.mxu0 0
      %4129 = vmatpush1.bf16.msra.mxu0 0
      %4130 = vmatprep.mubr.bf16.mxu0 0
      %4131 = vmatmul.mubr.bf16.gmra.mrb[0].mxu0 %v3040
      %v4132 = vpop.f32.mrb[0].mxu0
      %v4133 = vadd.f32 0.0, %v4132
      %v4134 = vpop.f32.mrb[0].mxu0
      %v4135 = vpop.f32.mrb[0].mxu0
      %v4136 = vadd.f32 0.0, %v4135
      %v4137 = vpop.f32.mrb[0].mxu0
      %4138 = vmatprep.mubr.bf16.mxu0 0
      %4139 = vmatmul.mubr.bf16.gmra.mrb[0].mxu0 %v3046
      %v4140 = vpop.f32.mrb[0].mxu0
      %v4141 = vadd.f32 0.0, %v4140
      %v4142 = vpop.f32.mrb[0].mxu0
      %v4143 = vpop.f32.mrb[0].mxu0
      %v4144 = vadd.f32 0.0, %v4143
      %v4145 = vpop.f32.mrb[0].mxu0
      %4146 = vmatprep.mubr.bf16.mxu0 0
      %4147 = vmatmul.mubr.bf16.gmra.mrb[0].mxu0 %v3049
      %v4148 = vpop.f32.mrb[0].mxu0
      %v4149 = vadd.f32 0.0, %v4148
      %v4150 = vpop.f32.mrb[0].mxu0
      %v4151 = vpop.f32.mrb[0].mxu0
      %v4152 = vadd.f32 0.0, %v4151
      %v4153 = vpop.f32.mrb[0].mxu0
      %4154 = vmatprep.mubr.bf16.mxu0 0
      %4155 = vmatmul.mubr.bf16.gmra.mrb[0].mxu0 %v3052
      %v4156 = vpop.f32.mrb[0].mxu0
      %v4157 = vadd.f32 0.0, %v4156
      %v4158 = vpop.f32.mrb[0].mxu0
      %v4159 = vpop.f32.mrb[0].mxu0
      %v4160 = vadd.f32 0.0, %v4159
      %v4161 = vpop.f32.mrb[0].mxu0
      %4162 = vmatprep.mubr.bf16.mxu0 0
      %4163 = vmatmul.mubr.bf16.gmra.mrb[0].mxu0 %v3055
      %v4164 = vpop.f32.mrb[0].mxu0
      %v4165 = vadd.f32 0.0, %v4164
      %v4166 = vpop.f32.mrb[0].mxu0
      %v4167 = vpop.f32.mrb[0].mxu0
      %v4168 = vadd.f32 0.0, %v4167
      %v4169 = vpop.f32.mrb[0].mxu0
      %4170 = vmatprep.mubr.bf16.mxu0 0
      %4171 = vmatmul.mubr.bf16.gmra.mrb[0].mxu0 %v3058
      %v4172 = vpop.f32.mrb[0].mxu0
      %v4173 = vadd.f32 0.0, %v4172
      %v4174 = vpop.f32.mrb[0].mxu0
      %v4175 = vpop.f32.mrb[0].mxu0
      %v4176 = vadd.f32 0.0, %v4175
      %v4177 = vpop.f32.mrb[0].mxu0
      %4178 = vmatprep.mubr.bf16.mxu0 0
      %4179 = vmatmul.mubr.bf16.gmra.mrb[0].mxu0 %v3061
      %v4180 = vpop.f32.mrb[0].mxu0
      %v4181 = vadd.f32 0.0, %v4180
      %v4182 = vpop.f32.mrb[0].mxu0
      %v4183 = vpop.f32.mrb[0].mxu0
      %v4184 = vadd.f32 0.0, %v4183
      %v4185 = vpop.f32.mrb[0].mxu0
      %4186 = vmatprep.mubr.bf16.mxu0 0
      %4187 = vmatmul.mubr.bf16.gmra.mrb[0].mxu0 %v3064
      %v4188 = vpop.f32.mrb[0].mxu0
      %v4189 = vadd.f32 0.0, %v4188
      %v4190 = vpop.f32.mrb[0].mxu0
      %v4191 = vpop.f32.mrb[0].mxu0
      %v4192 = vadd.f32 0.0, %v4191
      %v4193 = vpop.f32.mrb[0].mxu0
      %4194 = vmatprep.mubr.bf16.mxu0 0
      %4195 = vmatmul.mubr.bf16.gmra.mrb[0].mxu0 %v3067
      %v4196 = vpop.f32.mrb[0].mxu0
      %v4197 = vadd.f32 0.0, %v4196
      %v4198 = vpop.f32.mrb[0].mxu0
      %v4199 = vpop.f32.mrb[0].mxu0
      %v4200 = vadd.f32 0.0, %v4199
      %v4201 = vpop.f32.mrb[0].mxu0
      %4202 = vmatprep.mubr.bf16.mxu0 0
      %4203 = vmatmul.mubr.bf16.gmra.mrb[0].mxu0 %v3070
      %v4204 = vpop.f32.mrb[0].mxu0
      %v4205 = vadd.f32 0.0, %v4204
      %v4206 = vpop.f32.mrb[0].mxu0
      %v4207 = vpop.f32.mrb[0].mxu0
      %v4208 = vadd.f32 0.0, %v4207
      %v4209 = vpop.f32.mrb[0].mxu0
      %4210 = vmatprep.mubr.bf16.mxu0 0
      %4211 = vmatmul.mubr.bf16.gmra.mrb[0].mxu0 %v3073
      %v4212 = vpop.f32.mrb[0].mxu0
      %v4213 = vadd.f32 0.0, %v4212
      %v4214 = vpop.f32.mrb[0].mxu0
      %v4215 = vpop.f32.mrb[0].mxu0
      %v4216 = vadd.f32 0.0, %v4215
      %v4217 = vpop.f32.mrb[0].mxu0
      %4218 = vmatprep.mubr.bf16.mxu0 0
      %4219 = vmatmul.mubr.bf16.gmra.mrb[0].mxu0 %v3076
      %v4220 = vpop.f32.mrb[0].mxu0
      %v4221 = vadd.f32 0.0, %v4220
      %v4222 = vpop.f32.mrb[0].mxu0
      %v4223 = vpop.f32.mrb[0].mxu0
      %v4224 = vadd.f32 0.0, %v4223
      %v4225 = vpop.f32.mrb[0].mxu0
      %4226 = vmatprep.mubr.bf16.mxu0 0
      %4227 = vmatmul.mubr.bf16.gmra.mrb[0].mxu0 %v3079
      %v4228 = vpop.f32.mrb[0].mxu0
      %v4229 = vadd.f32 0.0, %v4228
      %v4230 = vpop.f32.mrb[0].mxu0
      %v4231 = vpop.f32.mrb[0].mxu0
      %v4232 = vadd.f32 0.0, %v4231
      %v4233 = vpop.f32.mrb[0].mxu0
      %4234 = vmatprep.mubr.bf16.mxu0 0
      %4235 = vmatmul.mubr.bf16.gmra.mrb[0].mxu0 %v3082
      %v4236 = vpop.f32.mrb[0].mxu0
      %v4237 = vadd.f32 0.0, %v4236
      %v4238 = vpop.f32.mrb[0].mxu0
      %v4239 = vpop.f32.mrb[0].mxu0
      %v4240 = vadd.f32 0.0, %v4239
      %v4241 = vpop.f32.mrb[0].mxu0
      %4242 = vmatprep.mubr.bf16.mxu0 0
      %4243 = vmatmul.mubr.bf16.gmra.mrb[0].mxu0 %v3494
      %v4244 = vpop.f32.mrb[0].mxu0
      %v4245 = vadd.f32 0.0, %v4244
      %v4246 = vpop.f32.mrb[0].mxu0
      %v4247 = vpop.f32.mrb[0].mxu0
      %v4248 = vadd.f32 0.0, %v4247
      %v4249 = vpop.f32.mrb[0].mxu0
      %4250 = vmatprep.mubr.bf16.mxu0 0
      %4251 = vmatmul.mubr.bf16.gmra.mrb[0].mxu0 %v3082
      %v4252 = vpop.f32.mrb[0].mxu0
      %v4253 = vadd.f32 0.0, %v4252
      %v4254 = vpop.f32.mrb[0].mxu0
      %v4255 = vpop.f32.mrb[0].mxu0
      %v4256 = vadd.f32 0.0, %v4255
      %v4257 = vpop.f32.mrb[0].mxu0
      %4258 = vdwg.mxu0
      %v4259 = vadd.f32 %v4061, %v4133
      %v4260 = vadd.f32 %v4062, %v4136
      %v4261 = vadd.f32 %v4063, %v4141
      %v4262 = vadd.f32 %v4064, %v4144
      %v4263 = vadd.f32 %v4065, %v4149
      %v4264 = vadd.f32 %v4066, %v4152
      %v4265 = vadd.f32 %v4067, %v4157
      %v4266 = vadd.f32 %v4068, %v4160
      %v4267 = vadd.f32 %v4069, %v4165
      %v4268 = vadd.f32 %v4070, %v4168
      %v4269 = vadd.f32 %v4071, %v4173
      %v4270 = vadd.f32 %v4072, %v4176
      %v4271 = vadd.f32 %v4073, %v4181
      %v4272 = vadd.f32 %v4074, %v4184
      %v4273 = vadd.f32 %v4075, %v4189
      %v4274 = vadd.f32 %v4076, %v4192
      %v4275 = vadd.f32 %v4077, %v4197
      %v4276 = vadd.f32 %v4078, %v4200
      %v4277 = vadd.f32 %v4079, %v4205
      %v4278 = vadd.f32 %v4080, %v4208
      %v4279 = vadd.f32 %v4081, %v4213
      %v4280 = vadd.f32 %v4082, %v4216
      %v4281 = vadd.f32 %v4083, %v4221
      %v4282 = vadd.f32 %v4084, %v4224
      %v4283 = vadd.f32 %v4085, %v4229
      %v4284 = vadd.f32 %v4086, %v4232
      %v4285 = vadd.f32 %v4087, %v4237
      %v4286 = vadd.f32 %v4088, %v4240
      %v4287 = vadd.f32 %v4089, %v4245
      %v4288 = vadd.f32 %v4090, %v4248
      %v4289 = vadd.f32 %v4091, %v4253
      %v4290 = vadd.f32 %v4092, %v4256
      %s4291 = scalar_lea.vmem %s2, 14
      %v4292 = vld [vmem:[%s4291] sm:$0x3]
      %v4294 = vsel %vm500, %v4292, 0
      %4296 = vmatprep.subr.bf16.mxu0 0
      %4297 = vmatpush1.bf16.msra.mxu0 %v4294
      %4298 = vmatprep.subr.bf16.mxu0 0
      %4299 = vmatpush1.bf16.msra.mxu0 0
      %4300 = vmatprep.subr.bf16.mxu0 0
      %4301 = vmatpush1.bf16.msra.mxu0 0
      %4302 = vmatprep.subr.bf16.mxu0 0
      %4303 = vmatpush1.bf16.msra.mxu0 0
      %4304 = vmatprep.subr.bf16.mxu0 0
      %4305 = vmatpush1.bf16.msra.mxu0 0
      %4306 = vmatprep.subr.bf16.mxu0 0
      %4307 = vmatpush1.bf16.msra.mxu0 0
      %4308 = vmatprep.subr.bf16.mxu0 0
      %4309 = vmatpush1.bf16.msra.mxu0 0
      %4310 = vmatprep.subr.bf16.mxu0 0
      %4311 = vmatpush1.bf16.msra.mxu0 0
      %4312 = vmatprep.subr.bf16.mxu0 0
      %4313 = vmatpush1.bf16.msra.mxu0 0
      %4314 = vmatprep.subr.bf16.mxu0 0
      %4315 = vmatpush1.bf16.msra.mxu0 0
      %4316 = vmatprep.subr.bf16.mxu0 0
      %4317 = vmatpush1.bf16.msra.mxu0 0
      %4318 = vmatprep.subr.bf16.mxu0 0
      %4319 = vmatpush1.bf16.msra.mxu0 0
      %4320 = vmatprep.subr.bf16.mxu0 0
      %4321 = vmatpush1.bf16.msra.mxu0 0
      %4322 = vmatprep.subr.bf16.mxu0 0
      %4323 = vmatpush1.bf16.msra.mxu0 0
      %4324 = vmatprep.subr.bf16.mxu0 0
      %4325 = vmatpush1.bf16.msra.mxu0 0
      %4326 = vmatprep.subr.bf16.mxu0 0
      %4327 = vmatpush1.bf16.msra.mxu0 0
      %4328 = vmatprep.mubr.bf16.mxu0 0
      %4329 = vmatmul.mubr.bf16.gmra.mrb[0].mxu0 %v2845
      %v4330 = vpop.f32.mrb[0].mxu0
      %v4331 = vadd.f32 0.0, %v4330
      %v4332 = vpop.f32.mrb[0].mxu0
      %v4333 = vpop.f32.mrb[0].mxu0
      %v4334 = vadd.f32 0.0, %v4333
      %v4335 = vpop.f32.mrb[0].mxu0
      %4336 = vmatprep.mubr.bf16.mxu0 0
      %4337 = vmatmul.mubr.bf16.gmra.mrb[0].mxu0 %v2849
      %v4338 = vpop.f32.mrb[0].mxu0
      %v4339 = vadd.f32 0.0, %v4338
      %v4340 = vpop.f32.mrb[0].mxu0
      %v4341 = vpop.f32.mrb[0].mxu0
      %v4342 = vadd.f32 0.0, %v4341
      %v4343 = vpop.f32.mrb[0].mxu0
      %4344 = vmatprep.mubr.bf16.mxu0 0
      %4345 = vmatmul.mubr.bf16.gmra.mrb[0].mxu0 %v2851
      %v4346 = vpop.f32.mrb[0].mxu0
      %v4347 = vadd.f32 0.0, %v4346
      %v4348 = vpop.f32.mrb[0].mxu0
      %v4349 = vpop.f32.mrb[0].mxu0
      %v4350 = vadd.f32 0.0, %v4349
      %v4351 = vpop.f32.mrb[0].mxu0
      %4352 = vmatprep.mubr.bf16.mxu0 0
      %4353 = vmatmul.mubr.bf16.gmra.mrb[0].mxu0 %v2853
      %v4354 = vpop.f32.mrb[0].mxu0
      %v4355 = vadd.f32 0.0, %v4354
      %v4356 = vpop.f32.mrb[0].mxu0
      %v4357 = vpop.f32.mrb[0].mxu0
      %v4358 = vadd.f32 0.0, %v4357
      %v4359 = vpop.f32.mrb[0].mxu0
      %4360 = vmatprep.mubr.bf16.mxu0 0
      %4361 = vmatmul.mubr.bf16.gmra.mrb[0].mxu0 %v2855
      %v4362 = vpop.f32.mrb[0].mxu0
      %v4363 = vadd.f32 0.0, %v4362
      %v4364 = vpop.f32.mrb[0].mxu0
      %v4365 = vpop.f32.mrb[0].mxu0
      %v4366 = vadd.f32 0.0, %v4365
      %v4367 = vpop.f32.mrb[0].mxu0
      %4368 = vmatprep.mubr.bf16.mxu0 0
      %4369 = vmatmul.mubr.bf16.gmra.mrb[0].mxu0 %v2857
      %v4370 = vpop.f32.mrb[0].mxu0
      %v4371 = vadd.f32 0.0, %v4370
      %v4372 = vpop.f32.mrb[0].mxu0
      %v4373 = vpop.f32.mrb[0].mxu0
      %v4374 = vadd.f32 0.0, %v4373
      %v4375 = vpop.f32.mrb[0].mxu0
      %4376 = vmatprep.mubr.bf16.mxu0 0
      %4377 = vmatmul.mubr.bf16.gmra.mrb[0].mxu0 %v2859
      %v4378 = vpop.f32.mrb[0].mxu0
      %v4379 = vadd.f32 0.0, %v4378
      %v4380 = vpop.f32.mrb[0].mxu0
      %v4381 = vpop.f32.mrb[0].mxu0
      %v4382 = vadd.f32 0.0, %v4381
      %v4383 = vpop.f32.mrb[0].mxu0
      %4384 = vmatprep.mubr.bf16.mxu0 0
      %4385 = vmatmul.mubr.bf16.gmra.mrb[0].mxu0 %v2861
      %v4386 = vpop.f32.mrb[0].mxu0
      %v4387 = vadd.f32 0.0, %v4386
      %v4388 = vpop.f32.mrb[0].mxu0
      %v4389 = vpop.f32.mrb[0].mxu0
      %v4390 = vadd.f32 0.0, %v4389
      %v4391 = vpop.f32.mrb[0].mxu0
      %4392 = vmatprep.mubr.bf16.mxu0 0
      %4393 = vmatmul.mubr.bf16.gmra.mrb[0].mxu0 %v2863
      %v4394 = vpop.f32.mrb[0].mxu0
      %v4395 = vadd.f32 0.0, %v4394
      %v4396 = vpop.f32.mrb[0].mxu0
      %v4397 = vpop.f32.mrb[0].mxu0
      %v4398 = vadd.f32 0.0, %v4397
      %v4399 = vpop.f32.mrb[0].mxu0
      %4400 = vmatprep.mubr.bf16.mxu0 0
      %4401 = vmatmul.mubr.bf16.gmra.mrb[0].mxu0 %v2865
      %v4402 = vpop.f32.mrb[0].mxu0
      %v4403 = vadd.f32 0.0, %v4402
      %v4404 = vpop.f32.mrb[0].mxu0
      %v4405 = vpop.f32.mrb[0].mxu0
      %v4406 = vadd.f32 0.0, %v4405
      %v4407 = vpop.f32.mrb[0].mxu0
      %4408 = vmatprep.mubr.bf16.mxu0 0
      %4409 = vmatmul.mubr.bf16.gmra.mrb[0].mxu0 %v2867
      %v4410 = vpop.f32.mrb[0].mxu0
      %v4411 = vadd.f32 0.0, %v4410
      %v4412 = vpop.f32.mrb[0].mxu0
      %v4413 = vpop.f32.mrb[0].mxu0
      %v4414 = vadd.f32 0.0, %v4413
      %v4415 = vpop.f32.mrb[0].mxu0
      %4416 = vmatprep.mubr.bf16.mxu0 0
      %4417 = vmatmul.mubr.bf16.gmra.mrb[0].mxu0 %v2869
      %v4418 = vpop.f32.mrb[0].mxu0
      %v4419 = vadd.f32 0.0, %v4418
      %v4420 = vpop.f32.mrb[0].mxu0
      %v4421 = vpop.f32.mrb[0].mxu0
      %v4422 = vadd.f32 0.0, %v4421
      %v4423 = vpop.f32.mrb[0].mxu0
      %4424 = vmatprep.mubr.bf16.mxu0 0
      %4425 = vmatmul.mubr.bf16.gmra.mrb[0].mxu0 %v2871
      %v4426 = vpop.f32.mrb[0].mxu0
      %v4427 = vadd.f32 0.0, %v4426
      %v4428 = vpop.f32.mrb[0].mxu0
      %v4429 = vpop.f32.mrb[0].mxu0
      %v4430 = vadd.f32 0.0, %v4429
      %v4431 = vpop.f32.mrb[0].mxu0
      %4432 = vmatprep.mubr.bf16.mxu0 0
      %4433 = vmatmul.mubr.bf16.gmra.mrb[0].mxu0 %v2873
      %v4434 = vpop.f32.mrb[0].mxu0
      %v4435 = vadd.f32 0.0, %v4434
      %v4436 = vpop.f32.mrb[0].mxu0
      %v4437 = vpop.f32.mrb[0].mxu0
      %v4438 = vadd.f32 0.0, %v4437
      %v4439 = vpop.f32.mrb[0].mxu0
      %4440 = vmatprep.mubr.bf16.mxu0 0
      %4441 = vmatmul.mubr.bf16.gmra.mrb[0].mxu0 %v3694
      %v4442 = vpop.f32.mrb[0].mxu0
      %v4443 = vadd.f32 0.0, %v4442
      %v4444 = vpop.f32.mrb[0].mxu0
      %v4445 = vpop.f32.mrb[0].mxu0
      %v4446 = vadd.f32 0.0, %v4445
      %v4447 = vpop.f32.mrb[0].mxu0
      %4448 = vmatprep.mubr.bf16.mxu0 0
      %4449 = vmatmul.mubr.bf16.gmra.mrb[0].mxu0 %v2873
      %v4450 = vpop.f32.mrb[0].mxu0
      %v4451 = vadd.f32 0.0, %v4450
      %v4452 = vpop.f32.mrb[0].mxu0
      %v4453 = vpop.f32.mrb[0].mxu0
      %v4454 = vadd.f32 0.0, %v4453
      %v4455 = vpop.f32.mrb[0].mxu0
      %4456 = vdwg.mxu0
      %v4457 = vadd.f32 %v4259, %v4331
      %v4458 = vadd.f32 %v4260, %v4334
      %v4459 = vadd.f32 %v4261, %v4339
      %v4460 = vadd.f32 %v4262, %v4342
      %v4461 = vadd.f32 %v4263, %v4347
      %v4462 = vadd.f32 %v4264, %v4350
      %v4463 = vadd.f32 %v4265, %v4355
      %v4464 = vadd.f32 %v4266, %v4358
      %v4465 = vadd.f32 %v4267, %v4363
      %v4466 = vadd.f32 %v4268, %v4366
      %v4467 = vadd.f32 %v4269, %v4371
      %v4468 = vadd.f32 %v4270, %v4374
      %v4469 = vadd.f32 %v4271, %v4379
      %v4470 = vadd.f32 %v4272, %v4382
      %v4471 = vadd.f32 %v4273, %v4387
      %v4472 = vadd.f32 %v4274, %v4390
      %v4473 = vadd.f32 %v4275, %v4395
      %v4474 = vadd.f32 %v4276, %v4398
      %v4475 = vadd.f32 %v4277, %v4403
      %v4476 = vadd.f32 %v4278, %v4406
      %v4477 = vadd.f32 %v4279, %v4411
      %v4478 = vadd.f32 %v4280, %v4414
      %v4479 = vadd.f32 %v4281, %v4419
      %v4480 = vadd.f32 %v4282, %v4422
      %v4481 = vadd.f32 %v4283, %v4427
      %v4482 = vadd.f32 %v4284, %v4430
      %v4483 = vadd.f32 %v4285, %v4435
      %v4484 = vadd.f32 %v4286, %v4438
      %v4485 = vadd.f32 %v4287, %v4443
      %v4486 = vadd.f32 %v4288, %v4446
      %v4487 = vadd.f32 %v4289, %v4451
      %v4488 = vadd.f32 %v4290, %v4454
      %s4489 = scalar_lea.vmem %s2, 16
      %v4490 = vld [vmem:[%s4489] sm:$0x3]
      %v4492 = vsel %vm500, %v4490, 0
      %4494 = vmatprep.subr.bf16.mxu0 0
      %4495 = vmatpush1.bf16.msra.mxu0 %v4492
      %4496 = vmatprep.subr.bf16.mxu0 0
      %4497 = vmatpush1.bf16.msra.mxu0 0
      %4498 = vmatprep.subr.bf16.mxu0 0
      %4499 = vmatpush1.bf16.msra.mxu0 0
      %4500 = vmatprep.subr.bf16.mxu0 0
      %4501 = vmatpush1.bf16.msra.mxu0 0
      %4502 = vmatprep.subr.bf16.mxu0 0
      %4503 = vmatpush1.bf16.msra.mxu0 0
      %4504 = vmatprep.subr.bf16.mxu0 0
      %4505 = vmatpush1.bf16.msra.mxu0 0
      %4506 = vmatprep.subr.bf16.mxu0 0
      %4507 = vmatpush1.bf16.msra.mxu0 0
      %4508 = vmatprep.subr.bf16.mxu0 0
      %4509 = vmatpush1.bf16.msra.mxu0 0
      %4510 = vmatprep.subr.bf16.mxu0 0
      %4511 = vmatpush1.bf16.msra.mxu0 0
      %4512 = vmatprep.subr.bf16.mxu0 0
      %4513 = vmatpush1.bf16.msra.mxu0 0
      %4514 = vmatprep.subr.bf16.mxu0 0
      %4515 = vmatpush1.bf16.msra.mxu0 0
      %4516 = vmatprep.subr.bf16.mxu0 0
      %4517 = vmatpush1.bf16.msra.mxu0 0
      %4518 = vmatprep.subr.bf16.mxu0 0
      %4519 = vmatpush1.bf16.msra.mxu0 0
      %4520 = vmatprep.subr.bf16.mxu0 0
      %4521 = vmatpush1.bf16.msra.mxu0 0
      %4522 = vmatprep.subr.bf16.mxu0 0
      %4523 = vmatpush1.bf16.msra.mxu0 0
      %4524 = vmatprep.subr.bf16.mxu0 0
      %4525 = vmatpush1.bf16.msra.mxu0 0
      %4526 = vmatprep.mubr.bf16.mxu0 0
      %4527 = vmatmul.mubr.bf16.gmra.mrb[0].mxu0 %v3251
      %v4528 = vpop.f32.mrb[0].mxu0
      %v4529 = vadd.f32 0.0, %v4528
      %v4530 = vpop.f32.mrb[0].mxu0
      %v4531 = vpop.f32.mrb[0].mxu0
      %v4532 = vadd.f32 0.0, %v4531
      %v4533 = vpop.f32.mrb[0].mxu0
      %4534 = vmatprep.mubr.bf16.mxu0 0
      %4535 = vmatmul.mubr.bf16.gmra.mrb[0].mxu0 %v3257
      %v4536 = vpop.f32.mrb[0].mxu0
      %v4537 = vadd.f32 0.0, %v4536
      %v4538 = vpop.f32.mrb[0].mxu0
      %v4539 = vpop.f32.mrb[0].mxu0
      %v4540 = vadd.f32 0.0, %v4539
      %v4541 = vpop.f32.mrb[0].mxu0
      %4542 = vmatprep.mubr.bf16.mxu0 0
      %4543 = vmatmul.mubr.bf16.gmra.mrb[0].mxu0 %v3260
      %v4544 = vpop.f32.mrb[0].mxu0
      %v4545 = vadd.f32 0.0, %v4544
      %v4546 = vpop.f32.mrb[0].mxu0
      %v4547 = vpop.f32.mrb[0].mxu0
      %v4548 = vadd.f32 0.0, %v4547
      %v4549 = vpop.f32.mrb[0].mxu0
      %4550 = vmatprep.mubr.bf16.mxu0 0
      %4551 = vmatmul.mubr.bf16.gmra.mrb[0].mxu0 %v3263
      %v4552 = vpop.f32.mrb[0].mxu0
      %v4553 = vadd.f32 0.0, %v4552
      %v4554 = vpop.f32.mrb[0].mxu0
      %v4555 = vpop.f32.mrb[0].mxu0
      %v4556 = vadd.f32 0.0, %v4555
      %v4557 = vpop.f32.mrb[0].mxu0
      %4558 = vmatprep.mubr.bf16.mxu0 0
      %4559 = vmatmul.mubr.bf16.gmra.mrb[0].mxu0 %v3266
      %v4560 = vpop.f32.mrb[0].mxu0
      %v4561 = vadd.f32 0.0, %v4560
      %v4562 = vpop.f32.mrb[0].mxu0
      %v4563 = vpop.f32.mrb[0].mxu0
      %v4564 = vadd.f32 0.0, %v4563
      %v4565 = vpop.f32.mrb[0].mxu0
      %4566 = vmatprep.mubr.bf16.mxu0 0
      %4567 = vmatmul.mubr.bf16.gmra.mrb[0].mxu0 %v3269
      %v4568 = vpop.f32.mrb[0].mxu0
      %v4569 = vadd.f32 0.0, %v4568
      %v4570 = vpop.f32.mrb[0].mxu0
      %v4571 = vpop.f32.mrb[0].mxu0
      %v4572 = vadd.f32 0.0, %v4571
      %v4573 = vpop.f32.mrb[0].mxu0
      %4574 = vmatprep.mubr.bf16.mxu0 0
      %4575 = vmatmul.mubr.bf16.gmra.mrb[0].mxu0 %v3272
      %v4576 = vpop.f32.mrb[0].mxu0
      %v4577 = vadd.f32 0.0, %v4576
      %v4578 = vpop.f32.mrb[0].mxu0
      %v4579 = vpop.f32.mrb[0].mxu0
      %v4580 = vadd.f32 0.0, %v4579
      %v4581 = vpop.f32.mrb[0].mxu0
      %4582 = vmatprep.mubr.bf16.mxu0 0
      %4583 = vmatmul.mubr.bf16.gmra.mrb[0].mxu0 %v3275
      %v4584 = vpop.f32.mrb[0].mxu0
      %v4585 = vadd.f32 0.0, %v4584
      %v4586 = vpop.f32.mrb[0].mxu0
      %v4587 = vpop.f32.mrb[0].mxu0
      %v4588 = vadd.f32 0.0, %v4587
      %v4589 = vpop.f32.mrb[0].mxu0
      %4590 = vmatprep.mubr.bf16.mxu0 0
      %4591 = vmatmul.mubr.bf16.gmra.mrb[0].mxu0 %v3278
      %v4592 = vpop.f32.mrb[0].mxu0
      %v4593 = vadd.f32 0.0, %v4592
      %v4594 = vpop.f32.mrb[0].mxu0
      %v4595 = vpop.f32.mrb[0].mxu0
      %v4596 = vadd.f32 0.0, %v4595
      %v4597 = vpop.f32.mrb[0].mxu0
      %4598 = vmatprep.mubr.bf16.mxu0 0
      %4599 = vmatmul.mubr.bf16.gmra.mrb[0].mxu0 %v3281
      %v4600 = vpop.f32.mrb[0].mxu0
      %v4601 = vadd.f32 0.0, %v4600
      %v4602 = vpop.f32.mrb[0].mxu0
      %v4603 = vpop.f32.mrb[0].mxu0
      %v4604 = vadd.f32 0.0, %v4603
      %v4605 = vpop.f32.mrb[0].mxu0
      %4606 = vmatprep.mubr.bf16.mxu0 0
      %4607 = vmatmul.mubr.bf16.gmra.mrb[0].mxu0 %v3284
      %v4608 = vpop.f32.mrb[0].mxu0
      %v4609 = vadd.f32 0.0, %v4608
      %v4610 = vpop.f32.mrb[0].mxu0
      %v4611 = vpop.f32.mrb[0].mxu0
      %v4612 = vadd.f32 0.0, %v4611
      %v4613 = vpop.f32.mrb[0].mxu0
      %4614 = vmatprep.mubr.bf16.mxu0 0
      %4615 = vmatmul.mubr.bf16.gmra.mrb[0].mxu0 %v3287
      %v4616 = vpop.f32.mrb[0].mxu0
      %v4617 = vadd.f32 0.0, %v4616
      %v4618 = vpop.f32.mrb[0].mxu0
      %v4619 = vpop.f32.mrb[0].mxu0
      %v4620 = vadd.f32 0.0, %v4619
      %v4621 = vpop.f32.mrb[0].mxu0
      %4622 = vmatprep.mubr.bf16.mxu0 0
      %4623 = vmatmul.mubr.bf16.gmra.mrb[0].mxu0 %v3290
      %v4624 = vpop.f32.mrb[0].mxu0
      %v4625 = vadd.f32 0.0, %v4624
      %v4626 = vpop.f32.mrb[0].mxu0
      %v4627 = vpop.f32.mrb[0].mxu0
      %v4628 = vadd.f32 0.0, %v4627
      %v4629 = vpop.f32.mrb[0].mxu0
      %4630 = vmatprep.mubr.bf16.mxu0 0
      %4631 = vmatmul.mubr.bf16.gmra.mrb[0].mxu0 %v3293
      %v4632 = vpop.f32.mrb[0].mxu0
      %v4633 = vadd.f32 0.0, %v4632
      %v4634 = vpop.f32.mrb[0].mxu0
      %v4635 = vpop.f32.mrb[0].mxu0
      %v4636 = vadd.f32 0.0, %v4635
      %v4637 = vpop.f32.mrb[0].mxu0
      %4638 = vmatprep.mubr.bf16.mxu0 0
      %4639 = vmatmul.mubr.bf16.gmra.mrb[0].mxu0 %v3895
      %v4640 = vpop.f32.mrb[0].mxu0
      %v4641 = vadd.f32 0.0, %v4640
      %v4642 = vpop.f32.mrb[0].mxu0
      %v4643 = vpop.f32.mrb[0].mxu0
      %v4644 = vadd.f32 0.0, %v4643
      %v4645 = vpop.f32.mrb[0].mxu0
      %4646 = vmatprep.mubr.bf16.mxu0 0
      %4647 = vmatmul.mubr.bf16.gmra.mrb[0].mxu0 %v3293
      %v4648 = vpop.f32.mrb[0].mxu0
      %v4649 = vadd.f32 0.0, %v4648
      %v4650 = vpop.f32.mrb[0].mxu0
      %v4651 = vpop.f32.mrb[0].mxu0
      %v4652 = vadd.f32 0.0, %v4651
      %v4653 = vpop.f32.mrb[0].mxu0
      %4654 = vdwg.mxu0
      %v4655 = vadd.f32 %v4457, %v4529
      %v4656 = vadd.f32 %v4458, %v4532
      %v4657 = vadd.f32 %v4459, %v4537
      %v4658 = vadd.f32 %v4460, %v4540
      %v4659 = vadd.f32 %v4461, %v4545
      %v4660 = vadd.f32 %v4462, %v4548
      %v4661 = vadd.f32 %v4463, %v4553
      %v4662 = vadd.f32 %v4464, %v4556
      %v4663 = vadd.f32 %v4465, %v4561
      %v4664 = vadd.f32 %v4466, %v4564
      %v4665 = vadd.f32 %v4467, %v4569
      %v4666 = vadd.f32 %v4468, %v4572
      %v4667 = vadd.f32 %v4469, %v4577
      %v4668 = vadd.f32 %v4470, %v4580
      %v4669 = vadd.f32 %v4471, %v4585
      %v4670 = vadd.f32 %v4472, %v4588
      %v4671 = vadd.f32 %v4473, %v4593
      %v4672 = vadd.f32 %v4474, %v4596
      %v4673 = vadd.f32 %v4475, %v4601
      %v4674 = vadd.f32 %v4476, %v4604
      %v4675 = vadd.f32 %v4477, %v4609
      %v4676 = vadd.f32 %v4478, %v4612
      %v4677 = vadd.f32 %v4479, %v4617
      %v4678 = vadd.f32 %v4480, %v4620
      %v4679 = vadd.f32 %v4481, %v4625
      %v4680 = vadd.f32 %v4482, %v4628
      %v4681 = vadd.f32 %v4483, %v4633
      %v4682 = vadd.f32 %v4484, %v4636
      %v4683 = vadd.f32 %v4485, %v4641
      %v4684 = vadd.f32 %v4486, %v4644
      %v4685 = vadd.f32 %v4487, %v4649
      %v4686 = vadd.f32 %v4488, %v4652
      %v4687 = vsel %vm469, %v4655, 0.0
      %v4688 = vsel %vm469, %v4656, 0.0
      %v4689 = vadd.f32 %v4687, %v4688
      %v4690 = vsel %vm469, %v4657, 0.0
      %v4691 = vadd.f32 %v4689, %v4690
      %v4692 = vsel %vm469, %v4658, 0.0
      %v4693 = vadd.f32 %v4691, %v4692
      %v4694 = vsel %vm469, %v4659, 0.0
      %v4695 = vadd.f32 %v4693, %v4694
      %v4696 = vsel %vm469, %v4660, 0.0
      %v4697 = vadd.f32 %v4695, %v4696
      %v4698 = vsel %vm469, %v4661, 0.0
      %v4699 = vadd.f32 %v4697, %v4698
      %v4700 = vsel %vm469, %v4662, 0.0
      %v4701 = vadd.f32 %v4699, %v4700
      %v4702 = vsel %vm469, %v4663, 0.0
      %v4703 = vadd.f32 %v4701, %v4702
      %v4704 = vsel %vm469, %v4664, 0.0
      %v4705 = vadd.f32 %v4703, %v4704
      %v4706 = vsel %vm469, %v4665, 0.0
      %v4707 = vadd.f32 %v4705, %v4706
      %v4708 = vsel %vm469, %v4666, 0.0
      %v4709 = vadd.f32 %v4707, %v4708
      %v4710 = vsel %vm469, %v4667, 0.0
      %v4711 = vadd.f32 %v4709, %v4710
      %v4712 = vsel %vm469, %v4668, 0.0
      %v4713 = vadd.f32 %v4711, %v4712
      %v4714 = vsel %vm469, %v4669, 0.0
      %v4715 = vadd.f32 %v4713, %v4714
      %v4716 = vsel %vm469, %v4670, 0.0
      %v4717 = vadd.f32 %v4715, %v4716
      %v4718 = vsel %vm469, %v4671, 0.0
      %v4719 = vadd.f32 %v4717, %v4718
      %v4720 = vsel %vm469, %v4672, 0.0
      %v4721 = vadd.f32 %v4719, %v4720
      %v4722 = vsel %vm469, %v4673, 0.0
      %v4723 = vadd.f32 %v4721, %v4722
      %v4724 = vsel %vm469, %v4674, 0.0
      %v4725 = vadd.f32 %v4723, %v4724
      %v4726 = vsel %vm469, %v4675, 0.0
      %v4727 = vadd.f32 %v4725, %v4726
      %v4728 = vsel %vm469, %v4676, 0.0
      %v4729 = vadd.f32 %v4727, %v4728
      %v4730 = vsel %vm469, %v4677, 0.0
      %v4731 = vadd.f32 %v4729, %v4730
      %v4732 = vsel %vm469, %v4678, 0.0
      %v4733 = vadd.f32 %v4731, %v4732
      %v4734 = vsel %vm469, %v4679, 0.0
      %v4735 = vadd.f32 %v4733, %v4734
      %v4736 = vsel %vm469, %v4680, 0.0
      %v4737 = vadd.f32 %v4735, %v4736
      %v4738 = vsel %vm469, %v4681, 0.0
      %v4739 = vadd.f32 %v4737, %v4738
      %v4740 = vsel %vm469, %v4682, 0.0
      %v4741 = vadd.f32 %v4739, %v4740
      %v4742 = vsel %vm469, %v4683, 0.0
      %v4743 = vadd.f32 %v4741, %v4742
      %v4744 = vsel %vm469, %v4684, 0.0
      %v4745 = vadd.f32 %v4743, %v4744
      %v4746 = vsel %vm469, %v4685, 0.0
      %v4747 = vadd.f32 %v4745, %v4746
      %v4748 = vsel %vm469, %v4686, 0.0
      %v4749 = vadd.f32 %v4747, %v4748
      %v4750 = vrot.slane %v4749, 4
      %v4751 = vadd.f32 %v4749, %v4750
      %v4752 = vrot.slane %v4751, 2
      %v4753 = vadd.f32 %v4751, %v4752
      %v4754 = vrot.slane %v4753, 1
      %v4755 = vadd.f32 %v4753, %v4754
      %v4756 = vmul.f32 %v4655, %v4655
      %v4757 = vmul.f32 %v4656, %v4656
      %v4758 = vmul.f32 %v4657, %v4657
      %v4759 = vmul.f32 %v4658, %v4658
      %v4760 = vmul.f32 %v4659, %v4659
      %v4761 = vmul.f32 %v4660, %v4660
      %v4762 = vmul.f32 %v4661, %v4661
      %v4763 = vmul.f32 %v4662, %v4662
      %v4764 = vmul.f32 %v4663, %v4663
      %v4765 = vmul.f32 %v4664, %v4664
      %v4766 = vmul.f32 %v4665, %v4665
      %v4767 = vmul.f32 %v4666, %v4666
      %v4768 = vmul.f32 %v4667, %v4667
      %v4769 = vmul.f32 %v4668, %v4668
      %v4770 = vmul.f32 %v4669, %v4669
      %v4771 = vmul.f32 %v4670, %v4670
      %v4772 = vmul.f32 %v4671, %v4671
      %v4773 = vmul.f32 %v4672, %v4672
      %v4774 = vmul.f32 %v4673, %v4673
      %v4775 = vmul.f32 %v4674, %v4674
      %v4776 = vmul.f32 %v4675, %v4675
      %v4777 = vmul.f32 %v4676, %v4676
      %v4778 = vmul.f32 %v4677, %v4677
      %v4779 = vmul.f32 %v4678, %v4678
      %v4780 = vmul.f32 %v4679, %v4679
      %v4781 = vmul.f32 %v4680, %v4680
      %v4782 = vmul.f32 %v4681, %v4681
      %v4783 = vmul.f32 %v4682, %v4682
      %v4784 = vmul.f32 %v4683, %v4683
      %v4785 = vmul.f32 %v4684, %v4684
      %v4786 = vmul.f32 %v4685, %v4685
      %v4787 = vmul.f32 %v4686, %v4686
      %v4788 = vsel %vm469, %v4756, 0.0
      %v4789 = vsel %vm469, %v4757, 0.0
      %v4790 = vadd.f32 %v4788, %v4789
      %v4791 = vsel %vm469, %v4758, 0.0
      %v4792 = vadd.f32 %v4790, %v4791
      %v4793 = vsel %vm469, %v4759, 0.0
      %v4794 = vadd.f32 %v4792, %v4793
      %v4795 = vsel %vm469, %v4760, 0.0
      %v4796 = vadd.f32 %v4794, %v4795
      %v4797 = vsel %vm469, %v4761, 0.0
      %v4798 = vadd.f32 %v4796, %v4797
      %v4799 = vsel %vm469, %v4762, 0.0
      %v4800 = vadd.f32 %v4798, %v4799
      %v4801 = vsel %vm469, %v4763, 0.0
      %v4802 = vadd.f32 %v4800, %v4801
      %v4803 = vsel %vm469, %v4764, 0.0
      %v4804 = vadd.f32 %v4802, %v4803
      %v4805 = vsel %vm469, %v4765, 0.0
      %v4806 = vadd.f32 %v4804, %v4805
      %v4807 = vsel %vm469, %v4766, 0.0
      %v4808 = vadd.f32 %v4806, %v4807
      %v4809 = vsel %vm469, %v4767, 0.0
      %v4810 = vadd.f32 %v4808, %v4809
      %v4811 = vsel %vm469, %v4768, 0.0
      %v4812 = vadd.f32 %v4810, %v4811
      %v4813 = vsel %vm469, %v4769, 0.0
      %v4814 = vadd.f32 %v4812, %v4813
      %v4815 = vsel %vm469, %v4770, 0.0
      %v4816 = vadd.f32 %v4814, %v4815
      %v4817 = vsel %vm469, %v4771, 0.0
      %v4818 = vadd.f32 %v4816, %v4817
      %v4819 = vsel %vm469, %v4772, 0.0
      %v4820 = vadd.f32 %v4818, %v4819
      %v4821 = vsel %vm469, %v4773, 0.0
      %v4822 = vadd.f32 %v4820, %v4821
      %v4823 = vsel %vm469, %v4774, 0.0
      %v4824 = vadd.f32 %v4822, %v4823
      %v4825 = vsel %vm469, %v4775, 0.0
      %v4826 = vadd.f32 %v4824, %v4825
      %v4827 = vsel %vm469, %v4776, 0.0
      %v4828 = vadd.f32 %v4826, %v4827
      %v4829 = vsel %vm469, %v4777, 0.0
      %v4830 = vadd.f32 %v4828, %v4829
      %v4831 = vsel %vm469, %v4778, 0.0
      %v4832 = vadd.f32 %v4830, %v4831
      %v4833 = vsel %vm469, %v4779, 0.0
      %v4834 = vadd.f32 %v4832, %v4833
      %v4835 = vsel %vm469, %v4780, 0.0
      %v4836 = vadd.f32 %v4834, %v4835
      %v4837 = vsel %vm469, %v4781, 0.0
      %v4838 = vadd.f32 %v4836, %v4837
      %v4839 = vsel %vm469, %v4782, 0.0
      %v4840 = vadd.f32 %v4838, %v4839
      %v4841 = vsel %vm469, %v4783, 0.0
      %v4842 = vadd.f32 %v4840, %v4841
      %v4843 = vsel %vm469, %v4784, 0.0
      %v4844 = vadd.f32 %v4842, %v4843
      %v4845 = vsel %vm469, %v4785, 0.0
      %v4846 = vadd.f32 %v4844, %v4845
      %v4847 = vsel %vm469, %v4786, 0.0
      %v4848 = vadd.f32 %v4846, %v4847
      %v4849 = vsel %vm469, %v4787, 0.0
      %v4850 = vadd.f32 %v4848, %v4849
      %v4851 = vrot.slane %v4850, 4
      %v4852 = vadd.f32 %v4850, %v4851
      %v4853 = vrot.slane %v4852, 2
      %v4854 = vadd.f32 %v4852, %v4853
      %v4855 = vrot.slane %v4854, 1
      %v4856 = vadd.f32 %v4854, %v4855
      %v4857 = vmul.f32 %v4755, 0.00390625
      %v4858 = vmul.f32 %v4856, 0.00390625
      %v4859 = vmul.f32 %v4857, %v4857
      %v4860 = vsub.f32 %v4858, %v4859
      %v4861 = vmax.f32 %v4860, 0.0
      %v4862 = vsub.f32 %v4655, %v4857
      %v4863 = vsub.f32 %v4656, %v4857
      %v4864 = vsub.f32 %v4657, %v4857
      %v4865 = vsub.f32 %v4658, %v4857
      %v4866 = vsub.f32 %v4659, %v4857
      %v4867 = vsub.f32 %v4660, %v4857
      %v4868 = vsub.f32 %v4661, %v4857
      %v4869 = vsub.f32 %v4662, %v4857
      %v4870 = vsub.f32 %v4663, %v4857
      %v4871 = vsub.f32 %v4664, %v4857
      %v4872 = vsub.f32 %v4665, %v4857
      %v4873 = vsub.f32 %v4666, %v4857
      %v4874 = vsub.f32 %v4667, %v4857
      %v4875 = vsub.f32 %v4668, %v4857
      %v4876 = vsub.f32 %v4669, %v4857
      %v4877 = vsub.f32 %v4670, %v4857
      %v4878 = vsub.f32 %v4671, %v4857
      %v4879 = vsub.f32 %v4672, %v4857
      %v4880 = vsub.f32 %v4673, %v4857
      %v4881 = vsub.f32 %v4674, %v4857
      %v4882 = vsub.f32 %v4675, %v4857
      %v4883 = vsub.f32 %v4676, %v4857
      %v4884 = vsub.f32 %v4677, %v4857
      %v4885 = vsub.f32 %v4678, %v4857
      %v4886 = vsub.f32 %v4679, %v4857
      %v4887 = vsub.f32 %v4680, %v4857
      %v4888 = vsub.f32 %v4681, %v4857
      %v4889 = vsub.f32 %v4682, %v4857
      %v4890 = vsub.f32 %v4683, %v4857
      %v4891 = vsub.f32 %v4684, %v4857
      %v4892 = vsub.f32 %v4685, %v4857
      %v4893 = vsub.f32 %v4686, %v4857
      %v4894 = vadd.f32 %v4861, 1e-05
      %v4895 = vrsqrt.pop %v4894
      %v4896 = vmul.f32 %v4862, %v4895
      %v4897 = vmul.f32 %v4863, %v4895
      %v4898 = vmul.f32 %v4864, %v4895
      %v4899 = vmul.f32 %v4865, %v4895
      %v4900 = vmul.f32 %v4866, %v4895
      %v4901 = vmul.f32 %v4867, %v4895
      %v4902 = vmul.f32 %v4868, %v4895
      %v4903 = vmul.f32 %v4869, %v4895
      %v4904 = vmul.f32 %v4870, %v4895
      %v4905 = vmul.f32 %v4871, %v4895
      %v4906 = vmul.f32 %v4872, %v4895
      %v4907 = vmul.f32 %v4873, %v4895
      %v4908 = vmul.f32 %v4874, %v4895
      %v4909 = vmul.f32 %v4875, %v4895
      %v4910 = vmul.f32 %v4876, %v4895
      %v4911 = vmul.f32 %v4877, %v4895
      %v4912 = vmul.f32 %v4878, %v4895
      %v4913 = vmul.f32 %v4879, %v4895
      %v4914 = vmul.f32 %v4880, %v4895
      %v4915 = vmul.f32 %v4881, %v4895
      %v4916 = vmul.f32 %v4882, %v4895
      %v4917 = vmul.f32 %v4883, %v4895
      %v4918 = vmul.f32 %v4884, %v4895
      %v4919 = vmul.f32 %v4885, %v4895
      %v4920 = vmul.f32 %v4886, %v4895
      %v4921 = vmul.f32 %v4887, %v4895
      %v4922 = vmul.f32 %v4888, %v4895
      %v4923 = vmul.f32 %v4889, %v4895
      %v4924 = vmul.f32 %v4890, %v4895
      %v4925 = vmul.f32 %v4891, %v4895
      %v4926 = vmul.f32 %v4892, %v4895
      %v4927 = vmul.f32 %v4893, %v4895
      %v4928 = vadd.f32 %v4896, %v172
      %v4929 = vadd.f32 %v4897, %v173
      %v4930 = vadd.f32 %v4898, %v174
      %v4931 = vadd.f32 %v4899, %v175
      %v4932 = vadd.f32 %v4900, %v176
      %v4933 = vadd.f32 %v4901, %v177
      %v4934 = vadd.f32 %v4902, %v178
      %v4935 = vadd.f32 %v4903, %v179
      %v4936 = vadd.f32 %v4904, %v180
      %v4937 = vadd.f32 %v4905, %v181
      %v4938 = vadd.f32 %v4906, %v182
      %v4939 = vadd.f32 %v4907, %v183
      %v4940 = vadd.f32 %v4908, %v184
      %v4941 = vadd.f32 %v4909, %v185
      %v4942 = vadd.f32 %v4910, %v186
      %v4943 = vadd.f32 %v4911, %v187
      %v4944 = vadd.f32 %v4912, %v188
      %v4945 = vadd.f32 %v4913, %v189
      %v4946 = vadd.f32 %v4914, %v190
      %v4947 = vadd.f32 %v4915, %v191
      %v4948 = vadd.f32 %v4916, %v192
      %v4949 = vadd.f32 %v4917, %v193
      %v4950 = vadd.f32 %v4918, %v194
      %v4951 = vadd.f32 %v4919, %v195
      %v4952 = vadd.f32 %v4920, %v196
      %v4953 = vadd.f32 %v4921, %v197
      %v4954 = vadd.f32 %v4922, %v198
      %v4955 = vadd.f32 %v4923, %v199
      %v4956 = vadd.f32 %v4924, %v200
      %v4957 = vadd.f32 %v4925, %v201
      %v4958 = vadd.f32 %v4926, %v202
      %v4959 = vadd.f32 %v4927, %v203
      %4960 = vst.msk [vmem:[%s170] sm:$0xff] %vm469, %v4928
      %4961 = vst.msk [vmem:[%s170 + $0x8] sm:$0xff] %vm469, %v4929
      %4962 = vst.msk [vmem:[%s170 + $0x10] sm:$0xff] %vm469, %v4930
      %4963 = vst.msk [vmem:[%s170 + $0x18] sm:$0xff] %vm469, %v4931
      %4964 = vst.msk [vmem:[%s170 + $0x20] sm:$0xff] %vm469, %v4932
      %4965 = vst.msk [vmem:[%s170 + $0x28] sm:$0xff] %vm469, %v4933
      %4966 = vst.msk [vmem:[%s170 + $0x30] sm:$0xff] %vm469, %v4934
      %4967 = vst.msk [vmem:[%s170 + $0x38] sm:$0xff] %vm469, %v4935
      %4968 = vst.msk [vmem:[%s170 + $0x40] sm:$0xff] %vm469, %v4936
      %4969 = vst.msk [vmem:[%s170 + $0x48] sm:$0xff] %vm469, %v4937
      %4970 = vst.msk [vmem:[%s170 + $0x50] sm:$0xff] %vm469, %v4938
      %4971 = vst.msk [vmem:[%s170 + $0x58] sm:$0xff] %vm469, %v4939
      %4972 = vst.msk [vmem:[%s170 + $0x60] sm:$0xff] %vm469, %v4940
      %4973 = vst.msk [vmem:[%s170 + $0x68] sm:$0xff] %vm469, %v4941
      %4974 = vst.msk [vmem:[%s170 + $0x70] sm:$0xff] %vm469, %v4942
      %4975 = vst.msk [vmem:[%s170 + $0x78] sm:$0xff] %vm469, %v4943
      %4976 = vst.msk [vmem:[%s170 + $0x80] sm:$0xff] %vm469, %v4944
      %4977 = vst.msk [vmem:[%s170 + $0x88] sm:$0xff] %vm469, %v4945
      %4978 = vst.msk [vmem:[%s170 + $0x90] sm:$0xff] %vm469, %v4946
      %4979 = vst.msk [vmem:[%s170 + $0x98] sm:$0xff] %vm469, %v4947
      %4980 = vst.msk [vmem:[%s170 + $0xa0] sm:$0xff] %vm469, %v4948
      %4981 = vst.msk [vmem:[%s170 + $0xa8] sm:$0xff] %vm469, %v4949
      %4982 = vst.msk [vmem:[%s170 + $0xb0] sm:$0xff] %vm469, %v4950
      %4983 = vst.msk [vmem:[%s170 + $0xb8] sm:$0xff] %vm469, %v4951
      %4984 = vst.msk [vmem:[%s170 + $0xc0] sm:$0xff] %vm469, %v4952
      %4985 = vst.msk [vmem:[%s170 + $0xc8] sm:$0xff] %vm469, %v4953
      %4986 = vst.msk [vmem:[%s170 + $0xd0] sm:$0xff] %vm469, %v4954
      %4987 = vst.msk [vmem:[%s170 + $0xd8] sm:$0xff] %vm469, %v4955
      %4988 = vst.msk [vmem:[%s170 + $0xe0] sm:$0xff] %vm469, %v4956
      %4989 = vst.msk [vmem:[%s170 + $0xe8] sm:$0xff] %vm469, %v4957
      %4990 = vst.msk [vmem:[%s170 + $0xf0] sm:$0xff] %vm469, %v4958
      %4991 = vst.msk [vmem:[%s170 + $0xf8] sm:$0xff] %vm469, %v4959
      %p4992 = scmp.lt.s32.totalorder %s14, 1
      %s4993 = scalar_select %p4992, %s14, 1
      %s4994 = smul.addr %s4993, 32
      %s4995 = smul.addr %s4994, 8
      %s4996 = scalar_lea.vmem %s3, %s4995
      // Predicated region
      $region33: #{tpu_custom_call.1} parent=31 // pred_check
        %p4997 = pneg %p100
      $region34: #{tpu_custom_call.1} parent=31 // pred_check_branch
        %4999 = sbr.rel (%p4997) target = $region36
      $region35: #{tpu_custom_call.1} parent=31 // pred_region
        _
      $region36: #{tpu_custom_call.1} parent=31 // pred_fallthru
        _
    $region32: #{tpu_custom_call.1} parent=5 // pred_fallthru
      _
    %p5000 = scmp.le.s32.totalorder 2, %s9
    // Predicated region
    $region37: #{tpu_custom_call.1} parent=5 // pred_check
      %p5001 = pneg %p5000
    $region38: #{tpu_custom_call.1} parent=5 // pred_check_branch
      %5003 = sbr.rel (%p5001) target = $region40
    $region39: #{tpu_custom_call.1} parent=5 // pred_region
      %s5004 = ssub.s32 %s9, 2
      // Predicated region
      $region41: #{tpu_custom_call.1} parent=39 // pred_check
        %p5005 = pneg %p106
      $region42: #{tpu_custom_call.1} parent=39 // pred_check_branch
        %5007 = sbr.rel (%p5005) target = $region44
      $region43: #{tpu_custom_call.1} parent=39 // pred_region
        %p5008 = scmp.lt.s32.totalorder %s15, 1
        %s5009 = scalar_select %p5008, %s15, 1
        %s5010 = smul.addr %s5009, 32
        %s5011 = smul.addr %s5010, 8
        %s5012 = scalar_lea.vmem %s3, %s5011
      $region44: #{tpu_custom_call.1} parent=39 // pred_fallthru
        _
    $region40: #{tpu_custom_call.1} parent=5 // pred_fallthru
      _
  $region6: #{tpu_custom_call.1} parent=0 // loop_footer
    %s13 = sadd.s32 1, %s9
  $region7: #{tpu_custom_call.1} parent=0 // loop_footer_branch
    %8 = sbr.rel target = $region3
  $region8: #{tpu_custom_call.1} parent=0 // loop_exit
    _

</llo_original>
